<compile_context>
chip_gen: v7x
topology: tpu7x:2x2x1
jax: 0.10.0
libtpu: 0.0.40
codegen_flags: <defaults>
</compile_context>

<pallas_src>
import functools
import math

import jax
import jax.numpy as jnp
from jax import lax
from jax.experimental import pallas as pl
from jax.experimental.pallas import tpu as pltpu

EPS = 1e-5


# --------------------------------- kernels ----------------------------------
def _conv1_kernel(x_ref, w_ref, y_ref, st_ref, acc_ref, *, stride, Hout, Wout):
    """3x3/stride conv over one image + per-image (sum, sumsq) channel stats."""
    Cin = x_ref.shape[-1]
    R = Hout * Wout
    x = x_ref[0]                                          # (Hp, Wp, Cin) f32

    def tap(t):
        ky, kx = divmod(t, 3)
        p = x[ky:ky + (Hout - 1) * stride + 1:stride,
              kx:kx + (Wout - 1) * stride + 1:stride, :]  # (Hout, Wout, Cin)
        return p.reshape(R, Cin).astype(jnp.bfloat16)

    acc_ref[...] = jnp.dot(tap(0), w_ref[0], preferred_element_type=jnp.float32)
    for t in range(1, 9):
        acc_ref[...] += jnp.dot(tap(t), w_ref[t],
                                preferred_element_type=jnp.float32)

    acc = acc_ref[...]                                    # (R, C) f32
    y_ref[0] = acc.astype(y_ref.dtype)                    # bf16 to HBM
    st_ref[0, 0:1, :] = jnp.sum(acc, axis=0, keepdims=True)
    st_ref[0, 1:2, :] = jnp.sum(acc * acc, axis=0, keepdims=True)


def _bn1_conv2_kernel(y1_ref, a1_ref, b1_ref, w2_ref, *rest,
                      Hout, Wout, has_proj):
    """relu(bn1(conv1)) -> 3x3 conv2 (+ 1x1 shortcut conv), per-image stats."""
    if has_proj:
        (xsc_ref, ws_ref, y2_ref, st2_ref, ysc_ref, stsc_ref,
         pad_ref, acc_ref) = rest
    else:
        y2_ref, st2_ref, pad_ref, acc_ref = rest
    C = w2_ref.shape[-1]
    R = Hout * Wout

    # BN1 (precomputed global affine) + ReLU, staged into padded f32 scratch.
    z = jnp.maximum(y1_ref[0] * a1_ref[...] + b1_ref[...], 0.0)        # (R, C) f32

    # Zero only the 1-px halo ring (done every step -> correct under megacore
    # "parallel" partitioning), then write the interior.
    pad_ref[0:1, :, :] = jnp.zeros((1, Wout + 2, C), jnp.float32)
    pad_ref[Hout + 1:Hout + 2, :, :] = jnp.zeros((1, Wout + 2, C), jnp.float32)
    pad_ref[:, 0:1, :] = jnp.zeros((Hout + 2, 1, C), jnp.float32)
    pad_ref[:, Wout + 1:Wout + 2, :] = jnp.zeros((Hout + 2, 1, C), jnp.float32)
    pad_ref[1:1 + Hout, 1:1 + Wout, :] = z.reshape(Hout, Wout, C)

    def tap(t):
        ky, kx = divmod(t, 3)
        return (pad_ref[ky:ky + Hout, kx:kx + Wout, :]
                .reshape(R, C).astype(jnp.bfloat16))

    acc_ref[...] = jnp.dot(tap(0), w2_ref[0], preferred_element_type=jnp.float32)
    for t in range(1, 9):
        acc_ref[...] += jnp.dot(tap(t), w2_ref[t],
                                preferred_element_type=jnp.float32)

    acc = acc_ref[...]
    y2_ref[0] = acc.astype(y2_ref.dtype)                  # bf16 to HBM
    st2_ref[0, 0:1, :] = jnp.sum(acc, axis=0, keepdims=True)
    st2_ref[0, 1:2, :] = jnp.sum(acc * acc, axis=0, keepdims=True)

    if has_proj:
        sc = jnp.dot(xsc_ref[0].astype(jnp.bfloat16), ws_ref[...],
                     preferred_element_type=jnp.float32)                # (R, C)
        ysc_ref[0] = sc.astype(ysc_ref.dtype)             # bf16 to HBM
        stsc_ref[0, 0:1, :] = jnp.sum(sc, axis=0, keepdims=True)
        stsc_ref[0, 1:2, :] = jnp.sum(sc * sc, axis=0, keepdims=True)


def _bn2_add_relu_kernel(y2_ref, a2_ref, b2_ref, s_ref, as_ref, bs_ref, out_ref):
    main = y2_ref[0] * a2_ref[...] + b2_ref[...]          # promotes to f32
    sc = s_ref[0] * as_ref[...] + bs_ref[...]
    out_ref[0] = jnp.maximum(main + sc, 0.0)


# ------------------------------- host helpers --------------------------------
def _bytes(shape, dtype):
    return math.prod(shape) * jnp.dtype(dtype).itemsize


def _cparams(block_bytes, scratch_bytes=0):
    # double-buffered pipelined blocks + scratch + headroom; explicit limit so
    # realistic shapes aren't rejected at the default scoped-VMEM size, capped
    # at 64 MiB so the budget also holds on v7x.
    need = 2 * block_bytes + scratch_bytes + (8 << 20)
    limit = int(min(max(need, 32 << 20), 64 << 20))
    return pltpu.CompilerParams(dimension_semantics=("parallel",),
                                vmem_limit_bytes=limit)


def _bn_affine(s, ss, count, gamma, beta):
    # training-mode BN (biased variance) folded into y = x*scale + shift
    mean = s / count
    var = ss / count - mean * mean
    inv = lax.rsqrt(var + EPS)
    scale = (gamma * inv).astype(jnp.float32).reshape(1, -1)
    shift = (beta - mean * gamma * inv).astype(jnp.float32).reshape(1, -1)
    return scale, shift


def basic_block_forward(x_nchw, params, stride=1):
    """Pallas forward pass. x_nchw: (N, Cin, H, W) f32 -> (N, C, Hout, Wout)."""
    x = jnp.transpose(x_nchw, (0, 2, 3, 1)).astype(jnp.float32)   # NCHW -> NHWC
    N, H, W, Cin = x.shape
    C = params["w1"].shape[0]
    Hout = (H + 2 - 3) // stride + 1
    Wout = (W + 2 - 3) // stride + 1
    Hp, Wp = H + 2, W + 2
    R = Hout * Wout
    Rtot = N * R
    has_proj = (stride != 1) or (Cin != C)

    xpad = jnp.pad(x, ((0, 0), (1, 1), (1, 1), (0, 0)))
    # OIHW -> (kh*kw, Cin, Cout), bf16 for the MXU
    w1 = jnp.transpose(params["w1"], (2, 3, 1, 0)).reshape(9, Cin, C).astype(jnp.bfloat16)
    w2 = jnp.transpose(params["w2"], (2, 3, 1, 0)).reshape(9, C, C).astype(jnp.bfloat16)

    # shortcut source, spatially subsampled in the wrapper (stride hoisted out),
    # presented as a 2-D-per-image (rows, Cin) slab; bf16 (MXU operand / add-in).
    x_sc = (x[:, ::stride, ::stride, :][:, :Hout, :Wout, :]
            .reshape(N, R, Cin).astype(jnp.bfloat16))

    # ------------------ pass 1: conv1 + partial BN1 stats --------------------
    blk1 = (_bytes((1, Hp, Wp, Cin), jnp.float32)
            + _bytes((9, Cin, C), jnp.bfloat16)
            + _bytes((1, R, C), jnp.bfloat16)
            + _bytes((1, 2, C), jnp.float32))
    y1, st1 = pl.pallas_call(
        functools.partial(_conv1_kernel, stride=stride, Hout=Hout, Wout=Wout),
        grid=(N,),
        in_specs=[pl.BlockSpec((1, Hp, Wp, Cin), lambda n: (n, 0, 0, 0)),
                  pl.BlockSpec((9, Cin, C), lambda n: (0, 0, 0))],
        out_specs=[pl.BlockSpec((1, R, C), lambda n: (n, 0, 0)),
                   pl.BlockSpec((1, 2, C), lambda n: (n, 0, 0))],
        out_shape=[jax.ShapeDtypeStruct((N, R, C), jnp.bfloat16),
                   jax.ShapeDtypeStruct((N, 2, C), jnp.float32)],
        scratch_shapes=[pltpu.VMEM((R, C), jnp.float32)],
        compiler_params=_cparams(blk1, _bytes((R, C), jnp.float32)),
    )(xpad, w1)

    a1, b1 = _bn_affine(jnp.sum(st1[:, 0, :], 0), jnp.sum(st1[:, 1, :], 0),
                        Rtot, params["g1"], params["b1"])

    # --------- pass 2: BN1+ReLU -> conv2 (+ shortcut conv) + stats -----------
    in_arrays = [y1, a1, b1, w2]
    in_specs = [pl.BlockSpec((1, R, C), lambda n: (n, 0, 0)),
                pl.BlockSpec((1, C), lambda n: (0, 0)),
                pl.BlockSpec((1, C), lambda n: (0, 0)),
                pl.BlockSpec((9, C, C), lambda n: (0, 0, 0))]
    out_shape = [jax.ShapeDtypeStruct((N, R, C), jnp.bfloat16),
                 jax.ShapeDtypeStruct((N, 2, C), jnp.float32)]
    out_specs = [pl.BlockSpec((1, R, C), lambda n: (n, 0, 0)),
                 pl.BlockSpec((1, 2, C), lambda n: (n, 0, 0))]
    blk2 = (_bytes((1, R, C), jnp.bfloat16)            # y1 in
            + 2 * _bytes((1, C), jnp.float32)          # a1, b1
            + _bytes((9, C, C), jnp.bfloat16)          # w2
            + _bytes((1, R, C), jnp.bfloat16)          # y2 out
            + _bytes((1, 2, C), jnp.float32))          # st2 out
    if has_proj:
        ws = jnp.transpose(params["ws"], (2, 3, 1, 0)).reshape(Cin, C).astype(jnp.bfloat16)
        in_arrays += [x_sc, ws]
        in_specs += [pl.BlockSpec((1, R, Cin), lambda n: (n, 0, 0)),
                     pl.BlockSpec((Cin, C), lambda n: (0, 0))]
        out_shape += [jax.ShapeDtypeStruct((N, R, C), jnp.bfloat16),
                      jax.ShapeDtypeStruct((N, 2, C), jnp.float32)]
        out_specs += [pl.BlockSpec((1, R, C), lambda n: (n, 0, 0)),
                      pl.BlockSpec((1, 2, C), lambda n: (n, 0, 0))]
        blk2 += (_bytes((1, R, Cin), jnp.bfloat16) + _bytes((Cin, C), jnp.bfloat16)
                 + _bytes((1, R, C), jnp.bfloat16) + _bytes((1, 2, C), jnp.float32))

    scratch2 = [pltpu.VMEM((Hout + 2, Wout + 2, C), jnp.float32),
                pltpu.VMEM((R, C), jnp.float32)]
    scratch2_bytes = (_bytes((Hout + 2, Wout + 2, C), jnp.float32)
                      + _bytes((R, C), jnp.float32))

    outs2 = pl.pallas_call(
        functools.partial(_bn1_conv2_kernel, Hout=Hout, Wout=Wout,
                          has_proj=has_proj),
        grid=(N,),
        in_specs=in_specs,
        out_specs=out_specs,
        out_shape=out_shape,
        scratch_shapes=scratch2,
        compiler_params=_cparams(blk2, scratch2_bytes),
    )(*in_arrays)

    if has_proj:
        y2, st2, ysc, stsc = outs2
    else:
        y2, st2 = outs2

    a2, b2 = _bn_affine(jnp.sum(st2[:, 0, :], 0), jnp.sum(st2[:, 1, :], 0),
                        Rtot, params["g2"], params["b2"])
    if has_proj:
        a_s, b_s = _bn_affine(jnp.sum(stsc[:, 0, :], 0), jnp.sum(stsc[:, 1, :], 0),
                              Rtot, params["gs"], params["bs"])
        s_src = ysc
    else:
        a_s = jnp.ones((1, C), jnp.float32)
        b_s = jnp.zeros((1, C), jnp.float32)
        s_src = x_sc                     # identity (Cin == C, stride == 1)

    # ------------------ pass 3: BN2 + BN_sc + add + ReLU ---------------------
    blk3 = (2 * _bytes((1, R, C), jnp.bfloat16)        # y2, shortcut in
            + _bytes((1, R, C), jnp.float32)           # out
            + 4 * _bytes((1, C), jnp.float32))
    out2d = pl.pallas_call(
        _bn2_add_relu_kernel,
        grid=(N,),
        in_specs=[pl.BlockSpec((1, R, C), lambda n: (n, 0, 0)),
                  pl.BlockSpec((1, C), lambda n: (0, 0)),
                  pl.BlockSpec((1, C), lambda n: (0, 0)),
                  pl.BlockSpec((1, R, C), lambda n: (n, 0, 0)),
                  pl.BlockSpec((1, C), lambda n: (0, 0)),
                  pl.BlockSpec((1, C), lambda n: (0, 0))],
        out_specs=pl.BlockSpec((1, R, C), lambda n: (n, 0, 0)),
        out_shape=jax.ShapeDtypeStruct((N, R, C), jnp.float32),
        compiler_params=_cparams(blk3),
    )(y2, a2, b2, s_src, a_s, b_s)

    out_nhwc = out2d.reshape(N, Hout, Wout, C)
    return jnp.transpose(out_nhwc, (0, 3, 1, 2))          # NHWC -> NCHW


# ---------------------------- pure-JAX reference -----------------------------
def basic_block_reference(x, params, stride=1):
    def conv(x, w, s, p):
        return lax.conv_general_dilated(
            x, w, (s, s), [(p, p), (p, p)],
            dimension_numbers=("NCHW", "OIHW", "NCHW"))

    def bn(x, g, b):
        mean = jnp.mean(x, axis=(0, 2, 3), keepdims=True)
        var = jnp.mean((x - mean) ** 2, axis=(0, 2, 3), keepdims=True)
        return (x - mean) * lax.rsqrt(var + EPS) * g.reshape(1, -1, 1, 1) \
               + b.reshape(1, -1, 1, 1)

    out = jax.nn.relu(bn(conv(x, params["w1"], stride, 1), params["g1"], params["b1"]))
    out = bn(conv(out, params["w2"], 1, 1), params["g2"], params["b2"])
    if "ws" in params:
        sc = bn(conv(x, params["ws"], stride, 0), params["gs"], params["bs"])
    else:
        sc = x
    return jax.nn.relu(out + sc)


def init_params(key, in_planes, planes, stride):
    k1, k2, k3 = jax.random.split(key, 3)
    std1 = (2.0 / (in_planes * 9)) ** 0.5
    std2 = (2.0 / (planes * 9)) ** 0.5
    params = {
        "w1": std1 * jax.random.normal(k1, (planes, in_planes, 3, 3), jnp.float32),
        "g1": jnp.ones((planes,), jnp.float32),
        "b1": jnp.zeros((planes,), jnp.float32),
        "w2": std2 * jax.random.normal(k2, (planes, planes, 3, 3), jnp.float32),
        "g2": jnp.ones((planes,), jnp.float32),
        "b2": jnp.zeros((planes,), jnp.float32),
    }
    if stride != 1 or in_planes != planes:
        stds = (2.0 / in_planes) ** 0.5
        params["ws"] = stds * jax.random.normal(k3, (planes, in_planes, 1, 1), jnp.float32)
        params["gs"] = jnp.ones((planes,), jnp.float32)
        params["bs"] = jnp.zeros((planes,), jnp.float32)
    return params


if __name__ == "__main__":
    key = jax.random.PRNGKey(0)
    kx, kp = jax.random.split(key)

    N, in_planes, planes, H, W, stride = 2, 4, 8, 16, 16, 1
    x = jax.random.normal(kx, (N, in_planes, H, W), jnp.float32)
    params = init_params(kp, in_planes, planes, stride)

    out = jax.block_until_ready(basic_block_forward(x, params, stride=stride))
    ref = jax.block_until_ready(basic_block_reference(x, params, stride=stride))

    assert out.shape == ref.shape, (out.shape, ref.shape)
    # tolerance loosened vs. pure-f32: MXU operands and inter-pass intermediates
    # are bf16 (BN stats and accumulation stay f32)
    max_err = float(jnp.max(jnp.abs(out - ref)))
    assert jnp.allclose(out, ref, atol=1e-1, rtol=5e-2), max_err
    print("KERNEL_OK")
</pallas_src>

<mosaic_0001>
module attributes {stable_mosaic.version = 11 : i64} {
  func.func @_conv1_kernel(%arg0: i32, %arg1: memref<1x18x18x4xf32, #tpu.memory_space<vmem>>, %arg2: memref<9x4x8xbf16, #tpu.memory_space<vmem>>, %arg3: memref<1x256x8xbf16, #tpu.memory_space<vmem>>, %arg4: memref<1x2x8xf32, #tpu.memory_space<vmem>>, %arg5: memref<256x8xf32, #tpu.memory_space<vmem>>) attributes {dimension_semantics = [#tpu.dimension_semantics<parallel>], iteration_bounds = array<i64: 2>, scalar_prefetch = 0 : i64, scratch_operands = 1 : i64, tpu.core_type = #tpu.core_type<tc>, window_params = [{transform_indices = @transform_0, window_bounds = array<i64: 1, 18, 18, 4>}, {pipeline_mode = #tpu.pipeline_mode<synchronous>, transform_indices = @transform_1, window_bounds = array<i64: 9, 4, 8>}, {transform_indices = @transform_2, window_bounds = array<i64: 1, 256, 8>}, {transform_indices = @transform_3, window_bounds = array<i64: 1, 2, 8>}]} {
    %c0 = arith.constant 0 : index
    %c0_0 = arith.constant 0 : index
    %c0_1 = arith.constant 0 : index
    %c0_2 = arith.constant 0 : index
    %0 = vector.load %arg1[%c0, %c0_0, %c0_1, %c0_2] : memref<1x18x18x4xf32, #tpu.memory_space<vmem>>, vector<1x18x18x4xf32>
    %1 = vector.shape_cast %0 : vector<1x18x18x4xf32> to vector<18x18x4xf32>
    %2 = vector.extract_strided_slice %1 {offsets = [0, 0, 0], sizes = [16, 16, 4], strides = [1, 1, 1]} : vector<18x18x4xf32> to vector<16x16x4xf32>
    %3 = vector.shape_cast %2 : vector<16x16x4xf32> to vector<256x4xf32>
    %4 = arith.truncf %3 : vector<256x4xf32> to vector<256x4xbf16>
    %c0_3 = arith.constant 0 : index
    %c0_4 = arith.constant 0 : index
    %c0_5 = arith.constant 0 : index
    %5 = vector.load %arg2[%c0_3, %c0_4, %c0_5] : memref<9x4x8xbf16, #tpu.memory_space<vmem>>, vector<1x4x8xbf16>
    %6 = vector.shape_cast %5 : vector<1x4x8xbf16> to vector<4x8xbf16>
    %cst = arith.constant dense<0.000000e+00> : vector<256x8xf32>
    %7 = tpu.matmul %4, %6, %cst {dimension_numbers = #tpu.dot_dimension_numbers<[1], [0], [0], [1], [0, 0, 1, 1], [], []>} : vector<256x4xbf16>, vector<4x8xbf16>, vector<256x8xf32> -> vector<256x8xf32>
    %c0_6 = arith.constant 0 : index
    %c0_7 = arith.constant 0 : index
    %8 = vector.load %arg5[%c0_6, %c0_7] : memref<256x8xf32, #tpu.memory_space<vmem>>, vector<256x8xf32>
    tpu.vector_store %arg5[%c0_6, %c0_7], %7 {strides = array<i32>} : memref<256x8xf32, #tpu.memory_space<vmem>>, vector<256x8xf32>,
    %c0_8 = arith.constant 0 : index
    %c0_9 = arith.constant 0 : index
    %9 = vector.load %arg5[%c0_8, %c0_9] : memref<256x8xf32, #tpu.memory_space<vmem>>, vector<256x8xf32>
    %10 = vector.extract_strided_slice %1 {offsets = [0, 1, 0], sizes = [16, 16, 4], strides = [1, 1, 1]} : vector<18x18x4xf32> to vector<16x16x4xf32>
    %11 = vector.shape_cast %10 : vector<16x16x4xf32> to vector<256x4xf32>
    %12 = arith.truncf %11 : vector<256x4xf32> to vector<256x4xbf16>
    %c1 = arith.constant 1 : index
    %c0_10 = arith.constant 0 : index
    %c0_11 = arith.constant 0 : index
    %13 = vector.load %arg2[%c1, %c0_10, %c0_11] : memref<9x4x8xbf16, #tpu.memory_space<vmem>>, vector<1x4x8xbf16>
    %14 = vector.shape_cast %13 : vector<1x4x8xbf16> to vector<4x8xbf16>
    %cst_12 = arith.constant dense<0.000000e+00> : vector<256x8xf32>
    %15 = tpu.matmul %12, %14, %cst_12 {dimension_numbers = #tpu.dot_dimension_numbers<[1], [0], [0], [1], [0, 0, 1, 1], [], []>} : vector<256x4xbf16>, vector<4x8xbf16>, vector<256x8xf32> -> vector<256x8xf32>
    %16 = arith.addf %9, %15 : vector<256x8xf32>
    %c0_13 = arith.constant 0 : index
    %c0_14 = arith.constant 0 : index
    %17 = vector.load %arg5[%c0_13, %c0_14] : memref<256x8xf32, #tpu.memory_space<vmem>>, vector<256x8xf32>
    tpu.vector_store %arg5[%c0_13, %c0_14], %16 {strides = array<i32>} : memref<256x8xf32, #tpu.memory_space<vmem>>, vector<256x8xf32>,
    %c0_15 = arith.constant 0 : index
    %c0_16 = arith.constant 0 : index
    %18 = vector.load %arg5[%c0_15, %c0_16] : memref<256x8xf32, #tpu.memory_space<vmem>>, vector<256x8xf32>
    %19 = vector.extract_strided_slice %1 {offsets = [0, 2, 0], sizes = [16, 16, 4], strides = [1, 1, 1]} : vector<18x18x4xf32> to vector<16x16x4xf32>
    %20 = vector.shape_cast %19 : vector<16x16x4xf32> to vector<256x4xf32>
    %21 = arith.truncf %20 : vector<256x4xf32> to vector<256x4xbf16>
    %c2 = arith.constant 2 : index
    %c0_17 = arith.constant 0 : index
    %c0_18 = arith.constant 0 : index
    %22 = vector.load %arg2[%c2, %c0_17, %c0_18] : memref<9x4x8xbf16, #tpu.memory_space<vmem>>, vector<1x4x8xbf16>
    %23 = vector.shape_cast %22 : vector<1x4x8xbf16> to vector<4x8xbf16>
    %cst_19 = arith.constant dense<0.000000e+00> : vector<256x8xf32>
    %24 = tpu.matmul %21, %23, %cst_19 {dimension_numbers = #tpu.dot_dimension_numbers<[1], [0], [0], [1], [0, 0, 1, 1], [], []>} : vector<256x4xbf16>, vector<4x8xbf16>, vector<256x8xf32> -> vector<256x8xf32>
    %25 = arith.addf %18, %24 : vector<256x8xf32>
    %c0_20 = arith.constant 0 : index
    %c0_21 = arith.constant 0 : index
    %26 = vector.load %arg5[%c0_20, %c0_21] : memref<256x8xf32, #tpu.memory_space<vmem>>, vector<256x8xf32>
    tpu.vector_store %arg5[%c0_20, %c0_21], %25 {strides = array<i32>} : memref<256x8xf32, #tpu.memory_space<vmem>>, vector<256x8xf32>,
    %c0_22 = arith.constant 0 : index
    %c0_23 = arith.constant 0 : index
    %27 = vector.load %arg5[%c0_22, %c0_23] : memref<256x8xf32, #tpu.memory_space<vmem>>, vector<256x8xf32>
    %28 = vector.extract_strided_slice %1 {offsets = [1, 0, 0], sizes = [16, 16, 4], strides = [1, 1, 1]} : vector<18x18x4xf32> to vector<16x16x4xf32>
    %29 = vector.shape_cast %28 : vector<16x16x4xf32> to vector<256x4xf32>
    %30 = arith.truncf %29 : vector<256x4xf32> to vector<256x4xbf16>
    %c3 = arith.constant 3 : index
    %c0_24 = arith.constant 0 : index
    %c0_25 = arith.constant 0 : index
    %31 = vector.load %arg2[%c3, %c0_24, %c0_25] : memref<9x4x8xbf16, #tpu.memory_space<vmem>>, vector<1x4x8xbf16>
    %32 = vector.shape_cast %31 : vector<1x4x8xbf16> to vector<4x8xbf16>
    %cst_26 = arith.constant dense<0.000000e+00> : vector<256x8xf32>
    %33 = tpu.matmul %30, %32, %cst_26 {dimension_numbers = #tpu.dot_dimension_numbers<[1], [0], [0], [1], [0, 0, 1, 1], [], []>} : vector<256x4xbf16>, vector<4x8xbf16>, vector<256x8xf32> -> vector<256x8xf32>
    %34 = arith.addf %27, %33 : vector<256x8xf32>
    %c0_27 = arith.constant 0 : index
    %c0_28 = arith.constant 0 : index
    %35 = vector.load %arg5[%c0_27, %c0_28] : memref<256x8xf32, #tpu.memory_space<vmem>>, vector<256x8xf32>
    tpu.vector_store %arg5[%c0_27, %c0_28], %34 {strides = array<i32>} : memref<256x8xf32, #tpu.memory_space<vmem>>, vector<256x8xf32>,
    %c0_29 = arith.constant 0 : index
    %c0_30 = arith.constant 0 : index
    %36 = vector.load %arg5[%c0_29, %c0_30] : memref<256x8xf32, #tpu.memory_space<vmem>>, vector<256x8xf32>
    %37 = vector.extract_strided_slice %1 {offsets = [1, 1, 0], sizes = [16, 16, 4], strides = [1, 1, 1]} : vector<18x18x4xf32> to vector<16x16x4xf32>
    %38 = vector.shape_cast %37 : vector<16x16x4xf32> to vector<256x4xf32>
    %39 = arith.truncf %38 : vector<256x4xf32> to vector<256x4xbf16>
    %c4 = arith.constant 4 : index
    %c0_31 = arith.constant 0 : index
    %c0_32 = arith.constant 0 : index
    %40 = vector.load %arg2[%c4, %c0_31, %c0_32] : memref<9x4x8xbf16, #tpu.memory_space<vmem>>, vector<1x4x8xbf16>
    %41 = vector.shape_cast %40 : vector<1x4x8xbf16> to vector<4x8xbf16>
    %cst_33 = arith.constant dense<0.000000e+00> : vector<256x8xf32>
    %42 = tpu.matmul %39, %41, %cst_33 {dimension_numbers = #tpu.dot_dimension_numbers<[1], [0], [0], [1], [0, 0, 1, 1], [], []>} : vector<256x4xbf16>, vector<4x8xbf16>, vector<256x8xf32> -> vector<256x8xf32>
    %43 = arith.addf %36, %42 : vector<256x8xf32>
    %c0_34 = arith.constant 0 : index
    %c0_35 = arith.constant 0 : index
    %44 = vector.load %arg5[%c0_34, %c0_35] : memref<256x8xf32, #tpu.memory_space<vmem>>, vector<256x8xf32>
    tpu.vector_store %arg5[%c0_34, %c0_35], %43 {strides = array<i32>} : memref<256x8xf32, #tpu.memory_space<vmem>>, vector<256x8xf32>,
    %c0_36 = arith.constant 0 : index
    %c0_37 = arith.constant 0 : index
    %45 = vector.load %arg5[%c0_36, %c0_37] : memref<256x8xf32, #tpu.memory_space<vmem>>, vector<256x8xf32>
    %46 = vector.extract_strided_slice %1 {offsets = [1, 2, 0], sizes = [16, 16, 4], strides = [1, 1, 1]} : vector<18x18x4xf32> to vector<16x16x4xf32>
    %47 = vector.shape_cast %46 : vector<16x16x4xf32> to vector<256x4xf32>
    %48 = arith.truncf %47 : vector<256x4xf32> to vector<256x4xbf16>
    %c5 = arith.constant 5 : index
    %c0_38 = arith.constant 0 : index
    %c0_39 = arith.constant 0 : index
    %49 = vector.load %arg2[%c5, %c0_38, %c0_39] : memref<9x4x8xbf16, #tpu.memory_space<vmem>>, vector<1x4x8xbf16>
    %50 = vector.shape_cast %49 : vector<1x4x8xbf16> to vector<4x8xbf16>
    %cst_40 = arith.constant dense<0.000000e+00> : vector<256x8xf32>
    %51 = tpu.matmul %48, %50, %cst_40 {dimension_numbers = #tpu.dot_dimension_numbers<[1], [0], [0], [1], [0, 0, 1, 1], [], []>} : vector<256x4xbf16>, vector<4x8xbf16>, vector<256x8xf32> -> vector<256x8xf32>
    %52 = arith.addf %45, %51 : vector<256x8xf32>
    %c0_41 = arith.constant 0 : index
    %c0_42 = arith.constant 0 : index
    %53 = vector.load %arg5[%c0_41, %c0_42] : memref<256x8xf32, #tpu.memory_space<vmem>>, vector<256x8xf32>
    tpu.vector_store %arg5[%c0_41, %c0_42], %52 {strides = array<i32>} : memref<256x8xf32, #tpu.memory_space<vmem>>, vector<256x8xf32>,
    %c0_43 = arith.constant 0 : index
    %c0_44 = arith.constant 0 : index
    %54 = vector.load %arg5[%c0_43, %c0_44] : memref<256x8xf32, #tpu.memory_space<vmem>>, vector<256x8xf32>
    %55 = vector.extract_strided_slice %1 {offsets = [2, 0, 0], sizes = [16, 16, 4], strides = [1, 1, 1]} : vector<18x18x4xf32> to vector<16x16x4xf32>
    %56 = vector.shape_cast %55 : vector<16x16x4xf32> to vector<256x4xf32>
    %57 = arith.truncf %56 : vector<256x4xf32> to vector<256x4xbf16>
    %c6 = arith.constant 6 : index
    %c0_45 = arith.constant 0 : index
    %c0_46 = arith.constant 0 : index
    %58 = vector.load %arg2[%c6, %c0_45, %c0_46] : memref<9x4x8xbf16, #tpu.memory_space<vmem>>, vector<1x4x8xbf16>
    %59 = vector.shape_cast %58 : vector<1x4x8xbf16> to vector<4x8xbf16>
    %cst_47 = arith.constant dense<0.000000e+00> : vector<256x8xf32>
    %60 = tpu.matmul %57, %59, %cst_47 {dimension_numbers = #tpu.dot_dimension_numbers<[1], [0], [0], [1], [0, 0, 1, 1], [], []>} : vector<256x4xbf16>, vector<4x8xbf16>, vector<256x8xf32> -> vector<256x8xf32>
    %61 = arith.addf %54, %60 : vector<256x8xf32>
    %c0_48 = arith.constant 0 : index
    %c0_49 = arith.constant 0 : index
    %62 = vector.load %arg5[%c0_48, %c0_49] : memref<256x8xf32, #tpu.memory_space<vmem>>, vector<256x8xf32>
    tpu.vector_store %arg5[%c0_48, %c0_49], %61 {strides = array<i32>} : memref<256x8xf32, #tpu.memory_space<vmem>>, vector<256x8xf32>,
    %c0_50 = arith.constant 0 : index
    %c0_51 = arith.constant 0 : index
    %63 = vector.load %arg5[%c0_50, %c0_51] : memref<256x8xf32, #tpu.memory_space<vmem>>, vector<256x8xf32>
    %64 = vector.extract_strided_slice %1 {offsets = [2, 1, 0], sizes = [16, 16, 4], strides = [1, 1, 1]} : vector<18x18x4xf32> to vector<16x16x4xf32>
    %65 = vector.shape_cast %64 : vector<16x16x4xf32> to vector<256x4xf32>
    %66 = arith.truncf %65 : vector<256x4xf32> to vector<256x4xbf16>
    %c7 = arith.constant 7 : index
    %c0_52 = arith.constant 0 : index
    %c0_53 = arith.constant 0 : index
    %67 = vector.load %arg2[%c7, %c0_52, %c0_53] : memref<9x4x8xbf16, #tpu.memory_space<vmem>>, vector<1x4x8xbf16>
    %68 = vector.shape_cast %67 : vector<1x4x8xbf16> to vector<4x8xbf16>
    %cst_54 = arith.constant dense<0.000000e+00> : vector<256x8xf32>
    %69 = tpu.matmul %66, %68, %cst_54 {dimension_numbers = #tpu.dot_dimension_numbers<[1], [0], [0], [1], [0, 0, 1, 1], [], []>} : vector<256x4xbf16>, vector<4x8xbf16>, vector<256x8xf32> -> vector<256x8xf32>
    %70 = arith.addf %63, %69 : vector<256x8xf32>
    %c0_55 = arith.constant 0 : index
    %c0_56 = arith.constant 0 : index
    %71 = vector.load %arg5[%c0_55, %c0_56] : memref<256x8xf32, #tpu.memory_space<vmem>>, vector<256x8xf32>
    tpu.vector_store %arg5[%c0_55, %c0_56], %70 {strides = array<i32>} : memref<256x8xf32, #tpu.memory_space<vmem>>, vector<256x8xf32>,
    %c0_57 = arith.constant 0 : index
    %c0_58 = arith.constant 0 : index
    %72 = vector.load %arg5[%c0_57, %c0_58] : memref<256x8xf32, #tpu.memory_space<vmem>>, vector<256x8xf32>
    %73 = vector.extract_strided_slice %1 {offsets = [2, 2, 0], sizes = [16, 16, 4], strides = [1, 1, 1]} : vector<18x18x4xf32> to vector<16x16x4xf32>
    %74 = vector.shape_cast %73 : vector<16x16x4xf32> to vector<256x4xf32>
    %75 = arith.truncf %74 : vector<256x4xf32> to vector<256x4xbf16>
    %c8 = arith.constant 8 : index
    %c0_59 = arith.constant 0 : index
    %c0_60 = arith.constant 0 : index
    %76 = vector.load %arg2[%c8, %c0_59, %c0_60] : memref<9x4x8xbf16, #tpu.memory_space<vmem>>, vector<1x4x8xbf16>
    %77 = vector.shape_cast %76 : vector<1x4x8xbf16> to vector<4x8xbf16>
    %cst_61 = arith.constant dense<0.000000e+00> : vector<256x8xf32>
    %78 = tpu.matmul %75, %77, %cst_61 {dimension_numbers = #tpu.dot_dimension_numbers<[1], [0], [0], [1], [0, 0, 1, 1], [], []>} : vector<256x4xbf16>, vector<4x8xbf16>, vector<256x8xf32> -> vector<256x8xf32>
    %79 = arith.addf %72, %78 : vector<256x8xf32>
    %c0_62 = arith.constant 0 : index
    %c0_63 = arith.constant 0 : index
    %80 = vector.load %arg5[%c0_62, %c0_63] : memref<256x8xf32, #tpu.memory_space<vmem>>, vector<256x8xf32>
    tpu.vector_store %arg5[%c0_62, %c0_63], %79 {strides = array<i32>} : memref<256x8xf32, #tpu.memory_space<vmem>>, vector<256x8xf32>,
    %c0_64 = arith.constant 0 : index
    %c0_65 = arith.constant 0 : index
    %81 = vector.load %arg5[%c0_64, %c0_65] : memref<256x8xf32, #tpu.memory_space<vmem>>, vector<256x8xf32>
    %82 = arith.truncf %81 : vector<256x8xf32> to vector<256x8xbf16>
    %c0_66 = arith.constant 0 : index
    %c0_67 = arith.constant 0 : index
    %c0_68 = arith.constant 0 : index
    %83 = vector.load %arg3[%c0_66, %c0_67, %c0_68] : memref<1x256x8xbf16, #tpu.memory_space<vmem>>, vector<1x256x8xbf16>
    %84 = vector.shape_cast %83 : vector<1x256x8xbf16> to vector<256x8xbf16>
    %85 = vector.shape_cast %82 : vector<256x8xbf16> to vector<1x256x8xbf16>
    tpu.vector_store %arg3[%c0_66, %c0_67, %c0_68], %85 {strides = array<i32>} : memref<1x256x8xbf16, #tpu.memory_space<vmem>>, vector<1x256x8xbf16>,
    %cst_69 = arith.constant dense<0.000000e+00> : vector<8xf32>
    %86 = vector.multi_reduction <add>, %81, %cst_69 [0] : vector<256x8xf32> to vector<8xf32>
    %87 = vector.shape_cast %86 : vector<8xf32> to vector<1x8xf32>
    %c0_70 = arith.constant 0 : index
    %c0_71 = arith.constant 0 : index
    %c0_72 = arith.constant 0 : index
    %88 = vector.load %arg4[%c0_70, %c0_71, %c0_72] : memref<1x2x8xf32, #tpu.memory_space<vmem>>, vector<1x1x8xf32>
    %89 = vector.shape_cast %88 : vector<1x1x8xf32> to vector<1x8xf32>
    %90 = vector.shape_cast %87 : vector<1x8xf32> to vector<1x1x8xf32>
    tpu.vector_store %arg4[%c0_70, %c0_71, %c0_72], %90 {strides = array<i32>} : memref<1x2x8xf32, #tpu.memory_space<vmem>>, vector<1x1x8xf32>,
    %91 = arith.mulf %81, %81 : vector<256x8xf32>
    %cst_73 = arith.constant dense<0.000000e+00> : vector<8xf32>
    %92 = vector.multi_reduction <add>, %91, %cst_73 [0] : vector<256x8xf32> to vector<8xf32>
    %93 = vector.shape_cast %92 : vector<8xf32> to vector<1x8xf32>
    %c0_74 = arith.constant 0 : index
    %c1_75 = arith.constant 1 : index
    %c0_76 = arith.constant 0 : index
    %94 = vector.load %arg4[%c0_74, %c1_75, %c0_76] : memref<1x2x8xf32, #tpu.memory_space<vmem>>, vector<1x1x8xf32>
    %95 = vector.shape_cast %94 : vector<1x1x8xf32> to vector<1x8xf32>
    %96 = vector.shape_cast %93 : vector<1x8xf32> to vector<1x1x8xf32>
    tpu.vector_store %arg4[%c0_74, %c1_75, %c0_76], %96 {strides = array<i32>} : memref<1x2x8xf32, #tpu.memory_space<vmem>>, vector<1x1x8xf32>,
    return
  }
  func.func @transform_0(%arg0: i32) -> (i32, i32, i32, i32) {
    %c0_i32 = arith.constant 0 : i32
    %c0_i32_0 = arith.constant 0 : i32
    %c0_i32_1 = arith.constant 0 : i32
    %c0_i32_2 = arith.constant 0 : i32
    return %arg0, %c0_i32, %c0_i32_0, %c0_i32_1 : i32, i32, i32, i32
  }
  func.func @transform_1(%arg0: i32) -> (i32, i32, i32) {
    %c0_i32 = arith.constant 0 : i32
    %c0_i32_0 = arith.constant 0 : i32
    %c0_i32_1 = arith.constant 0 : i32
    %c0_i32_2 = arith.constant 0 : i32
    return %c0_i32, %c0_i32_0, %c0_i32_1 : i32, i32, i32
  }
  func.func @transform_2(%arg0: i32) -> (i32, i32, i32) {
    %c0_i32 = arith.constant 0 : i32
    %c0_i32_0 = arith.constant 0 : i32
    %c0_i32_1 = arith.constant 0 : i32
    return %arg0, %c0_i32, %c0_i32_0 : i32, i32, i32
  }
  func.func @transform_3(%arg0: i32) -> (i32, i32, i32) {
    %c0_i32 = arith.constant 0 : i32
    %c0_i32_0 = arith.constant 0 : i32
    %c0_i32_1 = arith.constant 0 : i32
    return %arg0, %c0_i32, %c0_i32_0 : i32, i32, i32
  }
}

</mosaic_0001>

<llo_original>
// kernel: tpu_custom_call.1
$region0: #{tpu_custom_call.1}
  #allocation0 [shape = 'u32[]', space=smem, size = 0x4, offset = 0x4, fixed_abs, tag = 'smem constant byte address 0x4 - core index']
  #allocation1 [shape = 'u32[144,128]{1,0:T(1,128)}', space=vmem, size = 0x12000, scoped, tag = 'internal scratch']
  #allocation2 [shape = 'f32[256,8]{1,0:T(8,128)}', space=vmem, size = 0x20000, scoped, tag = 'scratch operand']
  %s0 = inlined_call_operand.vmem [shape: f32[2,18,18,4], index: 0, kind: input, shape index: {}]
  %s1 = inlined_call_operand.vmem [shape: bf16[9,4,8], index: 1, kind: input, shape index: {}]
  %s2 = inlined_call_operand.vmem [shape: bf16[2,256,8], index: 2, kind: output, shape index: {0}]
  %s3 = inlined_call_operand.hbm [shape: f32[2,2,8], index: 3, kind: output, shape index: {1}]
  %4 = xla_tuple %s2, %s3
  %s5 = sld [smem:[#allocation0]]
  $region49: #{tpu_custom_call.1} parent=0
    _
  %s7 = ssub.s32 1, %s5
  %s8 = scalar_select 0, %s7, %s5
  $region1: #{tpu_custom_call.1} parent=0
    #allocation3 [shape = 'u8[2048]{0}', space=vmem, size = 0x800, scoped, tag = 'output window, operand 1']
    #allocation4 [shape = 's32[2]{0}', space=sflag, size = 0x8, scoped, tag = 'scoped memory for tpu_custom_call.1']
    %9 = vsyncpa [#allocation4], 0
    %s10 = scalar_lea.sflag [#allocation4], 1
    %11 = vsyncpa %s10, 0
    loop: start=0, step=1, limit=4
    $region2: #{tpu_custom_call.1} parent=1 // loop_pre_header
      _
    $region3: #{tpu_custom_call.1} parent=1 // loop_header
      %s13 = sphi 0, %s17
      %p14 = scmp.ge.s32.totalorder %s13, 4
      %s23 = sphi 0, %s25
      %s26 = sphi 0, %s23
      %s27 = sphi 0, %s26
      %s43 = sphi 0, %s27
      %s47 = sphi 0, %s47
      %s49 = sphi 0, %s47
      %s50 = sphi 0, %s49
      %s64 = sphi 0, %s50
      %s70 = sphi 0, %s72
      %s73 = sphi 0, %s70
      %s74 = sphi 0, %s73
      %s90 = sphi 0, %s74
      %s96 = sphi 0, %s98
      %s99 = sphi 0, %s96
      %s100 = sphi 0, %s99
      %s116 = sphi 0, %s100
    $region4: #{tpu_custom_call.1} parent=1 // loop_header_branch
      %16 = sbr.rel (%p14) target = $region8
    $region5: #{tpu_custom_call.1} parent=1 // loop_body
      %s18 = ssub.s32 %s13, 1
      %s19 = ssub.s32 %s13, 2
      %s20 = sadd.s32 %s13, 1
      %s21 = ssub.s32 %s13, %s20
      %p22 = scmp.eq.s32.totalorder %s21, 0
      %s24 = sadd.s32 %s23, 1
      %s25 = scalar_select %p22, %s23, %s24
      %p28 = pneg %p22
      %p29 = scmp.eq.s32.totalorder %s13, 1
      %p30 = por %p28, %p29
      %p31 = scmp.ne.s32.totalorder %s23, %s26
      %p32 = scmp.eq.s32.totalorder %s13, 0
      %p33 = por %p31, %p32
      %p34 = scmp.ne.s32.totalorder %s23, %s26
      %p35 = scmp.eq.s32.totalorder %s18, 1
      %p36 = por %p34, %p35
      %p37 = scmp.ne.s32.totalorder %s26, %s27
      %p38 = scmp.eq.s32.totalorder %s18, 0
      %p39 = por %p37, %p38
      %p40 = scmp.ne.s32.totalorder %s26, %s27
      %p41 = scmp.eq.s32.totalorder %s19, 1
      %p42 = por %p40, %p41
      %p44 = scmp.ne.s32.totalorder %s27, %s43
      %p45 = scmp.eq.s32.totalorder %s19, 0
      %p46 = por %p44, %p45
      %s48 = sadd.s32 %s47, 1
      %p51 = scmp.eq.s32.totalorder %s13, 1
      %p52 = scmp.ne.s32.totalorder %s47, %s49
      %p53 = scmp.eq.s32.totalorder %s13, 0
      %p54 = por %p52, %p53
      %p55 = scmp.ne.s32.totalorder %s47, %s49
      %p56 = scmp.eq.s32.totalorder %s18, 1
      %p57 = por %p55, %p56
      %p58 = scmp.ne.s32.totalorder %s49, %s50
      %p59 = scmp.eq.s32.totalorder %s18, 0
      %p60 = por %p58, %p59
      %p61 = scmp.ne.s32.totalorder %s49, %s50
      %p62 = scmp.eq.s32.totalorder %s19, 1
      %p63 = por %p61, %p62
      %p65 = scmp.ne.s32.totalorder %s50, %s64
      %p66 = scmp.eq.s32.totalorder %s19, 0
      %p67 = por %p65, %p66
      %s68 = ssub.s32 %s13, %s20
      %p69 = scmp.eq.s32.totalorder %s68, 0
      %s71 = sadd.s32 %s70, 1
      %s72 = scalar_select %p69, %s70, %s71
      %p75 = pneg %p69
      %p76 = scmp.eq.s32.totalorder %s13, 1
      %p77 = por %p75, %p76
      %p78 = scmp.ne.s32.totalorder %s70, %s73
      %p79 = scmp.eq.s32.totalorder %s13, 0
      %p80 = por %p78, %p79
      %p81 = scmp.ne.s32.totalorder %s70, %s73
      %p82 = scmp.eq.s32.totalorder %s18, 1
      %p83 = por %p81, %p82
      %p84 = scmp.ne.s32.totalorder %s73, %s74
      %p85 = scmp.eq.s32.totalorder %s18, 0
      %p86 = por %p84, %p85
      %p87 = scmp.ne.s32.totalorder %s73, %s74
      %p88 = scmp.eq.s32.totalorder %s19, 1
      %p89 = por %p87, %p88
      %p91 = scmp.ne.s32.totalorder %s74, %s90
      %p92 = scmp.eq.s32.totalorder %s19, 0
      %p93 = por %p91, %p92
      %s94 = ssub.s32 %s13, %s20
      %p95 = scmp.eq.s32.totalorder %s94, 0
      %s97 = sadd.s32 %s96, 1
      %s98 = scalar_select %p95, %s96, %s97
      %p101 = pneg %p95
      %p102 = scmp.eq.s32.totalorder %s13, 1
      %p103 = por %p101, %p102
      %p104 = scmp.ne.s32.totalorder %s96, %s99
      %p105 = scmp.eq.s32.totalorder %s13, 0
      %p106 = por %p104, %p105
      %p107 = scmp.ne.s32.totalorder %s96, %s99
      %p108 = scmp.eq.s32.totalorder %s18, 1
      %p109 = por %p107, %p108
      %p110 = scmp.ne.s32.totalorder %s99, %s100
      %p111 = scmp.eq.s32.totalorder %s18, 0
      %p112 = por %p110, %p111
      %p113 = scmp.ne.s32.totalorder %s99, %s100
      %p114 = scmp.eq.s32.totalorder %s19, 1
      %p115 = por %p113, %p114
      %p117 = scmp.ne.s32.totalorder %s100, %s116
      %p118 = scmp.eq.s32.totalorder %s19, 0
      %p119 = por %p117, %p118
      %p120 = scmp.le.s32.totalorder 1, %s13
      %p121 = scmp.lt.s32.totalorder %s13, 3
      %p122 = pnand %p120, %p121
      %p123 = pneg %p122
      // Predicated region
      $region9: #{tpu_custom_call.1} parent=5 // pred_check
        _
      $region10: #{tpu_custom_call.1} parent=5 // pred_check_branch
        %125 = sbr.rel (%p122) target = $region12
      $region11: #{tpu_custom_call.1} parent=5 // pred_region
        %s126 = ssub.s32 %s13, 1
        // Predicated region
        $region13: #{tpu_custom_call.1} parent=11 // pred_check
          %p127 = pneg %p60
        $region14: #{tpu_custom_call.1} parent=11 // pred_check_branch
          %129 = sbr.rel (%p127) target = $region16
        $region15: #{tpu_custom_call.1} parent=11 // pred_region
          _
        $region16: #{tpu_custom_call.1} parent=11 // pred_fallthru
          _
      $region12: #{tpu_custom_call.1} parent=5 // pred_fallthru
        _
      %p130 = scmp.lt.s32.totalorder %s13, 2
      // Predicated region
      $region17: #{tpu_custom_call.1} parent=5 // pred_check
        %p131 = pneg %p130
      $region18: #{tpu_custom_call.1} parent=5 // pred_check_branch
        %133 = sbr.rel (%p131) target = $region20
      $region19: #{tpu_custom_call.1} parent=5 // pred_region
        // Predicated region
        $region21: #{tpu_custom_call.1} parent=19 // pred_check
          %p134 = pneg %p33
        $region22: #{tpu_custom_call.1} parent=19 // pred_check_branch
          %136 = sbr.rel (%p134) target = $region24
        $region23: #{tpu_custom_call.1} parent=19 // pred_region
          %p137 = scmp.lt.s32.totalorder %s13, 1
          %s138 = scalar_select %p137, %s13, 1
          %s139 = smul.addr %s138, 54
          %s140 = smul.addr %s139, 8
          %s141 = scalar_lea.vmem %s0, %s140
        $region24: #{tpu_custom_call.1} parent=19 // pred_fallthru
          _
      $region20: #{tpu_custom_call.1} parent=5 // pred_fallthru
        _
      %p142 = scmp.le.s32.totalorder 1, %s13
      %p143 = scmp.lt.s32.totalorder %s13, 3
      %p144 = pnand %p142, %p143
      %p145 = pneg %p144
      // Predicated region
      $region25: #{tpu_custom_call.1} parent=5 // pred_check
        _
      $region26: #{tpu_custom_call.1} parent=5 // pred_check_branch
        %147 = sbr.rel (%p144) target = $region28
      $region27: #{tpu_custom_call.1} parent=5 // pred_region
        %s148 = ssub.s32 %s13, 1
        %p149 = scmp.lt.s32.totalorder %s18, 1
        %s150 = scalar_select %p149, %s18, 1
        %s151 = smul.addr %s150, 54
        %s152 = smul.addr %s151, 8
        %s153 = scalar_lea.vmem %s0, %s152
        %p154 = pneg %p39
        %p155 = pneg %p36
        %p156 = pneg %p60
        %p157 = pneg %p57
        %p158 = pneg %p86
        %p159 = pneg %p83
        %p160 = scmp.lt.s32.totalorder %s18, 1
        %s161 = scalar_select %p160, %s18, 1
        %s162 = smul.addr %s161, 32
        %s163 = smul.addr %s162, 4
        %s164 = scalar_lea.vmem %s2, %s163
        %p165 = pneg %p112
        %p166 = pneg %p109
        %s167 = sand.u32 %s99, 1
        %s168 = scalar_lea.sflag [#allocation4], %s167
        %s169 = sand.u32 %s99, 1
        %s170 = smul.addr %s169, 2
        %s171 = scalar_lea.vmem [#allocation3], %s170
        %p172 = scmp.lt.s32.totalorder %s18, 1
        %s173 = scalar_select %p172, %s18, 1
        %s174 = smul.addr %s173, 54
        %s175 = smul.addr %s174, 8
        %s176 = scalar_lea.vmem %s0, %s175
        %p177 = scmp.lt.s32.totalorder %s18, 1
        %s178 = scalar_select %p177, %s18, 1
        %s179 = smul.addr %s178, 32
        %s180 = smul.addr %s179, 4
        %s181 = scalar_lea.vmem %s2, %s180
        %v183 = vld [vmem:[%s176] sm:$0xff]
        %v184 = vld [vmem:[%s176 + $0x8] sm:$0xff]
        %v185 = vld [vmem:[%s176 + $0x10] sm:$0x3]
        %v186 = vld [vmem:[%s176 + $0x18] sm:$0xff]
        %v187 = vld [vmem:[%s176 + $0x20] sm:$0xff]
        %v188 = vld [vmem:[%s176 + $0x28] sm:$0x3]
        %v189 = vld [vmem:[%s176 + $0x30] sm:$0xff]
        %v190 = vld [vmem:[%s176 + $0x38] sm:$0xff]
        %v191 = vld [vmem:[%s176 + $0x40] sm:$0x3]
        %v192 = vld [vmem:[%s176 + $0x48] sm:$0xff]
        %v193 = vld [vmem:[%s176 + $0x50] sm:$0xff]
        %v194 = vld [vmem:[%s176 + $0x58] sm:$0x3]
        %v195 = vld [vmem:[%s176 + $0x60] sm:$0xff]
        %v196 = vld [vmem:[%s176 + $0x68] sm:$0xff]
        %v197 = vld [vmem:[%s176 + $0x70] sm:$0x3]
        %v198 = vld [vmem:[%s176 + $0x78] sm:$0xff]
        %v199 = vld [vmem:[%s176 + $0x80] sm:$0xff]
        %v200 = vld [vmem:[%s176 + $0x88] sm:$0x3]
        %v201 = vld [vmem:[%s176 + $0x90] sm:$0xff]
        %v202 = vld [vmem:[%s176 + $0x98] sm:$0xff]
        %v203 = vld [vmem:[%s176 + $0xa0] sm:$0x3]
        %v204 = vld [vmem:[%s176 + $0xa8] sm:$0xff]
        %v205 = vld [vmem:[%s176 + $0xb0] sm:$0xff]
        %v206 = vld [vmem:[%s176 + $0xb8] sm:$0x3]
        %v207 = vld [vmem:[%s176 + $0xc0] sm:$0xff]
        %v208 = vld [vmem:[%s176 + $0xc8] sm:$0xff]
        %v209 = vld [vmem:[%s176 + $0xd0] sm:$0x3]
        %v210 = vld [vmem:[%s176 + $0xd8] sm:$0xff]
        %v211 = vld [vmem:[%s176 + $0xe0] sm:$0xff]
        %v212 = vld [vmem:[%s176 + $0xe8] sm:$0x3]
        %v213 = vld [vmem:[%s176 + $0xf0] sm:$0xff]
        %v214 = vld [vmem:[%s176 + $0xf8] sm:$0xff]
        %v215 = vld [vmem:[%s176 + $0x100] sm:$0x3]
        %v216 = vld [vmem:[%s176 + $0x108] sm:$0xff]
        %v217 = vld [vmem:[%s176 + $0x110] sm:$0xff]
        %v218 = vld [vmem:[%s176 + $0x118] sm:$0x3]
        %v219 = vld [vmem:[%s176 + $0x120] sm:$0xff]
        %v220 = vld [vmem:[%s176 + $0x128] sm:$0xff]
        %v221 = vld [vmem:[%s176 + $0x130] sm:$0x3]
        %v222 = vld [vmem:[%s176 + $0x138] sm:$0xff]
        %v223 = vld [vmem:[%s176 + $0x140] sm:$0xff]
        %v224 = vld [vmem:[%s176 + $0x148] sm:$0x3]
        %v225 = vld [vmem:[%s176 + $0x150] sm:$0xff]
        %v226 = vld [vmem:[%s176 + $0x158] sm:$0xff]
        %v227 = vld [vmem:[%s176 + $0x160] sm:$0x3]
        %v228 = vld [vmem:[%s176 + $0x168] sm:$0xff]
        %v229 = vld [vmem:[%s176 + $0x170] sm:$0xff]
        %v230 = vld [vmem:[%s176 + $0x178] sm:$0x3]
        %v231 = vld [vmem:[%s176 + $0x180] sm:$0xff]
        %v232 = vld [vmem:[%s176 + $0x188] sm:$0xff]
        %v233 = vld [vmem:[%s176 + $0x190] sm:$0x3]
        %v234 = vld [vmem:[%s176 + $0x198] sm:$0xff]
        %v235 = vld [vmem:[%s176 + $0x1a0] sm:$0xff]
        %v236 = vld [vmem:[%s176 + $0x1a8] sm:$0x3]
        %v237 = vpack.c.bf16 %v184, %v183
        %v238 = vpack.c.bf16 %v187, %v186
        %v239 = vpack.c.bf16 %v190, %v189
        %v240 = vpack.c.bf16 %v193, %v192
        %v241 = vpack.c.bf16 %v196, %v195
        %v242 = vpack.c.bf16 %v199, %v198
        %v243 = vpack.c.bf16 %v202, %v201
        %v244 = vpack.c.bf16 %v205, %v204
        %v245 = vpack.c.bf16 %v208, %v207
        %v246 = vpack.c.bf16 %v211, %v210
        %v247 = vpack.c.bf16 %v214, %v213
        %v248 = vpack.c.bf16 %v217, %v216
        %v249 = vpack.c.bf16 %v220, %v219
        %v250 = vpack.c.bf16 %v223, %v222
        %v251 = vpack.c.bf16 %v226, %v225
        %v252 = vpack.c.bf16 %v229, %v228
        %v253 = vld [vmem:[%s1] sm:$0x3]
        %vm254 = vcmask 31744
        %v256 = vsel %vm254, %v237, 0
        %v259 = vsel %vm254, %v238, 0
        %v262 = vsel %vm254, %v239, 0
        %v265 = vsel %vm254, %v240, 0
        %v268 = vsel %vm254, %v241, 0
        %v271 = vsel %vm254, %v242, 0
        %v274 = vsel %vm254, %v243, 0
        %v277 = vsel %vm254, %v244, 0
        %v280 = vsel %vm254, %v245, 0
        %v283 = vsel %vm254, %v246, 0
        %v286 = vsel %vm254, %v247, 0
        %v289 = vsel %vm254, %v248, 0
        %v292 = vsel %vm254, %v249, 0
        %v295 = vsel %vm254, %v250, 0
        %v298 = vsel %vm254, %v251, 0
        %v301 = vsel %vm254, %v252, 0
        %vm303 = vcmask 1041408
        %v305 = vsel %vm303, %v253, 0
        %307 = vmatprep.subr.bf16.mxu0 0
        %308 = vmatpush1.bf16.msra.mxu0 %v305
        %309 = vmatprep.subr.bf16.mxu0 0
        %310 = vmatpush1.bf16.msra.mxu0 0
        %311 = vmatprep.subr.bf16.mxu0 0
        %312 = vmatpush1.bf16.msra.mxu0 0
        %313 = vmatprep.subr.bf16.mxu0 0
        %314 = vmatpush1.bf16.msra.mxu0 0
        %315 = vmatprep.subr.bf16.mxu0 0
        %316 = vmatpush1.bf16.msra.mxu0 0
        %317 = vmatprep.subr.bf16.mxu0 0
        %318 = vmatpush1.bf16.msra.mxu0 0
        %319 = vmatprep.subr.bf16.mxu0 0
        %320 = vmatpush1.bf16.msra.mxu0 0
        %321 = vmatprep.subr.bf16.mxu0 0
        %322 = vmatpush1.bf16.msra.mxu0 0
        %323 = vmatprep.subr.bf16.mxu0 0
        %324 = vmatpush1.bf16.msra.mxu0 0
        %325 = vmatprep.subr.bf16.mxu0 0
        %326 = vmatpush1.bf16.msra.mxu0 0
        %327 = vmatprep.subr.bf16.mxu0 0
        %328 = vmatpush1.bf16.msra.mxu0 0
        %329 = vmatprep.subr.bf16.mxu0 0
        %330 = vmatpush1.bf16.msra.mxu0 0
        %331 = vmatprep.subr.bf16.mxu0 0
        %332 = vmatpush1.bf16.msra.mxu0 0
        %333 = vmatprep.subr.bf16.mxu0 0
        %334 = vmatpush1.bf16.msra.mxu0 0
        %335 = vmatprep.subr.bf16.mxu0 0
        %336 = vmatpush1.bf16.msra.mxu0 0
        %337 = vmatprep.subr.bf16.mxu0 0
        %338 = vmatpush1.bf16.msra.mxu0 0
        %339 = vmatprep.mubr.bf16.mxu0 0
        %340 = vmatmul.mubr.bf16.gmra.mrb[0].mxu0 %v256
        %v341 = vpop.f32.mrb[0].mxu0
        %v342 = vadd.f32 0.0, %v341
        %v343 = vpop.f32.mrb[0].mxu0
        %v344 = vpop.f32.mrb[0].mxu0
        %v345 = vadd.f32 0.0, %v344
        %v346 = vpop.f32.mrb[0].mxu0
        %347 = vmatprep.mubr.bf16.mxu0 0
        %348 = vmatmul.mubr.bf16.gmra.mrb[0].mxu0 %v259
        %v349 = vpop.f32.mrb[0].mxu0
        %v350 = vadd.f32 0.0, %v349
        %v351 = vpop.f32.mrb[0].mxu0
        %v352 = vpop.f32.mrb[0].mxu0
        %v353 = vadd.f32 0.0, %v352
        %v354 = vpop.f32.mrb[0].mxu0
        %355 = vmatprep.mubr.bf16.mxu0 0
        %356 = vmatmul.mubr.bf16.gmra.mrb[0].mxu0 %v262
        %v357 = vpop.f32.mrb[0].mxu0
        %v358 = vadd.f32 0.0, %v357
        %v359 = vpop.f32.mrb[0].mxu0
        %v360 = vpop.f32.mrb[0].mxu0
        %v361 = vadd.f32 0.0, %v360
        %v362 = vpop.f32.mrb[0].mxu0
        %363 = vmatprep.mubr.bf16.mxu0 0
        %364 = vmatmul.mubr.bf16.gmra.mrb[0].mxu0 %v265
        %v365 = vpop.f32.mrb[0].mxu0
        %v366 = vadd.f32 0.0, %v365
        %v367 = vpop.f32.mrb[0].mxu0
        %v368 = vpop.f32.mrb[0].mxu0
        %v369 = vadd.f32 0.0, %v368
        %v370 = vpop.f32.mrb[0].mxu0
        %371 = vmatprep.mubr.bf16.mxu0 0
        %372 = vmatmul.mubr.bf16.gmra.mrb[0].mxu0 %v268
        %v373 = vpop.f32.mrb[0].mxu0
        %v374 = vadd.f32 0.0, %v373
        %v375 = vpop.f32.mrb[0].mxu0
        %v376 = vpop.f32.mrb[0].mxu0
        %v377 = vadd.f32 0.0, %v376
        %v378 = vpop.f32.mrb[0].mxu0
        %379 = vmatprep.mubr.bf16.mxu0 0
        %380 = vmatmul.mubr.bf16.gmra.mrb[0].mxu0 %v271
        %v381 = vpop.f32.mrb[0].mxu0
        %v382 = vadd.f32 0.0, %v381
        %v383 = vpop.f32.mrb[0].mxu0
        %v384 = vpop.f32.mrb[0].mxu0
        %v385 = vadd.f32 0.0, %v384
        %v386 = vpop.f32.mrb[0].mxu0
        %387 = vmatprep.mubr.bf16.mxu0 0
        %388 = vmatmul.mubr.bf16.gmra.mrb[0].mxu0 %v274
        %v389 = vpop.f32.mrb[0].mxu0
        %v390 = vadd.f32 0.0, %v389
        %v391 = vpop.f32.mrb[0].mxu0
        %v392 = vpop.f32.mrb[0].mxu0
        %v393 = vadd.f32 0.0, %v392
        %v394 = vpop.f32.mrb[0].mxu0
        %395 = vmatprep.mubr.bf16.mxu0 0
        %396 = vmatmul.mubr.bf16.gmra.mrb[0].mxu0 %v277
        %v397 = vpop.f32.mrb[0].mxu0
        %v398 = vadd.f32 0.0, %v397
        %v399 = vpop.f32.mrb[0].mxu0
        %v400 = vpop.f32.mrb[0].mxu0
        %v401 = vadd.f32 0.0, %v400
        %v402 = vpop.f32.mrb[0].mxu0
        %403 = vmatprep.mubr.bf16.mxu0 0
        %404 = vmatmul.mubr.bf16.gmra.mrb[0].mxu0 %v280
        %v405 = vpop.f32.mrb[0].mxu0
        %v406 = vadd.f32 0.0, %v405
        %v407 = vpop.f32.mrb[0].mxu0
        %v408 = vpop.f32.mrb[0].mxu0
        %v409 = vadd.f32 0.0, %v408
        %v410 = vpop.f32.mrb[0].mxu0
        %411 = vmatprep.mubr.bf16.mxu0 0
        %412 = vmatmul.mubr.bf16.gmra.mrb[0].mxu0 %v283
        %v413 = vpop.f32.mrb[0].mxu0
        %v414 = vadd.f32 0.0, %v413
        %v415 = vpop.f32.mrb[0].mxu0
        %v416 = vpop.f32.mrb[0].mxu0
        %v417 = vadd.f32 0.0, %v416
        %v418 = vpop.f32.mrb[0].mxu0
        %419 = vmatprep.mubr.bf16.mxu0 0
        %420 = vmatmul.mubr.bf16.gmra.mrb[0].mxu0 %v286
        %v421 = vpop.f32.mrb[0].mxu0
        %v422 = vadd.f32 0.0, %v421
        %v423 = vpop.f32.mrb[0].mxu0
        %v424 = vpop.f32.mrb[0].mxu0
        %v425 = vadd.f32 0.0, %v424
        %v426 = vpop.f32.mrb[0].mxu0
        %427 = vmatprep.mubr.bf16.mxu0 0
        %428 = vmatmul.mubr.bf16.gmra.mrb[0].mxu0 %v289
        %v429 = vpop.f32.mrb[0].mxu0
        %v430 = vadd.f32 0.0, %v429
        %v431 = vpop.f32.mrb[0].mxu0
        %v432 = vpop.f32.mrb[0].mxu0
        %v433 = vadd.f32 0.0, %v432
        %v434 = vpop.f32.mrb[0].mxu0
        %435 = vmatprep.mubr.bf16.mxu0 0
        %436 = vmatmul.mubr.bf16.gmra.mrb[0].mxu0 %v292
        %v437 = vpop.f32.mrb[0].mxu0
        %v438 = vadd.f32 0.0, %v437
        %v439 = vpop.f32.mrb[0].mxu0
        %v440 = vpop.f32.mrb[0].mxu0
        %v441 = vadd.f32 0.0, %v440
        %v442 = vpop.f32.mrb[0].mxu0
        %443 = vmatprep.mubr.bf16.mxu0 0
        %444 = vmatmul.mubr.bf16.gmra.mrb[0].mxu0 %v295
        %v445 = vpop.f32.mrb[0].mxu0
        %v446 = vadd.f32 0.0, %v445
        %v447 = vpop.f32.mrb[0].mxu0
        %v448 = vpop.f32.mrb[0].mxu0
        %v449 = vadd.f32 0.0, %v448
        %v450 = vpop.f32.mrb[0].mxu0
        %451 = vmatprep.mubr.bf16.mxu0 0
        %452 = vmatmul.mubr.bf16.gmra.mrb[0].mxu0 %v298
        %v453 = vpop.f32.mrb[0].mxu0
        %v454 = vadd.f32 0.0, %v453
        %v455 = vpop.f32.mrb[0].mxu0
        %v456 = vpop.f32.mrb[0].mxu0
        %v457 = vadd.f32 0.0, %v456
        %v458 = vpop.f32.mrb[0].mxu0
        %459 = vmatprep.mubr.bf16.mxu0 0
        %460 = vmatmul.mubr.bf16.gmra.mrb[0].mxu0 %v301
        %v461 = vpop.f32.mrb[0].mxu0
        %v462 = vadd.f32 0.0, %v461
        %v463 = vpop.f32.mrb[0].mxu0
        %v464 = vpop.f32.mrb[0].mxu0
        %v465 = vadd.f32 0.0, %v464
        %v466 = vpop.f32.mrb[0].mxu0
        %467 = vdwg.mxu0
        %vm468 = vcmask 64512
        %469 = vst.msk [vmem:[#allocation2] sm:$0xff] %vm468, %v342
        %470 = vst.msk [vmem:[#allocation2 + $0x8] sm:$0xff] %vm468, %v345
        %471 = vst.msk [vmem:[#allocation2 + $0x10] sm:$0xff] %vm468, %v350
        %472 = vst.msk [vmem:[#allocation2 + $0x18] sm:$0xff] %vm468, %v353
        %473 = vst.msk [vmem:[#allocation2 + $0x20] sm:$0xff] %vm468, %v358
        %474 = vst.msk [vmem:[#allocation2 + $0x28] sm:$0xff] %vm468, %v361
        %475 = vst.msk [vmem:[#allocation2 + $0x30] sm:$0xff] %vm468, %v366
        %476 = vst.msk [vmem:[#allocation2 + $0x38] sm:$0xff] %vm468, %v369
        %477 = vst.msk [vmem:[#allocation2 + $0x40] sm:$0xff] %vm468, %v374
        %478 = vst.msk [vmem:[#allocation2 + $0x48] sm:$0xff] %vm468, %v377
        %479 = vst.msk [vmem:[#allocation2 + $0x50] sm:$0xff] %vm468, %v382
        %480 = vst.msk [vmem:[#allocation2 + $0x58] sm:$0xff] %vm468, %v385
        %481 = vst.msk [vmem:[#allocation2 + $0x60] sm:$0xff] %vm468, %v390
        %482 = vst.msk [vmem:[#allocation2 + $0x68] sm:$0xff] %vm468, %v393
        %483 = vst.msk [vmem:[#allocation2 + $0x70] sm:$0xff] %vm468, %v398
        %484 = vst.msk [vmem:[#allocation2 + $0x78] sm:$0xff] %vm468, %v401
        %485 = vst.msk [vmem:[#allocation2 + $0x80] sm:$0xff] %vm468, %v406
        %486 = vst.msk [vmem:[#allocation2 + $0x88] sm:$0xff] %vm468, %v409
        %487 = vst.msk [vmem:[#allocation2 + $0x90] sm:$0xff] %vm468, %v414
        %488 = vst.msk [vmem:[#allocation2 + $0x98] sm:$0xff] %vm468, %v417
        %489 = vst.msk [vmem:[#allocation2 + $0xa0] sm:$0xff] %vm468, %v422
        %490 = vst.msk [vmem:[#allocation2 + $0xa8] sm:$0xff] %vm468, %v425
        %491 = vst.msk [vmem:[#allocation2 + $0xb0] sm:$0xff] %vm468, %v430
        %492 = vst.msk [vmem:[#allocation2 + $0xb8] sm:$0xff] %vm468, %v433
        %493 = vst.msk [vmem:[#allocation2 + $0xc0] sm:$0xff] %vm468, %v438
        %494 = vst.msk [vmem:[#allocation2 + $0xc8] sm:$0xff] %vm468, %v441
        %495 = vst.msk [vmem:[#allocation2 + $0xd0] sm:$0xff] %vm468, %v446
        %496 = vst.msk [vmem:[#allocation2 + $0xd8] sm:$0xff] %vm468, %v449
        %497 = vst.msk [vmem:[#allocation2 + $0xe0] sm:$0xff] %vm468, %v454
        %498 = vst.msk [vmem:[#allocation2 + $0xe8] sm:$0xff] %vm468, %v457
        %499 = vst.msk [vmem:[#allocation2 + $0xf0] sm:$0xff] %vm468, %v462
        %500 = vst.msk [vmem:[#allocation2 + $0xf8] sm:$0xff] %vm468, %v465
        %v501 = vld [vmem:[#allocation2] sm:$0xff]
        %v502 = vld [vmem:[#allocation2 + $0x8] sm:$0xff]
        %v503 = vld [vmem:[#allocation2 + $0x10] sm:$0xff]
        %v504 = vld [vmem:[#allocation2 + $0x18] sm:$0xff]
        %v505 = vld [vmem:[#allocation2 + $0x20] sm:$0xff]
        %v506 = vld [vmem:[#allocation2 + $0x28] sm:$0xff]
        %v507 = vld [vmem:[#allocation2 + $0x30] sm:$0xff]
        %v508 = vld [vmem:[#allocation2 + $0x38] sm:$0xff]
        %v509 = vld [vmem:[#allocation2 + $0x40] sm:$0xff]
        %v510 = vld [vmem:[#allocation2 + $0x48] sm:$0xff]
        %v511 = vld [vmem:[#allocation2 + $0x50] sm:$0xff]
        %v512 = vld [vmem:[#allocation2 + $0x58] sm:$0xff]
        %v513 = vld [vmem:[#allocation2 + $0x60] sm:$0xff]
        %v514 = vld [vmem:[#allocation2 + $0x68] sm:$0xff]
        %v515 = vld [vmem:[#allocation2 + $0x70] sm:$0xff]
        %v516 = vld [vmem:[#allocation2 + $0x78] sm:$0xff]
        %v517 = vld [vmem:[#allocation2 + $0x80] sm:$0xff]
        %v518 = vld [vmem:[#allocation2 + $0x88] sm:$0xff]
        %v519 = vld [vmem:[#allocation2 + $0x90] sm:$0xff]
        %v520 = vld [vmem:[#allocation2 + $0x98] sm:$0xff]
        %v521 = vld [vmem:[#allocation2 + $0xa0] sm:$0xff]
        %v522 = vld [vmem:[#allocation2 + $0xa8] sm:$0xff]
        %v523 = vld [vmem:[#allocation2 + $0xb0] sm:$0xff]
        %v524 = vld [vmem:[#allocation2 + $0xb8] sm:$0xff]
        %v525 = vld [vmem:[#allocation2 + $0xc0] sm:$0xff]
        %v526 = vld [vmem:[#allocation2 + $0xc8] sm:$0xff]
        %v527 = vld [vmem:[#allocation2 + $0xd0] sm:$0xff]
        %v528 = vld [vmem:[#allocation2 + $0xd8] sm:$0xff]
        %v529 = vld [vmem:[#allocation2 + $0xe0] sm:$0xff]
        %v530 = vld [vmem:[#allocation2 + $0xe8] sm:$0xff]
        %v531 = vld [vmem:[#allocation2 + $0xf0] sm:$0xff]
        %v532 = vld [vmem:[#allocation2 + $0xf8] sm:$0xff]
        %vm581 = vcmask 1046528
        %v582 = vrot.slane %v183, 1
        %v583 = vrot.slane %v184, 1
        %v584 = vsel %vm581, %v582, %v583
        %v585 = vrot.slane %v185, 1
        %v586 = vsel %vm581, %v583, %v585
        %v587 = vrot.slane %v186, 1
        %v588 = vrot.slane %v187, 1
        %v589 = vsel %vm581, %v587, %v588
        %v590 = vrot.slane %v188, 1
        %v591 = vsel %vm581, %v588, %v590
        %v592 = vrot.slane %v189, 1
        %v593 = vrot.slane %v190, 1
        %v594 = vsel %vm581, %v592, %v593
        %v595 = vrot.slane %v191, 1
        %v596 = vsel %vm581, %v593, %v595
        %v597 = vrot.slane %v192, 1
        %v598 = vrot.slane %v193, 1
        %v599 = vsel %vm581, %v597, %v598
        %v600 = vrot.slane %v194, 1
        %v601 = vsel %vm581, %v598, %v600
        %v602 = vrot.slane %v195, 1
        %v603 = vrot.slane %v196, 1
        %v604 = vsel %vm581, %v602, %v603
        %v605 = vrot.slane %v197, 1
        %v606 = vsel %vm581, %v603, %v605
        %v607 = vrot.slane %v198, 1
        %v608 = vrot.slane %v199, 1
        %v609 = vsel %vm581, %v607, %v608
        %v610 = vrot.slane %v200, 1
        %v611 = vsel %vm581, %v608, %v610
        %v612 = vrot.slane %v201, 1
        %v613 = vrot.slane %v202, 1
        %v614 = vsel %vm581, %v612, %v613
        %v615 = vrot.slane %v203, 1
        %v616 = vsel %vm581, %v613, %v615
        %v617 = vrot.slane %v204, 1
        %v618 = vrot.slane %v205, 1
        %v619 = vsel %vm581, %v617, %v618
        %v620 = vrot.slane %v206, 1
        %v621 = vsel %vm581, %v618, %v620
        %v622 = vrot.slane %v207, 1
        %v623 = vrot.slane %v208, 1
        %v624 = vsel %vm581, %v622, %v623
        %v625 = vrot.slane %v209, 1
        %v626 = vsel %vm581, %v623, %v625
        %v627 = vrot.slane %v210, 1
        %v628 = vrot.slane %v211, 1
        %v629 = vsel %vm581, %v627, %v628
        %v630 = vrot.slane %v212, 1
        %v631 = vsel %vm581, %v628, %v630
        %v632 = vrot.slane %v213, 1
        %v633 = vrot.slane %v214, 1
        %v634 = vsel %vm581, %v632, %v633
        %v635 = vrot.slane %v215, 1
        %v636 = vsel %vm581, %v633, %v635
        %v637 = vrot.slane %v216, 1
        %v638 = vrot.slane %v217, 1
        %v639 = vsel %vm581, %v637, %v638
        %v640 = vrot.slane %v218, 1
        %v641 = vsel %vm581, %v638, %v640
        %v642 = vrot.slane %v219, 1
        %v643 = vrot.slane %v220, 1
        %v644 = vsel %vm581, %v642, %v643
        %v645 = vrot.slane %v221, 1
        %v646 = vsel %vm581, %v643, %v645
        %v647 = vrot.slane %v222, 1
        %v648 = vrot.slane %v223, 1
        %v649 = vsel %vm581, %v647, %v648
        %v650 = vrot.slane %v224, 1
        %v651 = vsel %vm581, %v648, %v650
        %v652 = vrot.slane %v225, 1
        %v653 = vrot.slane %v226, 1
        %v654 = vsel %vm581, %v652, %v653
        %v655 = vrot.slane %v227, 1
        %v656 = vsel %vm581, %v653, %v655
        %v657 = vrot.slane %v228, 1
        %v658 = vrot.slane %v229, 1
        %v659 = vsel %vm581, %v657, %v658
        %v660 = vrot.slane %v230, 1
        %v661 = vsel %vm581, %v658, %v660
        %v694 = vpack.c.bf16 %v586, %v584
        %v695 = vpack.c.bf16 %v591, %v589
        %v696 = vpack.c.bf16 %v596, %v594
        %v697 = vpack.c.bf16 %v601, %v599
        %v698 = vpack.c.bf16 %v606, %v604
        %v699 = vpack.c.bf16 %v611, %v609
        %v700 = vpack.c.bf16 %v616, %v614
        %v701 = vpack.c.bf16 %v621, %v619
        %v702 = vpack.c.bf16 %v626, %v624
        %v703 = vpack.c.bf16 %v631, %v629
        %v704 = vpack.c.bf16 %v636, %v634
        %v705 = vpack.c.bf16 %v641, %v639
        %v706 = vpack.c.bf16 %v646, %v644
        %v707 = vpack.c.bf16 %v651, %v649
        %v708 = vpack.c.bf16 %v656, %v654
        %v709 = vpack.c.bf16 %v661, %v659
        %s710 = scalar_lea.vmem %s1, 2
        %v711 = vld [vmem:[%s710] sm:$0x3]
        %v713 = vsel %vm254, %v694, 0
        %v716 = vsel %vm254, %v695, 0
        %v719 = vsel %vm254, %v696, 0
        %v722 = vsel %vm254, %v697, 0
        %v725 = vsel %vm254, %v698, 0
        %v728 = vsel %vm254, %v699, 0
        %v731 = vsel %vm254, %v700, 0
        %v734 = vsel %vm254, %v701, 0
        %v737 = vsel %vm254, %v702, 0
        %v740 = vsel %vm254, %v703, 0
        %v743 = vsel %vm254, %v704, 0
        %v746 = vsel %vm254, %v705, 0
        %v749 = vsel %vm254, %v706, 0
        %v752 = vsel %vm254, %v707, 0
        %v755 = vsel %vm254, %v708, 0
        %v758 = vsel %vm254, %v709, 0
        %v761 = vsel %vm303, %v711, 0
        %763 = vmatprep.subr.bf16.mxu0 0
        %764 = vmatpush1.bf16.msra.mxu0 %v761
        %765 = vmatprep.subr.bf16.mxu0 0
        %766 = vmatpush1.bf16.msra.mxu0 0
        %767 = vmatprep.subr.bf16.mxu0 0
        %768 = vmatpush1.bf16.msra.mxu0 0
        %769 = vmatprep.subr.bf16.mxu0 0
        %770 = vmatpush1.bf16.msra.mxu0 0
        %771 = vmatprep.subr.bf16.mxu0 0
        %772 = vmatpush1.bf16.msra.mxu0 0
        %773 = vmatprep.subr.bf16.mxu0 0
        %774 = vmatpush1.bf16.msra.mxu0 0
        %775 = vmatprep.subr.bf16.mxu0 0
        %776 = vmatpush1.bf16.msra.mxu0 0
        %777 = vmatprep.subr.bf16.mxu0 0
        %778 = vmatpush1.bf16.msra.mxu0 0
        %779 = vmatprep.subr.bf16.mxu0 0
        %780 = vmatpush1.bf16.msra.mxu0 0
        %781 = vmatprep.subr.bf16.mxu0 0
        %782 = vmatpush1.bf16.msra.mxu0 0
        %783 = vmatprep.subr.bf16.mxu0 0
        %784 = vmatpush1.bf16.msra.mxu0 0
        %785 = vmatprep.subr.bf16.mxu0 0
        %786 = vmatpush1.bf16.msra.mxu0 0
        %787 = vmatprep.subr.bf16.mxu0 0
        %788 = vmatpush1.bf16.msra.mxu0 0
        %789 = vmatprep.subr.bf16.mxu0 0
        %790 = vmatpush1.bf16.msra.mxu0 0
        %791 = vmatprep.subr.bf16.mxu0 0
        %792 = vmatpush1.bf16.msra.mxu0 0
        %793 = vmatprep.subr.bf16.mxu0 0
        %794 = vmatpush1.bf16.msra.mxu0 0
        %795 = vmatprep.mubr.bf16.mxu0 0
        %796 = vmatmul.mubr.bf16.gmra.mrb[0].mxu0 %v713
        %v797 = vpop.f32.mrb[0].mxu0
        %v798 = vadd.f32 0.0, %v797
        %v799 = vpop.f32.mrb[0].mxu0
        %v800 = vpop.f32.mrb[0].mxu0
        %v801 = vadd.f32 0.0, %v800
        %v802 = vpop.f32.mrb[0].mxu0
        %803 = vmatprep.mubr.bf16.mxu0 0
        %804 = vmatmul.mubr.bf16.gmra.mrb[0].mxu0 %v716
        %v805 = vpop.f32.mrb[0].mxu0
        %v806 = vadd.f32 0.0, %v805
        %v807 = vpop.f32.mrb[0].mxu0
        %v808 = vpop.f32.mrb[0].mxu0
        %v809 = vadd.f32 0.0, %v808
        %v810 = vpop.f32.mrb[0].mxu0
        %811 = vmatprep.mubr.bf16.mxu0 0
        %812 = vmatmul.mubr.bf16.gmra.mrb[0].mxu0 %v719
        %v813 = vpop.f32.mrb[0].mxu0
        %v814 = vadd.f32 0.0, %v813
        %v815 = vpop.f32.mrb[0].mxu0
        %v816 = vpop.f32.mrb[0].mxu0
        %v817 = vadd.f32 0.0, %v816
        %v818 = vpop.f32.mrb[0].mxu0
        %819 = vmatprep.mubr.bf16.mxu0 0
        %820 = vmatmul.mubr.bf16.gmra.mrb[0].mxu0 %v722
        %v821 = vpop.f32.mrb[0].mxu0
        %v822 = vadd.f32 0.0, %v821
        %v823 = vpop.f32.mrb[0].mxu0
        %v824 = vpop.f32.mrb[0].mxu0
        %v825 = vadd.f32 0.0, %v824
        %v826 = vpop.f32.mrb[0].mxu0
        %827 = vmatprep.mubr.bf16.mxu0 0
        %828 = vmatmul.mubr.bf16.gmra.mrb[0].mxu0 %v725
        %v829 = vpop.f32.mrb[0].mxu0
        %v830 = vadd.f32 0.0, %v829
        %v831 = vpop.f32.mrb[0].mxu0
        %v832 = vpop.f32.mrb[0].mxu0
        %v833 = vadd.f32 0.0, %v832
        %v834 = vpop.f32.mrb[0].mxu0
        %835 = vmatprep.mubr.bf16.mxu0 0
        %836 = vmatmul.mubr.bf16.gmra.mrb[0].mxu0 %v728
        %v837 = vpop.f32.mrb[0].mxu0
        %v838 = vadd.f32 0.0, %v837
        %v839 = vpop.f32.mrb[0].mxu0
        %v840 = vpop.f32.mrb[0].mxu0
        %v841 = vadd.f32 0.0, %v840
        %v842 = vpop.f32.mrb[0].mxu0
        %843 = vmatprep.mubr.bf16.mxu0 0
        %844 = vmatmul.mubr.bf16.gmra.mrb[0].mxu0 %v731
        %v845 = vpop.f32.mrb[0].mxu0
        %v846 = vadd.f32 0.0, %v845
        %v847 = vpop.f32.mrb[0].mxu0
        %v848 = vpop.f32.mrb[0].mxu0
        %v849 = vadd.f32 0.0, %v848
        %v850 = vpop.f32.mrb[0].mxu0
        %851 = vmatprep.mubr.bf16.mxu0 0
        %852 = vmatmul.mubr.bf16.gmra.mrb[0].mxu0 %v734
        %v853 = vpop.f32.mrb[0].mxu0
        %v854 = vadd.f32 0.0, %v853
        %v855 = vpop.f32.mrb[0].mxu0
        %v856 = vpop.f32.mrb[0].mxu0
        %v857 = vadd.f32 0.0, %v856
        %v858 = vpop.f32.mrb[0].mxu0
        %859 = vmatprep.mubr.bf16.mxu0 0
        %860 = vmatmul.mubr.bf16.gmra.mrb[0].mxu0 %v737
        %v861 = vpop.f32.mrb[0].mxu0
        %v862 = vadd.f32 0.0, %v861
        %v863 = vpop.f32.mrb[0].mxu0
        %v864 = vpop.f32.mrb[0].mxu0
        %v865 = vadd.f32 0.0, %v864
        %v866 = vpop.f32.mrb[0].mxu0
        %867 = vmatprep.mubr.bf16.mxu0 0
        %868 = vmatmul.mubr.bf16.gmra.mrb[0].mxu0 %v740
        %v869 = vpop.f32.mrb[0].mxu0
        %v870 = vadd.f32 0.0, %v869
        %v871 = vpop.f32.mrb[0].mxu0
        %v872 = vpop.f32.mrb[0].mxu0
        %v873 = vadd.f32 0.0, %v872
        %v874 = vpop.f32.mrb[0].mxu0
        %875 = vmatprep.mubr.bf16.mxu0 0
        %876 = vmatmul.mubr.bf16.gmra.mrb[0].mxu0 %v743
        %v877 = vpop.f32.mrb[0].mxu0
        %v878 = vadd.f32 0.0, %v877
        %v879 = vpop.f32.mrb[0].mxu0
        %v880 = vpop.f32.mrb[0].mxu0
        %v881 = vadd.f32 0.0, %v880
        %v882 = vpop.f32.mrb[0].mxu0
        %883 = vmatprep.mubr.bf16.mxu0 0
        %884 = vmatmul.mubr.bf16.gmra.mrb[0].mxu0 %v746
        %v885 = vpop.f32.mrb[0].mxu0
        %v886 = vadd.f32 0.0, %v885
        %v887 = vpop.f32.mrb[0].mxu0
        %v888 = vpop.f32.mrb[0].mxu0
        %v889 = vadd.f32 0.0, %v888
        %v890 = vpop.f32.mrb[0].mxu0
        %891 = vmatprep.mubr.bf16.mxu0 0
        %892 = vmatmul.mubr.bf16.gmra.mrb[0].mxu0 %v749
        %v893 = vpop.f32.mrb[0].mxu0
        %v894 = vadd.f32 0.0, %v893
        %v895 = vpop.f32.mrb[0].mxu0
        %v896 = vpop.f32.mrb[0].mxu0
        %v897 = vadd.f32 0.0, %v896
        %v898 = vpop.f32.mrb[0].mxu0
        %899 = vmatprep.mubr.bf16.mxu0 0
        %900 = vmatmul.mubr.bf16.gmra.mrb[0].mxu0 %v752
        %v901 = vpop.f32.mrb[0].mxu0
        %v902 = vadd.f32 0.0, %v901
        %v903 = vpop.f32.mrb[0].mxu0
        %v904 = vpop.f32.mrb[0].mxu0
        %v905 = vadd.f32 0.0, %v904
        %v906 = vpop.f32.mrb[0].mxu0
        %907 = vmatprep.mubr.bf16.mxu0 0
        %908 = vmatmul.mubr.bf16.gmra.mrb[0].mxu0 %v755
        %v909 = vpop.f32.mrb[0].mxu0
        %v910 = vadd.f32 0.0, %v909
        %v911 = vpop.f32.mrb[0].mxu0
        %v912 = vpop.f32.mrb[0].mxu0
        %v913 = vadd.f32 0.0, %v912
        %v914 = vpop.f32.mrb[0].mxu0
        %915 = vmatprep.mubr.bf16.mxu0 0
        %916 = vmatmul.mubr.bf16.gmra.mrb[0].mxu0 %v758
        %v917 = vpop.f32.mrb[0].mxu0
        %v918 = vadd.f32 0.0, %v917
        %v919 = vpop.f32.mrb[0].mxu0
        %v920 = vpop.f32.mrb[0].mxu0
        %v921 = vadd.f32 0.0, %v920
        %v922 = vpop.f32.mrb[0].mxu0
        %923 = vdwg.mxu0
        %v924 = vadd.f32 %v501, %v798
        %v925 = vadd.f32 %v502, %v801
        %v926 = vadd.f32 %v503, %v806
        %v927 = vadd.f32 %v504, %v809
        %v928 = vadd.f32 %v505, %v814
        %v929 = vadd.f32 %v506, %v817
        %v930 = vadd.f32 %v507, %v822
        %v931 = vadd.f32 %v508, %v825
        %v932 = vadd.f32 %v509, %v830
        %v933 = vadd.f32 %v510, %v833
        %v934 = vadd.f32 %v511, %v838
        %v935 = vadd.f32 %v512, %v841
        %v936 = vadd.f32 %v513, %v846
        %v937 = vadd.f32 %v514, %v849
        %v938 = vadd.f32 %v515, %v854
        %v939 = vadd.f32 %v516, %v857
        %v940 = vadd.f32 %v517, %v862
        %v941 = vadd.f32 %v518, %v865
        %v942 = vadd.f32 %v519, %v870
        %v943 = vadd.f32 %v520, %v873
        %v944 = vadd.f32 %v521, %v878
        %v945 = vadd.f32 %v522, %v881
        %v946 = vadd.f32 %v523, %v886
        %v947 = vadd.f32 %v524, %v889
        %v948 = vadd.f32 %v525, %v894
        %v949 = vadd.f32 %v526, %v897
        %v950 = vadd.f32 %v527, %v902
        %v951 = vadd.f32 %v528, %v905
        %v952 = vadd.f32 %v529, %v910
        %v953 = vadd.f32 %v530, %v913
        %v954 = vadd.f32 %v531, %v918
        %v955 = vadd.f32 %v532, %v921
        %956 = vst.msk [vmem:[#allocation2] sm:$0xff] %vm468, %v924
        %957 = vst.msk [vmem:[#allocation2 + $0x8] sm:$0xff] %vm468, %v925
        %958 = vst.msk [vmem:[#allocation2 + $0x10] sm:$0xff] %vm468, %v926
        %959 = vst.msk [vmem:[#allocation2 + $0x18] sm:$0xff] %vm468, %v927
        %960 = vst.msk [vmem:[#allocation2 + $0x20] sm:$0xff] %vm468, %v928
        %961 = vst.msk [vmem:[#allocation2 + $0x28] sm:$0xff] %vm468, %v929
        %962 = vst.msk [vmem:[#allocation2 + $0x30] sm:$0xff] %vm468, %v930
        %963 = vst.msk [vmem:[#allocation2 + $0x38] sm:$0xff] %vm468, %v931
        %964 = vst.msk [vmem:[#allocation2 + $0x40] sm:$0xff] %vm468, %v932
        %965 = vst.msk [vmem:[#allocation2 + $0x48] sm:$0xff] %vm468, %v933
        %966 = vst.msk [vmem:[#allocation2 + $0x50] sm:$0xff] %vm468, %v934
        %967 = vst.msk [vmem:[#allocation2 + $0x58] sm:$0xff] %vm468, %v935
        %968 = vst.msk [vmem:[#allocation2 + $0x60] sm:$0xff] %vm468, %v936
        %969 = vst.msk [vmem:[#allocation2 + $0x68] sm:$0xff] %vm468, %v937
        %970 = vst.msk [vmem:[#allocation2 + $0x70] sm:$0xff] %vm468, %v938
        %971 = vst.msk [vmem:[#allocation2 + $0x78] sm:$0xff] %vm468, %v939
        %972 = vst.msk [vmem:[#allocation2 + $0x80] sm:$0xff] %vm468, %v940
        %973 = vst.msk [vmem:[#allocation2 + $0x88] sm:$0xff] %vm468, %v941
        %974 = vst.msk [vmem:[#allocation2 + $0x90] sm:$0xff] %vm468, %v942
        %975 = vst.msk [vmem:[#allocation2 + $0x98] sm:$0xff] %vm468, %v943
        %976 = vst.msk [vmem:[#allocation2 + $0xa0] sm:$0xff] %vm468, %v944
        %977 = vst.msk [vmem:[#allocation2 + $0xa8] sm:$0xff] %vm468, %v945
        %978 = vst.msk [vmem:[#allocation2 + $0xb0] sm:$0xff] %vm468, %v946
        %979 = vst.msk [vmem:[#allocation2 + $0xb8] sm:$0xff] %vm468, %v947
        %980 = vst.msk [vmem:[#allocation2 + $0xc0] sm:$0xff] %vm468, %v948
        %981 = vst.msk [vmem:[#allocation2 + $0xc8] sm:$0xff] %vm468, %v949
        %982 = vst.msk [vmem:[#allocation2 + $0xd0] sm:$0xff] %vm468, %v950
        %983 = vst.msk [vmem:[#allocation2 + $0xd8] sm:$0xff] %vm468, %v951
        %984 = vst.msk [vmem:[#allocation2 + $0xe0] sm:$0xff] %vm468, %v952
        %985 = vst.msk [vmem:[#allocation2 + $0xe8] sm:$0xff] %vm468, %v953
        %986 = vst.msk [vmem:[#allocation2 + $0xf0] sm:$0xff] %vm468, %v954
        %987 = vst.msk [vmem:[#allocation2 + $0xf8] sm:$0xff] %vm468, %v955
        %v988 = vld [vmem:[#allocation2] sm:$0xff]
        %v989 = vld [vmem:[#allocation2 + $0x8] sm:$0xff]
        %v990 = vld [vmem:[#allocation2 + $0x10] sm:$0xff]
        %v991 = vld [vmem:[#allocation2 + $0x18] sm:$0xff]
        %v992 = vld [vmem:[#allocation2 + $0x20] sm:$0xff]
        %v993 = vld [vmem:[#allocation2 + $0x28] sm:$0xff]
        %v994 = vld [vmem:[#allocation2 + $0x30] sm:$0xff]
        %v995 = vld [vmem:[#allocation2 + $0x38] sm:$0xff]
        %v996 = vld [vmem:[#allocation2 + $0x40] sm:$0xff]
        %v997 = vld [vmem:[#allocation2 + $0x48] sm:$0xff]
        %v998 = vld [vmem:[#allocation2 + $0x50] sm:$0xff]
        %v999 = vld [vmem:[#allocation2 + $0x58] sm:$0xff]
        %v1000 = vld [vmem:[#allocation2 + $0x60] sm:$0xff]
        %v1001 = vld [vmem:[#allocation2 + $0x68] sm:$0xff]
        %v1002 = vld [vmem:[#allocation2 + $0x70] sm:$0xff]
        %v1003 = vld [vmem:[#allocation2 + $0x78] sm:$0xff]
        %v1004 = vld [vmem:[#allocation2 + $0x80] sm:$0xff]
        %v1005 = vld [vmem:[#allocation2 + $0x88] sm:$0xff]
        %v1006 = vld [vmem:[#allocation2 + $0x90] sm:$0xff]
        %v1007 = vld [vmem:[#allocation2 + $0x98] sm:$0xff]
        %v1008 = vld [vmem:[#allocation2 + $0xa0] sm:$0xff]
        %v1009 = vld [vmem:[#allocation2 + $0xa8] sm:$0xff]
        %v1010 = vld [vmem:[#allocation2 + $0xb0] sm:$0xff]
        %v1011 = vld [vmem:[#allocation2 + $0xb8] sm:$0xff]
        %v1012 = vld [vmem:[#allocation2 + $0xc0] sm:$0xff]
        %v1013 = vld [vmem:[#allocation2 + $0xc8] sm:$0xff]
        %v1014 = vld [vmem:[#allocation2 + $0xd0] sm:$0xff]
        %v1015 = vld [vmem:[#allocation2 + $0xd8] sm:$0xff]
        %v1016 = vld [vmem:[#allocation2 + $0xe0] sm:$0xff]
        %v1017 = vld [vmem:[#allocation2 + $0xe8] sm:$0xff]
        %v1018 = vld [vmem:[#allocation2 + $0xf0] sm:$0xff]
        %v1019 = vld [vmem:[#allocation2 + $0xf8] sm:$0xff]
        %vm1020 = vcmask 1045504
        %v1021 = vrot.slane %v183, 2
        %v1022 = vrot.slane %v184, 2
        %v1023 = vsel %vm1020, %v1021, %v1022
        %v1024 = vrot.slane %v185, 2
        %v1025 = vsel %vm1020, %v1022, %v1024
        %v1026 = vrot.slane %v186, 2
        %v1027 = vrot.slane %v187, 2
        %v1028 = vsel %vm1020, %v1026, %v1027
        %v1029 = vrot.slane %v188, 2
        %v1030 = vsel %vm1020, %v1027, %v1029
        %v1031 = vrot.slane %v189, 2
        %v1032 = vrot.slane %v190, 2
        %v1033 = vsel %vm1020, %v1031, %v1032
        %v1034 = vrot.slane %v191, 2
        %v1035 = vsel %vm1020, %v1032, %v1034
        %v1036 = vrot.slane %v192, 2
        %v1037 = vrot.slane %v193, 2
        %v1038 = vsel %vm1020, %v1036, %v1037
        %v1039 = vrot.slane %v194, 2
        %v1040 = vsel %vm1020, %v1037, %v1039
        %v1041 = vrot.slane %v195, 2
        %v1042 = vrot.slane %v196, 2
        %v1043 = vsel %vm1020, %v1041, %v1042
        %v1044 = vrot.slane %v197, 2
        %v1045 = vsel %vm1020, %v1042, %v1044
        %v1046 = vrot.slane %v198, 2
        %v1047 = vrot.slane %v199, 2
        %v1048 = vsel %vm1020, %v1046, %v1047
        %v1049 = vrot.slane %v200, 2
        %v1050 = vsel %vm1020, %v1047, %v1049
        %v1051 = vrot.slane %v201, 2
        %v1052 = vrot.slane %v202, 2
        %v1053 = vsel %vm1020, %v1051, %v1052
        %v1054 = vrot.slane %v203, 2
        %v1055 = vsel %vm1020, %v1052, %v1054
        %v1056 = vrot.slane %v204, 2
        %v1057 = vrot.slane %v205, 2
        %v1058 = vsel %vm1020, %v1056, %v1057
        %v1059 = vrot.slane %v206, 2
        %v1060 = vsel %vm1020, %v1057, %v1059
        %v1061 = vrot.slane %v207, 2
        %v1062 = vrot.slane %v208, 2
        %v1063 = vsel %vm1020, %v1061, %v1062
        %v1064 = vrot.slane %v209, 2
        %v1065 = vsel %vm1020, %v1062, %v1064
        %v1066 = vrot.slane %v210, 2
        %v1067 = vrot.slane %v211, 2
        %v1068 = vsel %vm1020, %v1066, %v1067
        %v1069 = vrot.slane %v212, 2
        %v1070 = vsel %vm1020, %v1067, %v1069
        %v1071 = vrot.slane %v213, 2
        %v1072 = vrot.slane %v214, 2
        %v1073 = vsel %vm1020, %v1071, %v1072
        %v1074 = vrot.slane %v215, 2
        %v1075 = vsel %vm1020, %v1072, %v1074
        %v1076 = vrot.slane %v216, 2
        %v1077 = vrot.slane %v217, 2
        %v1078 = vsel %vm1020, %v1076, %v1077
        %v1079 = vrot.slane %v218, 2
        %v1080 = vsel %vm1020, %v1077, %v1079
        %v1081 = vrot.slane %v219, 2
        %v1082 = vrot.slane %v220, 2
        %v1083 = vsel %vm1020, %v1081, %v1082
        %v1084 = vrot.slane %v221, 2
        %v1085 = vsel %vm1020, %v1082, %v1084
        %v1086 = vrot.slane %v222, 2
        %v1087 = vrot.slane %v223, 2
        %v1088 = vsel %vm1020, %v1086, %v1087
        %v1089 = vrot.slane %v224, 2
        %v1090 = vsel %vm1020, %v1087, %v1089
        %v1091 = vrot.slane %v225, 2
        %v1092 = vrot.slane %v226, 2
        %v1093 = vsel %vm1020, %v1091, %v1092
        %v1094 = vrot.slane %v227, 2
        %v1095 = vsel %vm1020, %v1092, %v1094
        %v1096 = vrot.slane %v228, 2
        %v1097 = vrot.slane %v229, 2
        %v1098 = vsel %vm1020, %v1096, %v1097
        %v1099 = vrot.slane %v230, 2
        %v1100 = vsel %vm1020, %v1097, %v1099
        %v1133 = vpack.c.bf16 %v1025, %v1023
        %v1134 = vpack.c.bf16 %v1030, %v1028
        %v1135 = vpack.c.bf16 %v1035, %v1033
        %v1136 = vpack.c.bf16 %v1040, %v1038
        %v1137 = vpack.c.bf16 %v1045, %v1043
        %v1138 = vpack.c.bf16 %v1050, %v1048
        %v1139 = vpack.c.bf16 %v1055, %v1053
        %v1140 = vpack.c.bf16 %v1060, %v1058
        %v1141 = vpack.c.bf16 %v1065, %v1063
        %v1142 = vpack.c.bf16 %v1070, %v1068
        %v1143 = vpack.c.bf16 %v1075, %v1073
        %v1144 = vpack.c.bf16 %v1080, %v1078
        %v1145 = vpack.c.bf16 %v1085, %v1083
        %v1146 = vpack.c.bf16 %v1090, %v1088
        %v1147 = vpack.c.bf16 %v1095, %v1093
        %v1148 = vpack.c.bf16 %v1100, %v1098
        %s1149 = scalar_lea.vmem %s1, 4
        %v1150 = vld [vmem:[%s1149] sm:$0x3]
        %v1152 = vsel %vm254, %v1133, 0
        %v1155 = vsel %vm254, %v1134, 0
        %v1158 = vsel %vm254, %v1135, 0
        %v1161 = vsel %vm254, %v1136, 0
        %v1164 = vsel %vm254, %v1137, 0
        %v1167 = vsel %vm254, %v1138, 0
        %v1170 = vsel %vm254, %v1139, 0
        %v1173 = vsel %vm254, %v1140, 0
        %v1176 = vsel %vm254, %v1141, 0
        %v1179 = vsel %vm254, %v1142, 0
        %v1182 = vsel %vm254, %v1143, 0
        %v1185 = vsel %vm254, %v1144, 0
        %v1188 = vsel %vm254, %v1145, 0
        %v1191 = vsel %vm254, %v1146, 0
        %v1194 = vsel %vm254, %v1147, 0
        %v1197 = vsel %vm254, %v1148, 0
        %v1200 = vsel %vm303, %v1150, 0
        %1202 = vmatprep.subr.bf16.mxu0 0
        %1203 = vmatpush1.bf16.msra.mxu0 %v1200
        %1204 = vmatprep.subr.bf16.mxu0 0
        %1205 = vmatpush1.bf16.msra.mxu0 0
        %1206 = vmatprep.subr.bf16.mxu0 0
        %1207 = vmatpush1.bf16.msra.mxu0 0
        %1208 = vmatprep.subr.bf16.mxu0 0
        %1209 = vmatpush1.bf16.msra.mxu0 0
        %1210 = vmatprep.subr.bf16.mxu0 0
        %1211 = vmatpush1.bf16.msra.mxu0 0
        %1212 = vmatprep.subr.bf16.mxu0 0
        %1213 = vmatpush1.bf16.msra.mxu0 0
        %1214 = vmatprep.subr.bf16.mxu0 0
        %1215 = vmatpush1.bf16.msra.mxu0 0
        %1216 = vmatprep.subr.bf16.mxu0 0
        %1217 = vmatpush1.bf16.msra.mxu0 0
        %1218 = vmatprep.subr.bf16.mxu0 0
        %1219 = vmatpush1.bf16.msra.mxu0 0
        %1220 = vmatprep.subr.bf16.mxu0 0
        %1221 = vmatpush1.bf16.msra.mxu0 0
        %1222 = vmatprep.subr.bf16.mxu0 0
        %1223 = vmatpush1.bf16.msra.mxu0 0
        %1224 = vmatprep.subr.bf16.mxu0 0
        %1225 = vmatpush1.bf16.msra.mxu0 0
        %1226 = vmatprep.subr.bf16.mxu0 0
        %1227 = vmatpush1.bf16.msra.mxu0 0
        %1228 = vmatprep.subr.bf16.mxu0 0
        %1229 = vmatpush1.bf16.msra.mxu0 0
        %1230 = vmatprep.subr.bf16.mxu0 0
        %1231 = vmatpush1.bf16.msra.mxu0 0
        %1232 = vmatprep.subr.bf16.mxu0 0
        %1233 = vmatpush1.bf16.msra.mxu0 0
        %1234 = vmatprep.mubr.bf16.mxu0 0
        %1235 = vmatmul.mubr.bf16.gmra.mrb[0].mxu0 %v1152
        %v1236 = vpop.f32.mrb[0].mxu0
        %v1237 = vadd.f32 0.0, %v1236
        %v1238 = vpop.f32.mrb[0].mxu0
        %v1239 = vpop.f32.mrb[0].mxu0
        %v1240 = vadd.f32 0.0, %v1239
        %v1241 = vpop.f32.mrb[0].mxu0
        %1242 = vmatprep.mubr.bf16.mxu0 0
        %1243 = vmatmul.mubr.bf16.gmra.mrb[0].mxu0 %v1155
        %v1244 = vpop.f32.mrb[0].mxu0
        %v1245 = vadd.f32 0.0, %v1244
        %v1246 = vpop.f32.mrb[0].mxu0
        %v1247 = vpop.f32.mrb[0].mxu0
        %v1248 = vadd.f32 0.0, %v1247
        %v1249 = vpop.f32.mrb[0].mxu0
        %1250 = vmatprep.mubr.bf16.mxu0 0
        %1251 = vmatmul.mubr.bf16.gmra.mrb[0].mxu0 %v1158
        %v1252 = vpop.f32.mrb[0].mxu0
        %v1253 = vadd.f32 0.0, %v1252
        %v1254 = vpop.f32.mrb[0].mxu0
        %v1255 = vpop.f32.mrb[0].mxu0
        %v1256 = vadd.f32 0.0, %v1255
        %v1257 = vpop.f32.mrb[0].mxu0
        %1258 = vmatprep.mubr.bf16.mxu0 0
        %1259 = vmatmul.mubr.bf16.gmra.mrb[0].mxu0 %v1161
        %v1260 = vpop.f32.mrb[0].mxu0
        %v1261 = vadd.f32 0.0, %v1260
        %v1262 = vpop.f32.mrb[0].mxu0
        %v1263 = vpop.f32.mrb[0].mxu0
        %v1264 = vadd.f32 0.0, %v1263
        %v1265 = vpop.f32.mrb[0].mxu0
        %1266 = vmatprep.mubr.bf16.mxu0 0
        %1267 = vmatmul.mubr.bf16.gmra.mrb[0].mxu0 %v1164
        %v1268 = vpop.f32.mrb[0].mxu0
        %v1269 = vadd.f32 0.0, %v1268
        %v1270 = vpop.f32.mrb[0].mxu0
        %v1271 = vpop.f32.mrb[0].mxu0
        %v1272 = vadd.f32 0.0, %v1271
        %v1273 = vpop.f32.mrb[0].mxu0
        %1274 = vmatprep.mubr.bf16.mxu0 0
        %1275 = vmatmul.mubr.bf16.gmra.mrb[0].mxu0 %v1167
        %v1276 = vpop.f32.mrb[0].mxu0
        %v1277 = vadd.f32 0.0, %v1276
        %v1278 = vpop.f32.mrb[0].mxu0
        %v1279 = vpop.f32.mrb[0].mxu0
        %v1280 = vadd.f32 0.0, %v1279
        %v1281 = vpop.f32.mrb[0].mxu0
        %1282 = vmatprep.mubr.bf16.mxu0 0
        %1283 = vmatmul.mubr.bf16.gmra.mrb[0].mxu0 %v1170
        %v1284 = vpop.f32.mrb[0].mxu0
        %v1285 = vadd.f32 0.0, %v1284
        %v1286 = vpop.f32.mrb[0].mxu0
        %v1287 = vpop.f32.mrb[0].mxu0
        %v1288 = vadd.f32 0.0, %v1287
        %v1289 = vpop.f32.mrb[0].mxu0
        %1290 = vmatprep.mubr.bf16.mxu0 0
        %1291 = vmatmul.mubr.bf16.gmra.mrb[0].mxu0 %v1173
        %v1292 = vpop.f32.mrb[0].mxu0
        %v1293 = vadd.f32 0.0, %v1292
        %v1294 = vpop.f32.mrb[0].mxu0
        %v1295 = vpop.f32.mrb[0].mxu0
        %v1296 = vadd.f32 0.0, %v1295
        %v1297 = vpop.f32.mrb[0].mxu0
        %1298 = vmatprep.mubr.bf16.mxu0 0
        %1299 = vmatmul.mubr.bf16.gmra.mrb[0].mxu0 %v1176
        %v1300 = vpop.f32.mrb[0].mxu0
        %v1301 = vadd.f32 0.0, %v1300
        %v1302 = vpop.f32.mrb[0].mxu0
        %v1303 = vpop.f32.mrb[0].mxu0
        %v1304 = vadd.f32 0.0, %v1303
        %v1305 = vpop.f32.mrb[0].mxu0
        %1306 = vmatprep.mubr.bf16.mxu0 0
        %1307 = vmatmul.mubr.bf16.gmra.mrb[0].mxu0 %v1179
        %v1308 = vpop.f32.mrb[0].mxu0
        %v1309 = vadd.f32 0.0, %v1308
        %v1310 = vpop.f32.mrb[0].mxu0
        %v1311 = vpop.f32.mrb[0].mxu0
        %v1312 = vadd.f32 0.0, %v1311
        %v1313 = vpop.f32.mrb[0].mxu0
        %1314 = vmatprep.mubr.bf16.mxu0 0
        %1315 = vmatmul.mubr.bf16.gmra.mrb[0].mxu0 %v1182
        %v1316 = vpop.f32.mrb[0].mxu0
        %v1317 = vadd.f32 0.0, %v1316
        %v1318 = vpop.f32.mrb[0].mxu0
        %v1319 = vpop.f32.mrb[0].mxu0
        %v1320 = vadd.f32 0.0, %v1319
        %v1321 = vpop.f32.mrb[0].mxu0
        %1322 = vmatprep.mubr.bf16.mxu0 0
        %1323 = vmatmul.mubr.bf16.gmra.mrb[0].mxu0 %v1185
        %v1324 = vpop.f32.mrb[0].mxu0
        %v1325 = vadd.f32 0.0, %v1324
        %v1326 = vpop.f32.mrb[0].mxu0
        %v1327 = vpop.f32.mrb[0].mxu0
        %v1328 = vadd.f32 0.0, %v1327
        %v1329 = vpop.f32.mrb[0].mxu0
        %1330 = vmatprep.mubr.bf16.mxu0 0
        %1331 = vmatmul.mubr.bf16.gmra.mrb[0].mxu0 %v1188
        %v1332 = vpop.f32.mrb[0].mxu0
        %v1333 = vadd.f32 0.0, %v1332
        %v1334 = vpop.f32.mrb[0].mxu0
        %v1335 = vpop.f32.mrb[0].mxu0
        %v1336 = vadd.f32 0.0, %v1335
        %v1337 = vpop.f32.mrb[0].mxu0
        %1338 = vmatprep.mubr.bf16.mxu0 0
        %1339 = vmatmul.mubr.bf16.gmra.mrb[0].mxu0 %v1191
        %v1340 = vpop.f32.mrb[0].mxu0
        %v1341 = vadd.f32 0.0, %v1340
        %v1342 = vpop.f32.mrb[0].mxu0
        %v1343 = vpop.f32.mrb[0].mxu0
        %v1344 = vadd.f32 0.0, %v1343
        %v1345 = vpop.f32.mrb[0].mxu0
        %1346 = vmatprep.mubr.bf16.mxu0 0
        %1347 = vmatmul.mubr.bf16.gmra.mrb[0].mxu0 %v1194
        %v1348 = vpop.f32.mrb[0].mxu0
        %v1349 = vadd.f32 0.0, %v1348
        %v1350 = vpop.f32.mrb[0].mxu0
        %v1351 = vpop.f32.mrb[0].mxu0
        %v1352 = vadd.f32 0.0, %v1351
        %v1353 = vpop.f32.mrb[0].mxu0
        %1354 = vmatprep.mubr.bf16.mxu0 0
        %1355 = vmatmul.mubr.bf16.gmra.mrb[0].mxu0 %v1197
        %v1356 = vpop.f32.mrb[0].mxu0
        %v1357 = vadd.f32 0.0, %v1356
        %v1358 = vpop.f32.mrb[0].mxu0
        %v1359 = vpop.f32.mrb[0].mxu0
        %v1360 = vadd.f32 0.0, %v1359
        %v1361 = vpop.f32.mrb[0].mxu0
        %1362 = vdwg.mxu0
        %v1363 = vadd.f32 %v988, %v1237
        %v1364 = vadd.f32 %v989, %v1240
        %v1365 = vadd.f32 %v990, %v1245
        %v1366 = vadd.f32 %v991, %v1248
        %v1367 = vadd.f32 %v992, %v1253
        %v1368 = vadd.f32 %v993, %v1256
        %v1369 = vadd.f32 %v994, %v1261
        %v1370 = vadd.f32 %v995, %v1264
        %v1371 = vadd.f32 %v996, %v1269
        %v1372 = vadd.f32 %v997, %v1272
        %v1373 = vadd.f32 %v998, %v1277
        %v1374 = vadd.f32 %v999, %v1280
        %v1375 = vadd.f32 %v1000, %v1285
        %v1376 = vadd.f32 %v1001, %v1288
        %v1377 = vadd.f32 %v1002, %v1293
        %v1378 = vadd.f32 %v1003, %v1296
        %v1379 = vadd.f32 %v1004, %v1301
        %v1380 = vadd.f32 %v1005, %v1304
        %v1381 = vadd.f32 %v1006, %v1309
        %v1382 = vadd.f32 %v1007, %v1312
        %v1383 = vadd.f32 %v1008, %v1317
        %v1384 = vadd.f32 %v1009, %v1320
        %v1385 = vadd.f32 %v1010, %v1325
        %v1386 = vadd.f32 %v1011, %v1328
        %v1387 = vadd.f32 %v1012, %v1333
        %v1388 = vadd.f32 %v1013, %v1336
        %v1389 = vadd.f32 %v1014, %v1341
        %v1390 = vadd.f32 %v1015, %v1344
        %v1391 = vadd.f32 %v1016, %v1349
        %v1392 = vadd.f32 %v1017, %v1352
        %v1393 = vadd.f32 %v1018, %v1357
        %v1394 = vadd.f32 %v1019, %v1360
        %1395 = vst.msk [vmem:[#allocation2] sm:$0xff] %vm468, %v1363
        %1396 = vst.msk [vmem:[#allocation2 + $0x8] sm:$0xff] %vm468, %v1364
        %1397 = vst.msk [vmem:[#allocation2 + $0x10] sm:$0xff] %vm468, %v1365
        %1398 = vst.msk [vmem:[#allocation2 + $0x18] sm:$0xff] %vm468, %v1366
        %1399 = vst.msk [vmem:[#allocation2 + $0x20] sm:$0xff] %vm468, %v1367
        %1400 = vst.msk [vmem:[#allocation2 + $0x28] sm:$0xff] %vm468, %v1368
        %1401 = vst.msk [vmem:[#allocation2 + $0x30] sm:$0xff] %vm468, %v1369
        %1402 = vst.msk [vmem:[#allocation2 + $0x38] sm:$0xff] %vm468, %v1370
        %1403 = vst.msk [vmem:[#allocation2 + $0x40] sm:$0xff] %vm468, %v1371
        %1404 = vst.msk [vmem:[#allocation2 + $0x48] sm:$0xff] %vm468, %v1372
        %1405 = vst.msk [vmem:[#allocation2 + $0x50] sm:$0xff] %vm468, %v1373
        %1406 = vst.msk [vmem:[#allocation2 + $0x58] sm:$0xff] %vm468, %v1374
        %1407 = vst.msk [vmem:[#allocation2 + $0x60] sm:$0xff] %vm468, %v1375
        %1408 = vst.msk [vmem:[#allocation2 + $0x68] sm:$0xff] %vm468, %v1376
        %1409 = vst.msk [vmem:[#allocation2 + $0x70] sm:$0xff] %vm468, %v1377
        %1410 = vst.msk [vmem:[#allocation2 + $0x78] sm:$0xff] %vm468, %v1378
        %1411 = vst.msk [vmem:[#allocation2 + $0x80] sm:$0xff] %vm468, %v1379
        %1412 = vst.msk [vmem:[#allocation2 + $0x88] sm:$0xff] %vm468, %v1380
        %1413 = vst.msk [vmem:[#allocation2 + $0x90] sm:$0xff] %vm468, %v1381
        %1414 = vst.msk [vmem:[#allocation2 + $0x98] sm:$0xff] %vm468, %v1382
        %1415 = vst.msk [vmem:[#allocation2 + $0xa0] sm:$0xff] %vm468, %v1383
        %1416 = vst.msk [vmem:[#allocation2 + $0xa8] sm:$0xff] %vm468, %v1384
        %1417 = vst.msk [vmem:[#allocation2 + $0xb0] sm:$0xff] %vm468, %v1385
        %1418 = vst.msk [vmem:[#allocation2 + $0xb8] sm:$0xff] %vm468, %v1386
        %1419 = vst.msk [vmem:[#allocation2 + $0xc0] sm:$0xff] %vm468, %v1387
        %1420 = vst.msk [vmem:[#allocation2 + $0xc8] sm:$0xff] %vm468, %v1388
        %1421 = vst.msk [vmem:[#allocation2 + $0xd0] sm:$0xff] %vm468, %v1389
        %1422 = vst.msk [vmem:[#allocation2 + $0xd8] sm:$0xff] %vm468, %v1390
        %1423 = vst.msk [vmem:[#allocation2 + $0xe0] sm:$0xff] %vm468, %v1391
        %1424 = vst.msk [vmem:[#allocation2 + $0xe8] sm:$0xff] %vm468, %v1392
        %1425 = vst.msk [vmem:[#allocation2 + $0xf0] sm:$0xff] %vm468, %v1393
        %1426 = vst.msk [vmem:[#allocation2 + $0xf8] sm:$0xff] %vm468, %v1394
        %v1427 = vld [vmem:[#allocation2] sm:$0xff]
        %v1428 = vld [vmem:[#allocation2 + $0x8] sm:$0xff]
        %v1429 = vld [vmem:[#allocation2 + $0x10] sm:$0xff]
        %v1430 = vld [vmem:[#allocation2 + $0x18] sm:$0xff]
        %v1431 = vld [vmem:[#allocation2 + $0x20] sm:$0xff]
        %v1432 = vld [vmem:[#allocation2 + $0x28] sm:$0xff]
        %v1433 = vld [vmem:[#allocation2 + $0x30] sm:$0xff]
        %v1434 = vld [vmem:[#allocation2 + $0x38] sm:$0xff]
        %v1435 = vld [vmem:[#allocation2 + $0x40] sm:$0xff]
        %v1436 = vld [vmem:[#allocation2 + $0x48] sm:$0xff]
        %v1437 = vld [vmem:[#allocation2 + $0x50] sm:$0xff]
        %v1438 = vld [vmem:[#allocation2 + $0x58] sm:$0xff]
        %v1439 = vld [vmem:[#allocation2 + $0x60] sm:$0xff]
        %v1440 = vld [vmem:[#allocation2 + $0x68] sm:$0xff]
        %v1441 = vld [vmem:[#allocation2 + $0x70] sm:$0xff]
        %v1442 = vld [vmem:[#allocation2 + $0x78] sm:$0xff]
        %v1443 = vld [vmem:[#allocation2 + $0x80] sm:$0xff]
        %v1444 = vld [vmem:[#allocation2 + $0x88] sm:$0xff]
        %v1445 = vld [vmem:[#allocation2 + $0x90] sm:$0xff]
        %v1446 = vld [vmem:[#allocation2 + $0x98] sm:$0xff]
        %v1447 = vld [vmem:[#allocation2 + $0xa0] sm:$0xff]
        %v1448 = vld [vmem:[#allocation2 + $0xa8] sm:$0xff]
        %v1449 = vld [vmem:[#allocation2 + $0xb0] sm:$0xff]
        %v1450 = vld [vmem:[#allocation2 + $0xb8] sm:$0xff]
        %v1451 = vld [vmem:[#allocation2 + $0xc0] sm:$0xff]
        %v1452 = vld [vmem:[#allocation2 + $0xc8] sm:$0xff]
        %v1453 = vld [vmem:[#allocation2 + $0xd0] sm:$0xff]
        %v1454 = vld [vmem:[#allocation2 + $0xd8] sm:$0xff]
        %v1455 = vld [vmem:[#allocation2 + $0xe0] sm:$0xff]
        %v1456 = vld [vmem:[#allocation2 + $0xe8] sm:$0xff]
        %v1457 = vld [vmem:[#allocation2 + $0xf0] sm:$0xff]
        %v1458 = vld [vmem:[#allocation2 + $0xf8] sm:$0xff]
        %v1459 = vpack.c.bf16 %v232, %v231
        %s1460 = scalar_lea.vmem %s1, 6
        %v1461 = vld [vmem:[%s1460] sm:$0x3]
        %v1463 = vsel %vm254, %v1459, 0
        %v1466 = vsel %vm303, %v1461, 0
        %1468 = vmatprep.subr.bf16.mxu0 0
        %1469 = vmatpush1.bf16.msra.mxu0 %v1466
        %1470 = vmatprep.subr.bf16.mxu0 0
        %1471 = vmatpush1.bf16.msra.mxu0 0
        %1472 = vmatprep.subr.bf16.mxu0 0
        %1473 = vmatpush1.bf16.msra.mxu0 0
        %1474 = vmatprep.subr.bf16.mxu0 0
        %1475 = vmatpush1.bf16.msra.mxu0 0
        %1476 = vmatprep.subr.bf16.mxu0 0
        %1477 = vmatpush1.bf16.msra.mxu0 0
        %1478 = vmatprep.subr.bf16.mxu0 0
        %1479 = vmatpush1.bf16.msra.mxu0 0
        %1480 = vmatprep.subr.bf16.mxu0 0
        %1481 = vmatpush1.bf16.msra.mxu0 0
        %1482 = vmatprep.subr.bf16.mxu0 0
        %1483 = vmatpush1.bf16.msra.mxu0 0
        %1484 = vmatprep.subr.bf16.mxu0 0
        %1485 = vmatpush1.bf16.msra.mxu0 0
        %1486 = vmatprep.subr.bf16.mxu0 0
        %1487 = vmatpush1.bf16.msra.mxu0 0
        %1488 = vmatprep.subr.bf16.mxu0 0
        %1489 = vmatpush1.bf16.msra.mxu0 0
        %1490 = vmatprep.subr.bf16.mxu0 0
        %1491 = vmatpush1.bf16.msra.mxu0 0
        %1492 = vmatprep.subr.bf16.mxu0 0
        %1493 = vmatpush1.bf16.msra.mxu0 0
        %1494 = vmatprep.subr.bf16.mxu0 0
        %1495 = vmatpush1.bf16.msra.mxu0 0
        %1496 = vmatprep.subr.bf16.mxu0 0
        %1497 = vmatpush1.bf16.msra.mxu0 0
        %1498 = vmatprep.subr.bf16.mxu0 0
        %1499 = vmatpush1.bf16.msra.mxu0 0
        %1500 = vmatprep.mubr.bf16.mxu0 0
        %1501 = vmatmul.mubr.bf16.gmra.mrb[0].mxu0 %v259
        %v1502 = vpop.f32.mrb[0].mxu0
        %v1503 = vadd.f32 0.0, %v1502
        %v1504 = vpop.f32.mrb[0].mxu0
        %v1505 = vpop.f32.mrb[0].mxu0
        %v1506 = vadd.f32 0.0, %v1505
        %v1507 = vpop.f32.mrb[0].mxu0
        %1508 = vmatprep.mubr.bf16.mxu0 0
        %1509 = vmatmul.mubr.bf16.gmra.mrb[0].mxu0 %v262
        %v1510 = vpop.f32.mrb[0].mxu0
        %v1511 = vadd.f32 0.0, %v1510
        %v1512 = vpop.f32.mrb[0].mxu0
        %v1513 = vpop.f32.mrb[0].mxu0
        %v1514 = vadd.f32 0.0, %v1513
        %v1515 = vpop.f32.mrb[0].mxu0
        %1516 = vmatprep.mubr.bf16.mxu0 0
        %1517 = vmatmul.mubr.bf16.gmra.mrb[0].mxu0 %v265
        %v1518 = vpop.f32.mrb[0].mxu0
        %v1519 = vadd.f32 0.0, %v1518
        %v1520 = vpop.f32.mrb[0].mxu0
        %v1521 = vpop.f32.mrb[0].mxu0
        %v1522 = vadd.f32 0.0, %v1521
        %v1523 = vpop.f32.mrb[0].mxu0
        %1524 = vmatprep.mubr.bf16.mxu0 0
        %1525 = vmatmul.mubr.bf16.gmra.mrb[0].mxu0 %v268
        %v1526 = vpop.f32.mrb[0].mxu0
        %v1527 = vadd.f32 0.0, %v1526
        %v1528 = vpop.f32.mrb[0].mxu0
        %v1529 = vpop.f32.mrb[0].mxu0
        %v1530 = vadd.f32 0.0, %v1529
        %v1531 = vpop.f32.mrb[0].mxu0
        %1532 = vmatprep.mubr.bf16.mxu0 0
        %1533 = vmatmul.mubr.bf16.gmra.mrb[0].mxu0 %v271
        %v1534 = vpop.f32.mrb[0].mxu0
        %v1535 = vadd.f32 0.0, %v1534
        %v1536 = vpop.f32.mrb[0].mxu0
        %v1537 = vpop.f32.mrb[0].mxu0
        %v1538 = vadd.f32 0.0, %v1537
        %v1539 = vpop.f32.mrb[0].mxu0
        %1540 = vmatprep.mubr.bf16.mxu0 0
        %1541 = vmatmul.mubr.bf16.gmra.mrb[0].mxu0 %v274
        %v1542 = vpop.f32.mrb[0].mxu0
        %v1543 = vadd.f32 0.0, %v1542
        %v1544 = vpop.f32.mrb[0].mxu0
        %v1545 = vpop.f32.mrb[0].mxu0
        %v1546 = vadd.f32 0.0, %v1545
        %v1547 = vpop.f32.mrb[0].mxu0
        %1548 = vmatprep.mubr.bf16.mxu0 0
        %1549 = vmatmul.mubr.bf16.gmra.mrb[0].mxu0 %v277
        %v1550 = vpop.f32.mrb[0].mxu0
        %v1551 = vadd.f32 0.0, %v1550
        %v1552 = vpop.f32.mrb[0].mxu0
        %v1553 = vpop.f32.mrb[0].mxu0
        %v1554 = vadd.f32 0.0, %v1553
        %v1555 = vpop.f32.mrb[0].mxu0
        %1556 = vmatprep.mubr.bf16.mxu0 0
        %1557 = vmatmul.mubr.bf16.gmra.mrb[0].mxu0 %v280
        %v1558 = vpop.f32.mrb[0].mxu0
        %v1559 = vadd.f32 0.0, %v1558
        %v1560 = vpop.f32.mrb[0].mxu0
        %v1561 = vpop.f32.mrb[0].mxu0
        %v1562 = vadd.f32 0.0, %v1561
        %v1563 = vpop.f32.mrb[0].mxu0
        %1564 = vmatprep.mubr.bf16.mxu0 0
        %1565 = vmatmul.mubr.bf16.gmra.mrb[0].mxu0 %v283
        %v1566 = vpop.f32.mrb[0].mxu0
        %v1567 = vadd.f32 0.0, %v1566
        %v1568 = vpop.f32.mrb[0].mxu0
        %v1569 = vpop.f32.mrb[0].mxu0
        %v1570 = vadd.f32 0.0, %v1569
        %v1571 = vpop.f32.mrb[0].mxu0
        %1572 = vmatprep.mubr.bf16.mxu0 0
        %1573 = vmatmul.mubr.bf16.gmra.mrb[0].mxu0 %v286
        %v1574 = vpop.f32.mrb[0].mxu0
        %v1575 = vadd.f32 0.0, %v1574
        %v1576 = vpop.f32.mrb[0].mxu0
        %v1577 = vpop.f32.mrb[0].mxu0
        %v1578 = vadd.f32 0.0, %v1577
        %v1579 = vpop.f32.mrb[0].mxu0
        %1580 = vmatprep.mubr.bf16.mxu0 0
        %1581 = vmatmul.mubr.bf16.gmra.mrb[0].mxu0 %v289
        %v1582 = vpop.f32.mrb[0].mxu0
        %v1583 = vadd.f32 0.0, %v1582
        %v1584 = vpop.f32.mrb[0].mxu0
        %v1585 = vpop.f32.mrb[0].mxu0
        %v1586 = vadd.f32 0.0, %v1585
        %v1587 = vpop.f32.mrb[0].mxu0
        %1588 = vmatprep.mubr.bf16.mxu0 0
        %1589 = vmatmul.mubr.bf16.gmra.mrb[0].mxu0 %v292
        %v1590 = vpop.f32.mrb[0].mxu0
        %v1591 = vadd.f32 0.0, %v1590
        %v1592 = vpop.f32.mrb[0].mxu0
        %v1593 = vpop.f32.mrb[0].mxu0
        %v1594 = vadd.f32 0.0, %v1593
        %v1595 = vpop.f32.mrb[0].mxu0
        %1596 = vmatprep.mubr.bf16.mxu0 0
        %1597 = vmatmul.mubr.bf16.gmra.mrb[0].mxu0 %v295
        %v1598 = vpop.f32.mrb[0].mxu0
        %v1599 = vadd.f32 0.0, %v1598
        %v1600 = vpop.f32.mrb[0].mxu0
        %v1601 = vpop.f32.mrb[0].mxu0
        %v1602 = vadd.f32 0.0, %v1601
        %v1603 = vpop.f32.mrb[0].mxu0
        %1604 = vmatprep.mubr.bf16.mxu0 0
        %1605 = vmatmul.mubr.bf16.gmra.mrb[0].mxu0 %v298
        %v1606 = vpop.f32.mrb[0].mxu0
        %v1607 = vadd.f32 0.0, %v1606
        %v1608 = vpop.f32.mrb[0].mxu0
        %v1609 = vpop.f32.mrb[0].mxu0
        %v1610 = vadd.f32 0.0, %v1609
        %v1611 = vpop.f32.mrb[0].mxu0
        %1612 = vmatprep.mubr.bf16.mxu0 0
        %1613 = vmatmul.mubr.bf16.gmra.mrb[0].mxu0 %v301
        %v1614 = vpop.f32.mrb[0].mxu0
        %v1615 = vadd.f32 0.0, %v1614
        %v1616 = vpop.f32.mrb[0].mxu0
        %v1617 = vpop.f32.mrb[0].mxu0
        %v1618 = vadd.f32 0.0, %v1617
        %v1619 = vpop.f32.mrb[0].mxu0
        %1620 = vmatprep.mubr.bf16.mxu0 0
        %1621 = vmatmul.mubr.bf16.gmra.mrb[0].mxu0 %v1463
        %v1622 = vpop.f32.mrb[0].mxu0
        %v1623 = vadd.f32 0.0, %v1622
        %v1624 = vpop.f32.mrb[0].mxu0
        %v1625 = vpop.f32.mrb[0].mxu0
        %v1626 = vadd.f32 0.0, %v1625
        %v1627 = vpop.f32.mrb[0].mxu0
        %1628 = vdwg.mxu0
        %v1629 = vadd.f32 %v1427, %v1503
        %v1630 = vadd.f32 %v1428, %v1506
        %v1631 = vadd.f32 %v1429, %v1511
        %v1632 = vadd.f32 %v1430, %v1514
        %v1633 = vadd.f32 %v1431, %v1519
        %v1634 = vadd.f32 %v1432, %v1522
        %v1635 = vadd.f32 %v1433, %v1527
        %v1636 = vadd.f32 %v1434, %v1530
        %v1637 = vadd.f32 %v1435, %v1535
        %v1638 = vadd.f32 %v1436, %v1538
        %v1639 = vadd.f32 %v1437, %v1543
        %v1640 = vadd.f32 %v1438, %v1546
        %v1641 = vadd.f32 %v1439, %v1551
        %v1642 = vadd.f32 %v1440, %v1554
        %v1643 = vadd.f32 %v1441, %v1559
        %v1644 = vadd.f32 %v1442, %v1562
        %v1645 = vadd.f32 %v1443, %v1567
        %v1646 = vadd.f32 %v1444, %v1570
        %v1647 = vadd.f32 %v1445, %v1575
        %v1648 = vadd.f32 %v1446, %v1578
        %v1649 = vadd.f32 %v1447, %v1583
        %v1650 = vadd.f32 %v1448, %v1586
        %v1651 = vadd.f32 %v1449, %v1591
        %v1652 = vadd.f32 %v1450, %v1594
        %v1653 = vadd.f32 %v1451, %v1599
        %v1654 = vadd.f32 %v1452, %v1602
        %v1655 = vadd.f32 %v1453, %v1607
        %v1656 = vadd.f32 %v1454, %v1610
        %v1657 = vadd.f32 %v1455, %v1615
        %v1658 = vadd.f32 %v1456, %v1618
        %v1659 = vadd.f32 %v1457, %v1623
        %v1660 = vadd.f32 %v1458, %v1626
        %1661 = vst.msk [vmem:[#allocation2] sm:$0xff] %vm468, %v1629
        %1662 = vst.msk [vmem:[#allocation2 + $0x8] sm:$0xff] %vm468, %v1630
        %1663 = vst.msk [vmem:[#allocation2 + $0x10] sm:$0xff] %vm468, %v1631
        %1664 = vst.msk [vmem:[#allocation2 + $0x18] sm:$0xff] %vm468, %v1632
        %1665 = vst.msk [vmem:[#allocation2 + $0x20] sm:$0xff] %vm468, %v1633
        %1666 = vst.msk [vmem:[#allocation2 + $0x28] sm:$0xff] %vm468, %v1634
        %1667 = vst.msk [vmem:[#allocation2 + $0x30] sm:$0xff] %vm468, %v1635
        %1668 = vst.msk [vmem:[#allocation2 + $0x38] sm:$0xff] %vm468, %v1636
        %1669 = vst.msk [vmem:[#allocation2 + $0x40] sm:$0xff] %vm468, %v1637
        %1670 = vst.msk [vmem:[#allocation2 + $0x48] sm:$0xff] %vm468, %v1638
        %1671 = vst.msk [vmem:[#allocation2 + $0x50] sm:$0xff] %vm468, %v1639
        %1672 = vst.msk [vmem:[#allocation2 + $0x58] sm:$0xff] %vm468, %v1640
        %1673 = vst.msk [vmem:[#allocation2 + $0x60] sm:$0xff] %vm468, %v1641
        %1674 = vst.msk [vmem:[#allocation2 + $0x68] sm:$0xff] %vm468, %v1642
        %1675 = vst.msk [vmem:[#allocation2 + $0x70] sm:$0xff] %vm468, %v1643
        %1676 = vst.msk [vmem:[#allocation2 + $0x78] sm:$0xff] %vm468, %v1644
        %1677 = vst.msk [vmem:[#allocation2 + $0x80] sm:$0xff] %vm468, %v1645
        %1678 = vst.msk [vmem:[#allocation2 + $0x88] sm:$0xff] %vm468, %v1646
        %1679 = vst.msk [vmem:[#allocation2 + $0x90] sm:$0xff] %vm468, %v1647
        %1680 = vst.msk [vmem:[#allocation2 + $0x98] sm:$0xff] %vm468, %v1648
        %1681 = vst.msk [vmem:[#allocation2 + $0xa0] sm:$0xff] %vm468, %v1649
        %1682 = vst.msk [vmem:[#allocation2 + $0xa8] sm:$0xff] %vm468, %v1650
        %1683 = vst.msk [vmem:[#allocation2 + $0xb0] sm:$0xff] %vm468, %v1651
        %1684 = vst.msk [vmem:[#allocation2 + $0xb8] sm:$0xff] %vm468, %v1652
        %1685 = vst.msk [vmem:[#allocation2 + $0xc0] sm:$0xff] %vm468, %v1653
        %1686 = vst.msk [vmem:[#allocation2 + $0xc8] sm:$0xff] %vm468, %v1654
        %1687 = vst.msk [vmem:[#allocation2 + $0xd0] sm:$0xff] %vm468, %v1655
        %1688 = vst.msk [vmem:[#allocation2 + $0xd8] sm:$0xff] %vm468, %v1656
        %1689 = vst.msk [vmem:[#allocation2 + $0xe0] sm:$0xff] %vm468, %v1657
        %1690 = vst.msk [vmem:[#allocation2 + $0xe8] sm:$0xff] %vm468, %v1658
        %1691 = vst.msk [vmem:[#allocation2 + $0xf0] sm:$0xff] %vm468, %v1659
        %1692 = vst.msk [vmem:[#allocation2 + $0xf8] sm:$0xff] %vm468, %v1660
        %v1693 = vld [vmem:[#allocation2] sm:$0xff]
        %v1694 = vld [vmem:[#allocation2 + $0x8] sm:$0xff]
        %v1695 = vld [vmem:[#allocation2 + $0x10] sm:$0xff]
        %v1696 = vld [vmem:[#allocation2 + $0x18] sm:$0xff]
        %v1697 = vld [vmem:[#allocation2 + $0x20] sm:$0xff]
        %v1698 = vld [vmem:[#allocation2 + $0x28] sm:$0xff]
        %v1699 = vld [vmem:[#allocation2 + $0x30] sm:$0xff]
        %v1700 = vld [vmem:[#allocation2 + $0x38] sm:$0xff]
        %v1701 = vld [vmem:[#allocation2 + $0x40] sm:$0xff]
        %v1702 = vld [vmem:[#allocation2 + $0x48] sm:$0xff]
        %v1703 = vld [vmem:[#allocation2 + $0x50] sm:$0xff]
        %v1704 = vld [vmem:[#allocation2 + $0x58] sm:$0xff]
        %v1705 = vld [vmem:[#allocation2 + $0x60] sm:$0xff]
        %v1706 = vld [vmem:[#allocation2 + $0x68] sm:$0xff]
        %v1707 = vld [vmem:[#allocation2 + $0x70] sm:$0xff]
        %v1708 = vld [vmem:[#allocation2 + $0x78] sm:$0xff]
        %v1709 = vld [vmem:[#allocation2 + $0x80] sm:$0xff]
        %v1710 = vld [vmem:[#allocation2 + $0x88] sm:$0xff]
        %v1711 = vld [vmem:[#allocation2 + $0x90] sm:$0xff]
        %v1712 = vld [vmem:[#allocation2 + $0x98] sm:$0xff]
        %v1713 = vld [vmem:[#allocation2 + $0xa0] sm:$0xff]
        %v1714 = vld [vmem:[#allocation2 + $0xa8] sm:$0xff]
        %v1715 = vld [vmem:[#allocation2 + $0xb0] sm:$0xff]
        %v1716 = vld [vmem:[#allocation2 + $0xb8] sm:$0xff]
        %v1717 = vld [vmem:[#allocation2 + $0xc0] sm:$0xff]
        %v1718 = vld [vmem:[#allocation2 + $0xc8] sm:$0xff]
        %v1719 = vld [vmem:[#allocation2 + $0xd0] sm:$0xff]
        %v1720 = vld [vmem:[#allocation2 + $0xd8] sm:$0xff]
        %v1721 = vld [vmem:[#allocation2 + $0xe0] sm:$0xff]
        %v1722 = vld [vmem:[#allocation2 + $0xe8] sm:$0xff]
        %v1723 = vld [vmem:[#allocation2 + $0xf0] sm:$0xff]
        %v1724 = vld [vmem:[#allocation2 + $0xf8] sm:$0xff]
        %v1728 = vrot.slane %v231, 1
        %v1729 = vrot.slane %v232, 1
        %v1730 = vsel %vm581, %v1728, %v1729
        %v1731 = vrot.slane %v233, 1
        %v1732 = vsel %vm581, %v1729, %v1731
        %v1735 = vpack.c.bf16 %v1732, %v1730
        %s1736 = scalar_lea.vmem %s1, 8
        %v1737 = vld [vmem:[%s1736] sm:$0x3]
        %v1739 = vsel %vm254, %v1735, 0
        %v1742 = vsel %vm303, %v1737, 0
        %1744 = vmatprep.subr.bf16.mxu0 0
        %1745 = vmatpush1.bf16.msra.mxu0 %v1742
        %1746 = vmatprep.subr.bf16.mxu0 0
        %1747 = vmatpush1.bf16.msra.mxu0 0
        %1748 = vmatprep.subr.bf16.mxu0 0
        %1749 = vmatpush1.bf16.msra.mxu0 0
        %1750 = vmatprep.subr.bf16.mxu0 0
        %1751 = vmatpush1.bf16.msra.mxu0 0
        %1752 = vmatprep.subr.bf16.mxu0 0
        %1753 = vmatpush1.bf16.msra.mxu0 0
        %1754 = vmatprep.subr.bf16.mxu0 0
        %1755 = vmatpush1.bf16.msra.mxu0 0
        %1756 = vmatprep.subr.bf16.mxu0 0
        %1757 = vmatpush1.bf16.msra.mxu0 0
        %1758 = vmatprep.subr.bf16.mxu0 0
        %1759 = vmatpush1.bf16.msra.mxu0 0
        %1760 = vmatprep.subr.bf16.mxu0 0
        %1761 = vmatpush1.bf16.msra.mxu0 0
        %1762 = vmatprep.subr.bf16.mxu0 0
        %1763 = vmatpush1.bf16.msra.mxu0 0
        %1764 = vmatprep.subr.bf16.mxu0 0
        %1765 = vmatpush1.bf16.msra.mxu0 0
        %1766 = vmatprep.subr.bf16.mxu0 0
        %1767 = vmatpush1.bf16.msra.mxu0 0
        %1768 = vmatprep.subr.bf16.mxu0 0
        %1769 = vmatpush1.bf16.msra.mxu0 0
        %1770 = vmatprep.subr.bf16.mxu0 0
        %1771 = vmatpush1.bf16.msra.mxu0 0
        %1772 = vmatprep.subr.bf16.mxu0 0
        %1773 = vmatpush1.bf16.msra.mxu0 0
        %1774 = vmatprep.subr.bf16.mxu0 0
        %1775 = vmatpush1.bf16.msra.mxu0 0
        %1776 = vmatprep.mubr.bf16.mxu0 0
        %1777 = vmatmul.mubr.bf16.gmra.mrb[0].mxu0 %v716
        %v1778 = vpop.f32.mrb[0].mxu0
        %v1779 = vadd.f32 0.0, %v1778
        %v1780 = vpop.f32.mrb[0].mxu0
        %v1781 = vpop.f32.mrb[0].mxu0
        %v1782 = vadd.f32 0.0, %v1781
        %v1783 = vpop.f32.mrb[0].mxu0
        %1784 = vmatprep.mubr.bf16.mxu0 0
        %1785 = vmatmul.mubr.bf16.gmra.mrb[0].mxu0 %v719
        %v1786 = vpop.f32.mrb[0].mxu0
        %v1787 = vadd.f32 0.0, %v1786
        %v1788 = vpop.f32.mrb[0].mxu0
        %v1789 = vpop.f32.mrb[0].mxu0
        %v1790 = vadd.f32 0.0, %v1789
        %v1791 = vpop.f32.mrb[0].mxu0
        %1792 = vmatprep.mubr.bf16.mxu0 0
        %1793 = vmatmul.mubr.bf16.gmra.mrb[0].mxu0 %v722
        %v1794 = vpop.f32.mrb[0].mxu0
        %v1795 = vadd.f32 0.0, %v1794
        %v1796 = vpop.f32.mrb[0].mxu0
        %v1797 = vpop.f32.mrb[0].mxu0
        %v1798 = vadd.f32 0.0, %v1797
        %v1799 = vpop.f32.mrb[0].mxu0
        %1800 = vmatprep.mubr.bf16.mxu0 0
        %1801 = vmatmul.mubr.bf16.gmra.mrb[0].mxu0 %v725
        %v1802 = vpop.f32.mrb[0].mxu0
        %v1803 = vadd.f32 0.0, %v1802
        %v1804 = vpop.f32.mrb[0].mxu0
        %v1805 = vpop.f32.mrb[0].mxu0
        %v1806 = vadd.f32 0.0, %v1805
        %v1807 = vpop.f32.mrb[0].mxu0
        %1808 = vmatprep.mubr.bf16.mxu0 0
        %1809 = vmatmul.mubr.bf16.gmra.mrb[0].mxu0 %v728
        %v1810 = vpop.f32.mrb[0].mxu0
        %v1811 = vadd.f32 0.0, %v1810
        %v1812 = vpop.f32.mrb[0].mxu0
        %v1813 = vpop.f32.mrb[0].mxu0
        %v1814 = vadd.f32 0.0, %v1813
        %v1815 = vpop.f32.mrb[0].mxu0
        %1816 = vmatprep.mubr.bf16.mxu0 0
        %1817 = vmatmul.mubr.bf16.gmra.mrb[0].mxu0 %v731
        %v1818 = vpop.f32.mrb[0].mxu0
        %v1819 = vadd.f32 0.0, %v1818
        %v1820 = vpop.f32.mrb[0].mxu0
        %v1821 = vpop.f32.mrb[0].mxu0
        %v1822 = vadd.f32 0.0, %v1821
        %v1823 = vpop.f32.mrb[0].mxu0
        %1824 = vmatprep.mubr.bf16.mxu0 0
        %1825 = vmatmul.mubr.bf16.gmra.mrb[0].mxu0 %v734
        %v1826 = vpop.f32.mrb[0].mxu0
        %v1827 = vadd.f32 0.0, %v1826
        %v1828 = vpop.f32.mrb[0].mxu0
        %v1829 = vpop.f32.mrb[0].mxu0
        %v1830 = vadd.f32 0.0, %v1829
        %v1831 = vpop.f32.mrb[0].mxu0
        %1832 = vmatprep.mubr.bf16.mxu0 0
        %1833 = vmatmul.mubr.bf16.gmra.mrb[0].mxu0 %v737
        %v1834 = vpop.f32.mrb[0].mxu0
        %v1835 = vadd.f32 0.0, %v1834
        %v1836 = vpop.f32.mrb[0].mxu0
        %v1837 = vpop.f32.mrb[0].mxu0
        %v1838 = vadd.f32 0.0, %v1837
        %v1839 = vpop.f32.mrb[0].mxu0
        %1840 = vmatprep.mubr.bf16.mxu0 0
        %1841 = vmatmul.mubr.bf16.gmra.mrb[0].mxu0 %v740
        %v1842 = vpop.f32.mrb[0].mxu0
        %v1843 = vadd.f32 0.0, %v1842
        %v1844 = vpop.f32.mrb[0].mxu0
        %v1845 = vpop.f32.mrb[0].mxu0
        %v1846 = vadd.f32 0.0, %v1845
        %v1847 = vpop.f32.mrb[0].mxu0
        %1848 = vmatprep.mubr.bf16.mxu0 0
        %1849 = vmatmul.mubr.bf16.gmra.mrb[0].mxu0 %v743
        %v1850 = vpop.f32.mrb[0].mxu0
        %v1851 = vadd.f32 0.0, %v1850
        %v1852 = vpop.f32.mrb[0].mxu0
        %v1853 = vpop.f32.mrb[0].mxu0
        %v1854 = vadd.f32 0.0, %v1853
        %v1855 = vpop.f32.mrb[0].mxu0
        %1856 = vmatprep.mubr.bf16.mxu0 0
        %1857 = vmatmul.mubr.bf16.gmra.mrb[0].mxu0 %v746
        %v1858 = vpop.f32.mrb[0].mxu0
        %v1859 = vadd.f32 0.0, %v1858
        %v1860 = vpop.f32.mrb[0].mxu0
        %v1861 = vpop.f32.mrb[0].mxu0
        %v1862 = vadd.f32 0.0, %v1861
        %v1863 = vpop.f32.mrb[0].mxu0
        %1864 = vmatprep.mubr.bf16.mxu0 0
        %1865 = vmatmul.mubr.bf16.gmra.mrb[0].mxu0 %v749
        %v1866 = vpop.f32.mrb[0].mxu0
        %v1867 = vadd.f32 0.0, %v1866
        %v1868 = vpop.f32.mrb[0].mxu0
        %v1869 = vpop.f32.mrb[0].mxu0
        %v1870 = vadd.f32 0.0, %v1869
        %v1871 = vpop.f32.mrb[0].mxu0
        %1872 = vmatprep.mubr.bf16.mxu0 0
        %1873 = vmatmul.mubr.bf16.gmra.mrb[0].mxu0 %v752
        %v1874 = vpop.f32.mrb[0].mxu0
        %v1875 = vadd.f32 0.0, %v1874
        %v1876 = vpop.f32.mrb[0].mxu0
        %v1877 = vpop.f32.mrb[0].mxu0
        %v1878 = vadd.f32 0.0, %v1877
        %v1879 = vpop.f32.mrb[0].mxu0
        %1880 = vmatprep.mubr.bf16.mxu0 0
        %1881 = vmatmul.mubr.bf16.gmra.mrb[0].mxu0 %v755
        %v1882 = vpop.f32.mrb[0].mxu0
        %v1883 = vadd.f32 0.0, %v1882
        %v1884 = vpop.f32.mrb[0].mxu0
        %v1885 = vpop.f32.mrb[0].mxu0
        %v1886 = vadd.f32 0.0, %v1885
        %v1887 = vpop.f32.mrb[0].mxu0
        %1888 = vmatprep.mubr.bf16.mxu0 0
        %1889 = vmatmul.mubr.bf16.gmra.mrb[0].mxu0 %v758
        %v1890 = vpop.f32.mrb[0].mxu0
        %v1891 = vadd.f32 0.0, %v1890
        %v1892 = vpop.f32.mrb[0].mxu0
        %v1893 = vpop.f32.mrb[0].mxu0
        %v1894 = vadd.f32 0.0, %v1893
        %v1895 = vpop.f32.mrb[0].mxu0
        %1896 = vmatprep.mubr.bf16.mxu0 0
        %1897 = vmatmul.mubr.bf16.gmra.mrb[0].mxu0 %v1739
        %v1898 = vpop.f32.mrb[0].mxu0
        %v1899 = vadd.f32 0.0, %v1898
        %v1900 = vpop.f32.mrb[0].mxu0
        %v1901 = vpop.f32.mrb[0].mxu0
        %v1902 = vadd.f32 0.0, %v1901
        %v1903 = vpop.f32.mrb[0].mxu0
        %1904 = vdwg.mxu0
        %v1905 = vadd.f32 %v1693, %v1779
        %v1906 = vadd.f32 %v1694, %v1782
        %v1907 = vadd.f32 %v1695, %v1787
        %v1908 = vadd.f32 %v1696, %v1790
        %v1909 = vadd.f32 %v1697, %v1795
        %v1910 = vadd.f32 %v1698, %v1798
        %v1911 = vadd.f32 %v1699, %v1803
        %v1912 = vadd.f32 %v1700, %v1806
        %v1913 = vadd.f32 %v1701, %v1811
        %v1914 = vadd.f32 %v1702, %v1814
        %v1915 = vadd.f32 %v1703, %v1819
        %v1916 = vadd.f32 %v1704, %v1822
        %v1917 = vadd.f32 %v1705, %v1827
        %v1918 = vadd.f32 %v1706, %v1830
        %v1919 = vadd.f32 %v1707, %v1835
        %v1920 = vadd.f32 %v1708, %v1838
        %v1921 = vadd.f32 %v1709, %v1843
        %v1922 = vadd.f32 %v1710, %v1846
        %v1923 = vadd.f32 %v1711, %v1851
        %v1924 = vadd.f32 %v1712, %v1854
        %v1925 = vadd.f32 %v1713, %v1859
        %v1926 = vadd.f32 %v1714, %v1862
        %v1927 = vadd.f32 %v1715, %v1867
        %v1928 = vadd.f32 %v1716, %v1870
        %v1929 = vadd.f32 %v1717, %v1875
        %v1930 = vadd.f32 %v1718, %v1878
        %v1931 = vadd.f32 %v1719, %v1883
        %v1932 = vadd.f32 %v1720, %v1886
        %v1933 = vadd.f32 %v1721, %v1891
        %v1934 = vadd.f32 %v1722, %v1894
        %v1935 = vadd.f32 %v1723, %v1899
        %v1936 = vadd.f32 %v1724, %v1902
        %1937 = vst.msk [vmem:[#allocation2] sm:$0xff] %vm468, %v1905
        %1938 = vst.msk [vmem:[#allocation2 + $0x8] sm:$0xff] %vm468, %v1906
        %1939 = vst.msk [vmem:[#allocation2 + $0x10] sm:$0xff] %vm468, %v1907
        %1940 = vst.msk [vmem:[#allocation2 + $0x18] sm:$0xff] %vm468, %v1908
        %1941 = vst.msk [vmem:[#allocation2 + $0x20] sm:$0xff] %vm468, %v1909
        %1942 = vst.msk [vmem:[#allocation2 + $0x28] sm:$0xff] %vm468, %v1910
        %1943 = vst.msk [vmem:[#allocation2 + $0x30] sm:$0xff] %vm468, %v1911
        %1944 = vst.msk [vmem:[#allocation2 + $0x38] sm:$0xff] %vm468, %v1912
        %1945 = vst.msk [vmem:[#allocation2 + $0x40] sm:$0xff] %vm468, %v1913
        %1946 = vst.msk [vmem:[#allocation2 + $0x48] sm:$0xff] %vm468, %v1914
        %1947 = vst.msk [vmem:[#allocation2 + $0x50] sm:$0xff] %vm468, %v1915
        %1948 = vst.msk [vmem:[#allocation2 + $0x58] sm:$0xff] %vm468, %v1916
        %1949 = vst.msk [vmem:[#allocation2 + $0x60] sm:$0xff] %vm468, %v1917
        %1950 = vst.msk [vmem:[#allocation2 + $0x68] sm:$0xff] %vm468, %v1918
        %1951 = vst.msk [vmem:[#allocation2 + $0x70] sm:$0xff] %vm468, %v1919
        %1952 = vst.msk [vmem:[#allocation2 + $0x78] sm:$0xff] %vm468, %v1920
        %1953 = vst.msk [vmem:[#allocation2 + $0x80] sm:$0xff] %vm468, %v1921
        %1954 = vst.msk [vmem:[#allocation2 + $0x88] sm:$0xff] %vm468, %v1922
        %1955 = vst.msk [vmem:[#allocation2 + $0x90] sm:$0xff] %vm468, %v1923
        %1956 = vst.msk [vmem:[#allocation2 + $0x98] sm:$0xff] %vm468, %v1924
        %1957 = vst.msk [vmem:[#allocation2 + $0xa0] sm:$0xff] %vm468, %v1925
        %1958 = vst.msk [vmem:[#allocation2 + $0xa8] sm:$0xff] %vm468, %v1926
        %1959 = vst.msk [vmem:[#allocation2 + $0xb0] sm:$0xff] %vm468, %v1927
        %1960 = vst.msk [vmem:[#allocation2 + $0xb8] sm:$0xff] %vm468, %v1928
        %1961 = vst.msk [vmem:[#allocation2 + $0xc0] sm:$0xff] %vm468, %v1929
        %1962 = vst.msk [vmem:[#allocation2 + $0xc8] sm:$0xff] %vm468, %v1930
        %1963 = vst.msk [vmem:[#allocation2 + $0xd0] sm:$0xff] %vm468, %v1931
        %1964 = vst.msk [vmem:[#allocation2 + $0xd8] sm:$0xff] %vm468, %v1932
        %1965 = vst.msk [vmem:[#allocation2 + $0xe0] sm:$0xff] %vm468, %v1933
        %1966 = vst.msk [vmem:[#allocation2 + $0xe8] sm:$0xff] %vm468, %v1934
        %1967 = vst.msk [vmem:[#allocation2 + $0xf0] sm:$0xff] %vm468, %v1935
        %1968 = vst.msk [vmem:[#allocation2 + $0xf8] sm:$0xff] %vm468, %v1936
        %v1969 = vld [vmem:[#allocation2] sm:$0xff]
        %v1970 = vld [vmem:[#allocation2 + $0x8] sm:$0xff]
        %v1971 = vld [vmem:[#allocation2 + $0x10] sm:$0xff]
        %v1972 = vld [vmem:[#allocation2 + $0x18] sm:$0xff]
        %v1973 = vld [vmem:[#allocation2 + $0x20] sm:$0xff]
        %v1974 = vld [vmem:[#allocation2 + $0x28] sm:$0xff]
        %v1975 = vld [vmem:[#allocation2 + $0x30] sm:$0xff]
        %v1976 = vld [vmem:[#allocation2 + $0x38] sm:$0xff]
        %v1977 = vld [vmem:[#allocation2 + $0x40] sm:$0xff]
        %v1978 = vld [vmem:[#allocation2 + $0x48] sm:$0xff]
        %v1979 = vld [vmem:[#allocation2 + $0x50] sm:$0xff]
        %v1980 = vld [vmem:[#allocation2 + $0x58] sm:$0xff]
        %v1981 = vld [vmem:[#allocation2 + $0x60] sm:$0xff]
        %v1982 = vld [vmem:[#allocation2 + $0x68] sm:$0xff]
        %v1983 = vld [vmem:[#allocation2 + $0x70] sm:$0xff]
        %v1984 = vld [vmem:[#allocation2 + $0x78] sm:$0xff]
        %v1985 = vld [vmem:[#allocation2 + $0x80] sm:$0xff]
        %v1986 = vld [vmem:[#allocation2 + $0x88] sm:$0xff]
        %v1987 = vld [vmem:[#allocation2 + $0x90] sm:$0xff]
        %v1988 = vld [vmem:[#allocation2 + $0x98] sm:$0xff]
        %v1989 = vld [vmem:[#allocation2 + $0xa0] sm:$0xff]
        %v1990 = vld [vmem:[#allocation2 + $0xa8] sm:$0xff]
        %v1991 = vld [vmem:[#allocation2 + $0xb0] sm:$0xff]
        %v1992 = vld [vmem:[#allocation2 + $0xb8] sm:$0xff]
        %v1993 = vld [vmem:[#allocation2 + $0xc0] sm:$0xff]
        %v1994 = vld [vmem:[#allocation2 + $0xc8] sm:$0xff]
        %v1995 = vld [vmem:[#allocation2 + $0xd0] sm:$0xff]
        %v1996 = vld [vmem:[#allocation2 + $0xd8] sm:$0xff]
        %v1997 = vld [vmem:[#allocation2 + $0xe0] sm:$0xff]
        %v1998 = vld [vmem:[#allocation2 + $0xe8] sm:$0xff]
        %v1999 = vld [vmem:[#allocation2 + $0xf0] sm:$0xff]
        %v2000 = vld [vmem:[#allocation2 + $0xf8] sm:$0xff]
        %v2001 = vrot.slane %v231, 2
        %v2002 = vrot.slane %v232, 2
        %v2003 = vsel %vm1020, %v2001, %v2002
        %v2004 = vrot.slane %v233, 2
        %v2005 = vsel %vm1020, %v2002, %v2004
        %v2008 = vpack.c.bf16 %v2005, %v2003
        %s2009 = scalar_lea.vmem %s1, 10
        %v2010 = vld [vmem:[%s2009] sm:$0x3]
        %v2012 = vsel %vm254, %v2008, 0
        %v2015 = vsel %vm303, %v2010, 0
        %2017 = vmatprep.subr.bf16.mxu0 0
        %2018 = vmatpush1.bf16.msra.mxu0 %v2015
        %2019 = vmatprep.subr.bf16.mxu0 0
        %2020 = vmatpush1.bf16.msra.mxu0 0
        %2021 = vmatprep.subr.bf16.mxu0 0
        %2022 = vmatpush1.bf16.msra.mxu0 0
        %2023 = vmatprep.subr.bf16.mxu0 0
        %2024 = vmatpush1.bf16.msra.mxu0 0
        %2025 = vmatprep.subr.bf16.mxu0 0
        %2026 = vmatpush1.bf16.msra.mxu0 0
        %2027 = vmatprep.subr.bf16.mxu0 0
        %2028 = vmatpush1.bf16.msra.mxu0 0
        %2029 = vmatprep.subr.bf16.mxu0 0
        %2030 = vmatpush1.bf16.msra.mxu0 0
        %2031 = vmatprep.subr.bf16.mxu0 0
        %2032 = vmatpush1.bf16.msra.mxu0 0
        %2033 = vmatprep.subr.bf16.mxu0 0
        %2034 = vmatpush1.bf16.msra.mxu0 0
        %2035 = vmatprep.subr.bf16.mxu0 0
        %2036 = vmatpush1.bf16.msra.mxu0 0
        %2037 = vmatprep.subr.bf16.mxu0 0
        %2038 = vmatpush1.bf16.msra.mxu0 0
        %2039 = vmatprep.subr.bf16.mxu0 0
        %2040 = vmatpush1.bf16.msra.mxu0 0
        %2041 = vmatprep.subr.bf16.mxu0 0
        %2042 = vmatpush1.bf16.msra.mxu0 0
        %2043 = vmatprep.subr.bf16.mxu0 0
        %2044 = vmatpush1.bf16.msra.mxu0 0
        %2045 = vmatprep.subr.bf16.mxu0 0
        %2046 = vmatpush1.bf16.msra.mxu0 0
        %2047 = vmatprep.subr.bf16.mxu0 0
        %2048 = vmatpush1.bf16.msra.mxu0 0
        %2049 = vmatprep.mubr.bf16.mxu0 0
        %2050 = vmatmul.mubr.bf16.gmra.mrb[0].mxu0 %v1155
        %v2051 = vpop.f32.mrb[0].mxu0
        %v2052 = vadd.f32 0.0, %v2051
        %v2053 = vpop.f32.mrb[0].mxu0
        %v2054 = vpop.f32.mrb[0].mxu0
        %v2055 = vadd.f32 0.0, %v2054
        %v2056 = vpop.f32.mrb[0].mxu0
        %2057 = vmatprep.mubr.bf16.mxu0 0
        %2058 = vmatmul.mubr.bf16.gmra.mrb[0].mxu0 %v1158
        %v2059 = vpop.f32.mrb[0].mxu0
        %v2060 = vadd.f32 0.0, %v2059
        %v2061 = vpop.f32.mrb[0].mxu0
        %v2062 = vpop.f32.mrb[0].mxu0
        %v2063 = vadd.f32 0.0, %v2062
        %v2064 = vpop.f32.mrb[0].mxu0
        %2065 = vmatprep.mubr.bf16.mxu0 0
        %2066 = vmatmul.mubr.bf16.gmra.mrb[0].mxu0 %v1161
        %v2067 = vpop.f32.mrb[0].mxu0
        %v2068 = vadd.f32 0.0, %v2067
        %v2069 = vpop.f32.mrb[0].mxu0
        %v2070 = vpop.f32.mrb[0].mxu0
        %v2071 = vadd.f32 0.0, %v2070
        %v2072 = vpop.f32.mrb[0].mxu0
        %2073 = vmatprep.mubr.bf16.mxu0 0
        %2074 = vmatmul.mubr.bf16.gmra.mrb[0].mxu0 %v1164
        %v2075 = vpop.f32.mrb[0].mxu0
        %v2076 = vadd.f32 0.0, %v2075
        %v2077 = vpop.f32.mrb[0].mxu0
        %v2078 = vpop.f32.mrb[0].mxu0
        %v2079 = vadd.f32 0.0, %v2078
        %v2080 = vpop.f32.mrb[0].mxu0
        %2081 = vmatprep.mubr.bf16.mxu0 0
        %2082 = vmatmul.mubr.bf16.gmra.mrb[0].mxu0 %v1167
        %v2083 = vpop.f32.mrb[0].mxu0
        %v2084 = vadd.f32 0.0, %v2083
        %v2085 = vpop.f32.mrb[0].mxu0
        %v2086 = vpop.f32.mrb[0].mxu0
        %v2087 = vadd.f32 0.0, %v2086
        %v2088 = vpop.f32.mrb[0].mxu0
        %2089 = vmatprep.mubr.bf16.mxu0 0
        %2090 = vmatmul.mubr.bf16.gmra.mrb[0].mxu0 %v1170
        %v2091 = vpop.f32.mrb[0].mxu0
        %v2092 = vadd.f32 0.0, %v2091
        %v2093 = vpop.f32.mrb[0].mxu0
        %v2094 = vpop.f32.mrb[0].mxu0
        %v2095 = vadd.f32 0.0, %v2094
        %v2096 = vpop.f32.mrb[0].mxu0
        %2097 = vmatprep.mubr.bf16.mxu0 0
        %2098 = vmatmul.mubr.bf16.gmra.mrb[0].mxu0 %v1173
        %v2099 = vpop.f32.mrb[0].mxu0
        %v2100 = vadd.f32 0.0, %v2099
        %v2101 = vpop.f32.mrb[0].mxu0
        %v2102 = vpop.f32.mrb[0].mxu0
        %v2103 = vadd.f32 0.0, %v2102
        %v2104 = vpop.f32.mrb[0].mxu0
        %2105 = vmatprep.mubr.bf16.mxu0 0
        %2106 = vmatmul.mubr.bf16.gmra.mrb[0].mxu0 %v1176
        %v2107 = vpop.f32.mrb[0].mxu0
        %v2108 = vadd.f32 0.0, %v2107
        %v2109 = vpop.f32.mrb[0].mxu0
        %v2110 = vpop.f32.mrb[0].mxu0
        %v2111 = vadd.f32 0.0, %v2110
        %v2112 = vpop.f32.mrb[0].mxu0
        %2113 = vmatprep.mubr.bf16.mxu0 0
        %2114 = vmatmul.mubr.bf16.gmra.mrb[0].mxu0 %v1179
        %v2115 = vpop.f32.mrb[0].mxu0
        %v2116 = vadd.f32 0.0, %v2115
        %v2117 = vpop.f32.mrb[0].mxu0
        %v2118 = vpop.f32.mrb[0].mxu0
        %v2119 = vadd.f32 0.0, %v2118
        %v2120 = vpop.f32.mrb[0].mxu0
        %2121 = vmatprep.mubr.bf16.mxu0 0
        %2122 = vmatmul.mubr.bf16.gmra.mrb[0].mxu0 %v1182
        %v2123 = vpop.f32.mrb[0].mxu0
        %v2124 = vadd.f32 0.0, %v2123
        %v2125 = vpop.f32.mrb[0].mxu0
        %v2126 = vpop.f32.mrb[0].mxu0
        %v2127 = vadd.f32 0.0, %v2126
        %v2128 = vpop.f32.mrb[0].mxu0
        %2129 = vmatprep.mubr.bf16.mxu0 0
        %2130 = vmatmul.mubr.bf16.gmra.mrb[0].mxu0 %v1185
        %v2131 = vpop.f32.mrb[0].mxu0
        %v2132 = vadd.f32 0.0, %v2131
        %v2133 = vpop.f32.mrb[0].mxu0
        %v2134 = vpop.f32.mrb[0].mxu0
        %v2135 = vadd.f32 0.0, %v2134
        %v2136 = vpop.f32.mrb[0].mxu0
        %2137 = vmatprep.mubr.bf16.mxu0 0
        %2138 = vmatmul.mubr.bf16.gmra.mrb[0].mxu0 %v1188
        %v2139 = vpop.f32.mrb[0].mxu0
        %v2140 = vadd.f32 0.0, %v2139
        %v2141 = vpop.f32.mrb[0].mxu0
        %v2142 = vpop.f32.mrb[0].mxu0
        %v2143 = vadd.f32 0.0, %v2142
        %v2144 = vpop.f32.mrb[0].mxu0
        %2145 = vmatprep.mubr.bf16.mxu0 0
        %2146 = vmatmul.mubr.bf16.gmra.mrb[0].mxu0 %v1191
        %v2147 = vpop.f32.mrb[0].mxu0
        %v2148 = vadd.f32 0.0, %v2147
        %v2149 = vpop.f32.mrb[0].mxu0
        %v2150 = vpop.f32.mrb[0].mxu0
        %v2151 = vadd.f32 0.0, %v2150
        %v2152 = vpop.f32.mrb[0].mxu0
        %2153 = vmatprep.mubr.bf16.mxu0 0
        %2154 = vmatmul.mubr.bf16.gmra.mrb[0].mxu0 %v1194
        %v2155 = vpop.f32.mrb[0].mxu0
        %v2156 = vadd.f32 0.0, %v2155
        %v2157 = vpop.f32.mrb[0].mxu0
        %v2158 = vpop.f32.mrb[0].mxu0
        %v2159 = vadd.f32 0.0, %v2158
        %v2160 = vpop.f32.mrb[0].mxu0
        %2161 = vmatprep.mubr.bf16.mxu0 0
        %2162 = vmatmul.mubr.bf16.gmra.mrb[0].mxu0 %v1197
        %v2163 = vpop.f32.mrb[0].mxu0
        %v2164 = vadd.f32 0.0, %v2163
        %v2165 = vpop.f32.mrb[0].mxu0
        %v2166 = vpop.f32.mrb[0].mxu0
        %v2167 = vadd.f32 0.0, %v2166
        %v2168 = vpop.f32.mrb[0].mxu0
        %2169 = vmatprep.mubr.bf16.mxu0 0
        %2170 = vmatmul.mubr.bf16.gmra.mrb[0].mxu0 %v2012
        %v2171 = vpop.f32.mrb[0].mxu0
        %v2172 = vadd.f32 0.0, %v2171
        %v2173 = vpop.f32.mrb[0].mxu0
        %v2174 = vpop.f32.mrb[0].mxu0
        %v2175 = vadd.f32 0.0, %v2174
        %v2176 = vpop.f32.mrb[0].mxu0
        %2177 = vdwg.mxu0
        %v2178 = vadd.f32 %v1969, %v2052
        %v2179 = vadd.f32 %v1970, %v2055
        %v2180 = vadd.f32 %v1971, %v2060
        %v2181 = vadd.f32 %v1972, %v2063
        %v2182 = vadd.f32 %v1973, %v2068
        %v2183 = vadd.f32 %v1974, %v2071
        %v2184 = vadd.f32 %v1975, %v2076
        %v2185 = vadd.f32 %v1976, %v2079
        %v2186 = vadd.f32 %v1977, %v2084
        %v2187 = vadd.f32 %v1978, %v2087
        %v2188 = vadd.f32 %v1979, %v2092
        %v2189 = vadd.f32 %v1980, %v2095
        %v2190 = vadd.f32 %v1981, %v2100
        %v2191 = vadd.f32 %v1982, %v2103
        %v2192 = vadd.f32 %v1983, %v2108
        %v2193 = vadd.f32 %v1984, %v2111
        %v2194 = vadd.f32 %v1985, %v2116
        %v2195 = vadd.f32 %v1986, %v2119
        %v2196 = vadd.f32 %v1987, %v2124
        %v2197 = vadd.f32 %v1988, %v2127
        %v2198 = vadd.f32 %v1989, %v2132
        %v2199 = vadd.f32 %v1990, %v2135
        %v2200 = vadd.f32 %v1991, %v2140
        %v2201 = vadd.f32 %v1992, %v2143
        %v2202 = vadd.f32 %v1993, %v2148
        %v2203 = vadd.f32 %v1994, %v2151
        %v2204 = vadd.f32 %v1995, %v2156
        %v2205 = vadd.f32 %v1996, %v2159
        %v2206 = vadd.f32 %v1997, %v2164
        %v2207 = vadd.f32 %v1998, %v2167
        %v2208 = vadd.f32 %v1999, %v2172
        %v2209 = vadd.f32 %v2000, %v2175
        %2210 = vst.msk [vmem:[#allocation2] sm:$0xff] %vm468, %v2178
        %2211 = vst.msk [vmem:[#allocation2 + $0x8] sm:$0xff] %vm468, %v2179
        %2212 = vst.msk [vmem:[#allocation2 + $0x10] sm:$0xff] %vm468, %v2180
        %2213 = vst.msk [vmem:[#allocation2 + $0x18] sm:$0xff] %vm468, %v2181
        %2214 = vst.msk [vmem:[#allocation2 + $0x20] sm:$0xff] %vm468, %v2182
        %2215 = vst.msk [vmem:[#allocation2 + $0x28] sm:$0xff] %vm468, %v2183
        %2216 = vst.msk [vmem:[#allocation2 + $0x30] sm:$0xff] %vm468, %v2184
        %2217 = vst.msk [vmem:[#allocation2 + $0x38] sm:$0xff] %vm468, %v2185
        %2218 = vst.msk [vmem:[#allocation2 + $0x40] sm:$0xff] %vm468, %v2186
        %2219 = vst.msk [vmem:[#allocation2 + $0x48] sm:$0xff] %vm468, %v2187
        %2220 = vst.msk [vmem:[#allocation2 + $0x50] sm:$0xff] %vm468, %v2188
        %2221 = vst.msk [vmem:[#allocation2 + $0x58] sm:$0xff] %vm468, %v2189
        %2222 = vst.msk [vmem:[#allocation2 + $0x60] sm:$0xff] %vm468, %v2190
        %2223 = vst.msk [vmem:[#allocation2 + $0x68] sm:$0xff] %vm468, %v2191
        %2224 = vst.msk [vmem:[#allocation2 + $0x70] sm:$0xff] %vm468, %v2192
        %2225 = vst.msk [vmem:[#allocation2 + $0x78] sm:$0xff] %vm468, %v2193
        %2226 = vst.msk [vmem:[#allocation2 + $0x80] sm:$0xff] %vm468, %v2194
        %2227 = vst.msk [vmem:[#allocation2 + $0x88] sm:$0xff] %vm468, %v2195
        %2228 = vst.msk [vmem:[#allocation2 + $0x90] sm:$0xff] %vm468, %v2196
        %2229 = vst.msk [vmem:[#allocation2 + $0x98] sm:$0xff] %vm468, %v2197
        %2230 = vst.msk [vmem:[#allocation2 + $0xa0] sm:$0xff] %vm468, %v2198
        %2231 = vst.msk [vmem:[#allocation2 + $0xa8] sm:$0xff] %vm468, %v2199
        %2232 = vst.msk [vmem:[#allocation2 + $0xb0] sm:$0xff] %vm468, %v2200
        %2233 = vst.msk [vmem:[#allocation2 + $0xb8] sm:$0xff] %vm468, %v2201
        %2234 = vst.msk [vmem:[#allocation2 + $0xc0] sm:$0xff] %vm468, %v2202
        %2235 = vst.msk [vmem:[#allocation2 + $0xc8] sm:$0xff] %vm468, %v2203
        %2236 = vst.msk [vmem:[#allocation2 + $0xd0] sm:$0xff] %vm468, %v2204
        %2237 = vst.msk [vmem:[#allocation2 + $0xd8] sm:$0xff] %vm468, %v2205
        %2238 = vst.msk [vmem:[#allocation2 + $0xe0] sm:$0xff] %vm468, %v2206
        %2239 = vst.msk [vmem:[#allocation2 + $0xe8] sm:$0xff] %vm468, %v2207
        %2240 = vst.msk [vmem:[#allocation2 + $0xf0] sm:$0xff] %vm468, %v2208
        %2241 = vst.msk [vmem:[#allocation2 + $0xf8] sm:$0xff] %vm468, %v2209
        %v2242 = vld [vmem:[#allocation2] sm:$0xff]
        %v2243 = vld [vmem:[#allocation2 + $0x8] sm:$0xff]
        %v2244 = vld [vmem:[#allocation2 + $0x10] sm:$0xff]
        %v2245 = vld [vmem:[#allocation2 + $0x18] sm:$0xff]
        %v2246 = vld [vmem:[#allocation2 + $0x20] sm:$0xff]
        %v2247 = vld [vmem:[#allocation2 + $0x28] sm:$0xff]
        %v2248 = vld [vmem:[#allocation2 + $0x30] sm:$0xff]
        %v2249 = vld [vmem:[#allocation2 + $0x38] sm:$0xff]
        %v2250 = vld [vmem:[#allocation2 + $0x40] sm:$0xff]
        %v2251 = vld [vmem:[#allocation2 + $0x48] sm:$0xff]
        %v2252 = vld [vmem:[#allocation2 + $0x50] sm:$0xff]
        %v2253 = vld [vmem:[#allocation2 + $0x58] sm:$0xff]
        %v2254 = vld [vmem:[#allocation2 + $0x60] sm:$0xff]
        %v2255 = vld [vmem:[#allocation2 + $0x68] sm:$0xff]
        %v2256 = vld [vmem:[#allocation2 + $0x70] sm:$0xff]
        %v2257 = vld [vmem:[#allocation2 + $0x78] sm:$0xff]
        %v2258 = vld [vmem:[#allocation2 + $0x80] sm:$0xff]
        %v2259 = vld [vmem:[#allocation2 + $0x88] sm:$0xff]
        %v2260 = vld [vmem:[#allocation2 + $0x90] sm:$0xff]
        %v2261 = vld [vmem:[#allocation2 + $0x98] sm:$0xff]
        %v2262 = vld [vmem:[#allocation2 + $0xa0] sm:$0xff]
        %v2263 = vld [vmem:[#allocation2 + $0xa8] sm:$0xff]
        %v2264 = vld [vmem:[#allocation2 + $0xb0] sm:$0xff]
        %v2265 = vld [vmem:[#allocation2 + $0xb8] sm:$0xff]
        %v2266 = vld [vmem:[#allocation2 + $0xc0] sm:$0xff]
        %v2267 = vld [vmem:[#allocation2 + $0xc8] sm:$0xff]
        %v2268 = vld [vmem:[#allocation2 + $0xd0] sm:$0xff]
        %v2269 = vld [vmem:[#allocation2 + $0xd8] sm:$0xff]
        %v2270 = vld [vmem:[#allocation2 + $0xe0] sm:$0xff]
        %v2271 = vld [vmem:[#allocation2 + $0xe8] sm:$0xff]
        %v2272 = vld [vmem:[#allocation2 + $0xf0] sm:$0xff]
        %v2273 = vld [vmem:[#allocation2 + $0xf8] sm:$0xff]
        %v2274 = vpack.c.bf16 %v235, %v234
        %s2275 = scalar_lea.vmem %s1, 12
        %v2276 = vld [vmem:[%s2275] sm:$0x3]
        %v2278 = vsel %vm254, %v2274, 0
        %v2281 = vsel %vm303, %v2276, 0
        %2283 = vmatprep.subr.bf16.mxu0 0
        %2284 = vmatpush1.bf16.msra.mxu0 %v2281
        %2285 = vmatprep.subr.bf16.mxu0 0
        %2286 = vmatpush1.bf16.msra.mxu0 0
        %2287 = vmatprep.subr.bf16.mxu0 0
        %2288 = vmatpush1.bf16.msra.mxu0 0
        %2289 = vmatprep.subr.bf16.mxu0 0
        %2290 = vmatpush1.bf16.msra.mxu0 0
        %2291 = vmatprep.subr.bf16.mxu0 0
        %2292 = vmatpush1.bf16.msra.mxu0 0
        %2293 = vmatprep.subr.bf16.mxu0 0
        %2294 = vmatpush1.bf16.msra.mxu0 0
        %2295 = vmatprep.subr.bf16.mxu0 0
        %2296 = vmatpush1.bf16.msra.mxu0 0
        %2297 = vmatprep.subr.bf16.mxu0 0
        %2298 = vmatpush1.bf16.msra.mxu0 0
        %2299 = vmatprep.subr.bf16.mxu0 0
        %2300 = vmatpush1.bf16.msra.mxu0 0
        %2301 = vmatprep.subr.bf16.mxu0 0
        %2302 = vmatpush1.bf16.msra.mxu0 0
        %2303 = vmatprep.subr.bf16.mxu0 0
        %2304 = vmatpush1.bf16.msra.mxu0 0
        %2305 = vmatprep.subr.bf16.mxu0 0
        %2306 = vmatpush1.bf16.msra.mxu0 0
        %2307 = vmatprep.subr.bf16.mxu0 0
        %2308 = vmatpush1.bf16.msra.mxu0 0
        %2309 = vmatprep.subr.bf16.mxu0 0
        %2310 = vmatpush1.bf16.msra.mxu0 0
        %2311 = vmatprep.subr.bf16.mxu0 0
        %2312 = vmatpush1.bf16.msra.mxu0 0
        %2313 = vmatprep.subr.bf16.mxu0 0
        %2314 = vmatpush1.bf16.msra.mxu0 0
        %2315 = vmatprep.mubr.bf16.mxu0 0
        %2316 = vmatmul.mubr.bf16.gmra.mrb[0].mxu0 %v262
        %v2317 = vpop.f32.mrb[0].mxu0
        %v2318 = vadd.f32 0.0, %v2317
        %v2319 = vpop.f32.mrb[0].mxu0
        %v2320 = vpop.f32.mrb[0].mxu0
        %v2321 = vadd.f32 0.0, %v2320
        %v2322 = vpop.f32.mrb[0].mxu0
        %2323 = vmatprep.mubr.bf16.mxu0 0
        %2324 = vmatmul.mubr.bf16.gmra.mrb[0].mxu0 %v265
        %v2325 = vpop.f32.mrb[0].mxu0
        %v2326 = vadd.f32 0.0, %v2325
        %v2327 = vpop.f32.mrb[0].mxu0
        %v2328 = vpop.f32.mrb[0].mxu0
        %v2329 = vadd.f32 0.0, %v2328
        %v2330 = vpop.f32.mrb[0].mxu0
        %2331 = vmatprep.mubr.bf16.mxu0 0
        %2332 = vmatmul.mubr.bf16.gmra.mrb[0].mxu0 %v268
        %v2333 = vpop.f32.mrb[0].mxu0
        %v2334 = vadd.f32 0.0, %v2333
        %v2335 = vpop.f32.mrb[0].mxu0
        %v2336 = vpop.f32.mrb[0].mxu0
        %v2337 = vadd.f32 0.0, %v2336
        %v2338 = vpop.f32.mrb[0].mxu0
        %2339 = vmatprep.mubr.bf16.mxu0 0
        %2340 = vmatmul.mubr.bf16.gmra.mrb[0].mxu0 %v271
        %v2341 = vpop.f32.mrb[0].mxu0
        %v2342 = vadd.f32 0.0, %v2341
        %v2343 = vpop.f32.mrb[0].mxu0
        %v2344 = vpop.f32.mrb[0].mxu0
        %v2345 = vadd.f32 0.0, %v2344
        %v2346 = vpop.f32.mrb[0].mxu0
        %2347 = vmatprep.mubr.bf16.mxu0 0
        %2348 = vmatmul.mubr.bf16.gmra.mrb[0].mxu0 %v274
        %v2349 = vpop.f32.mrb[0].mxu0
        %v2350 = vadd.f32 0.0, %v2349
        %v2351 = vpop.f32.mrb[0].mxu0
        %v2352 = vpop.f32.mrb[0].mxu0
        %v2353 = vadd.f32 0.0, %v2352
        %v2354 = vpop.f32.mrb[0].mxu0
        %2355 = vmatprep.mubr.bf16.mxu0 0
        %2356 = vmatmul.mubr.bf16.gmra.mrb[0].mxu0 %v277
        %v2357 = vpop.f32.mrb[0].mxu0
        %v2358 = vadd.f32 0.0, %v2357
        %v2359 = vpop.f32.mrb[0].mxu0
        %v2360 = vpop.f32.mrb[0].mxu0
        %v2361 = vadd.f32 0.0, %v2360
        %v2362 = vpop.f32.mrb[0].mxu0
        %2363 = vmatprep.mubr.bf16.mxu0 0
        %2364 = vmatmul.mubr.bf16.gmra.mrb[0].mxu0 %v280
        %v2365 = vpop.f32.mrb[0].mxu0
        %v2366 = vadd.f32 0.0, %v2365
        %v2367 = vpop.f32.mrb[0].mxu0
        %v2368 = vpop.f32.mrb[0].mxu0
        %v2369 = vadd.f32 0.0, %v2368
        %v2370 = vpop.f32.mrb[0].mxu0
        %2371 = vmatprep.mubr.bf16.mxu0 0
        %2372 = vmatmul.mubr.bf16.gmra.mrb[0].mxu0 %v283
        %v2373 = vpop.f32.mrb[0].mxu0
        %v2374 = vadd.f32 0.0, %v2373
        %v2375 = vpop.f32.mrb[0].mxu0
        %v2376 = vpop.f32.mrb[0].mxu0
        %v2377 = vadd.f32 0.0, %v2376
        %v2378 = vpop.f32.mrb[0].mxu0
        %2379 = vmatprep.mubr.bf16.mxu0 0
        %2380 = vmatmul.mubr.bf16.gmra.mrb[0].mxu0 %v286
        %v2381 = vpop.f32.mrb[0].mxu0
        %v2382 = vadd.f32 0.0, %v2381
        %v2383 = vpop.f32.mrb[0].mxu0
        %v2384 = vpop.f32.mrb[0].mxu0
        %v2385 = vadd.f32 0.0, %v2384
        %v2386 = vpop.f32.mrb[0].mxu0
        %2387 = vmatprep.mubr.bf16.mxu0 0
        %2388 = vmatmul.mubr.bf16.gmra.mrb[0].mxu0 %v289
        %v2389 = vpop.f32.mrb[0].mxu0
        %v2390 = vadd.f32 0.0, %v2389
        %v2391 = vpop.f32.mrb[0].mxu0
        %v2392 = vpop.f32.mrb[0].mxu0
        %v2393 = vadd.f32 0.0, %v2392
        %v2394 = vpop.f32.mrb[0].mxu0
        %2395 = vmatprep.mubr.bf16.mxu0 0
        %2396 = vmatmul.mubr.bf16.gmra.mrb[0].mxu0 %v292
        %v2397 = vpop.f32.mrb[0].mxu0
        %v2398 = vadd.f32 0.0, %v2397
        %v2399 = vpop.f32.mrb[0].mxu0
        %v2400 = vpop.f32.mrb[0].mxu0
        %v2401 = vadd.f32 0.0, %v2400
        %v2402 = vpop.f32.mrb[0].mxu0
        %2403 = vmatprep.mubr.bf16.mxu0 0
        %2404 = vmatmul.mubr.bf16.gmra.mrb[0].mxu0 %v295
        %v2405 = vpop.f32.mrb[0].mxu0
        %v2406 = vadd.f32 0.0, %v2405
        %v2407 = vpop.f32.mrb[0].mxu0
        %v2408 = vpop.f32.mrb[0].mxu0
        %v2409 = vadd.f32 0.0, %v2408
        %v2410 = vpop.f32.mrb[0].mxu0
        %2411 = vmatprep.mubr.bf16.mxu0 0
        %2412 = vmatmul.mubr.bf16.gmra.mrb[0].mxu0 %v298
        %v2413 = vpop.f32.mrb[0].mxu0
        %v2414 = vadd.f32 0.0, %v2413
        %v2415 = vpop.f32.mrb[0].mxu0
        %v2416 = vpop.f32.mrb[0].mxu0
        %v2417 = vadd.f32 0.0, %v2416
        %v2418 = vpop.f32.mrb[0].mxu0
        %2419 = vmatprep.mubr.bf16.mxu0 0
        %2420 = vmatmul.mubr.bf16.gmra.mrb[0].mxu0 %v301
        %v2421 = vpop.f32.mrb[0].mxu0
        %v2422 = vadd.f32 0.0, %v2421
        %v2423 = vpop.f32.mrb[0].mxu0
        %v2424 = vpop.f32.mrb[0].mxu0
        %v2425 = vadd.f32 0.0, %v2424
        %v2426 = vpop.f32.mrb[0].mxu0
        %2427 = vmatprep.mubr.bf16.mxu0 0
        %2428 = vmatmul.mubr.bf16.gmra.mrb[0].mxu0 %v1463
        %v2429 = vpop.f32.mrb[0].mxu0
        %v2430 = vadd.f32 0.0, %v2429
        %v2431 = vpop.f32.mrb[0].mxu0
        %v2432 = vpop.f32.mrb[0].mxu0
        %v2433 = vadd.f32 0.0, %v2432
        %v2434 = vpop.f32.mrb[0].mxu0
        %2435 = vmatprep.mubr.bf16.mxu0 0
        %2436 = vmatmul.mubr.bf16.gmra.mrb[0].mxu0 %v2278
        %v2437 = vpop.f32.mrb[0].mxu0
        %v2438 = vadd.f32 0.0, %v2437
        %v2439 = vpop.f32.mrb[0].mxu0
        %v2440 = vpop.f32.mrb[0].mxu0
        %v2441 = vadd.f32 0.0, %v2440
        %v2442 = vpop.f32.mrb[0].mxu0
        %2443 = vdwg.mxu0
        %v2444 = vadd.f32 %v2242, %v2318
        %v2445 = vadd.f32 %v2243, %v2321
        %v2446 = vadd.f32 %v2244, %v2326
        %v2447 = vadd.f32 %v2245, %v2329
        %v2448 = vadd.f32 %v2246, %v2334
        %v2449 = vadd.f32 %v2247, %v2337
        %v2450 = vadd.f32 %v2248, %v2342
        %v2451 = vadd.f32 %v2249, %v2345
        %v2452 = vadd.f32 %v2250, %v2350
        %v2453 = vadd.f32 %v2251, %v2353
        %v2454 = vadd.f32 %v2252, %v2358
        %v2455 = vadd.f32 %v2253, %v2361
        %v2456 = vadd.f32 %v2254, %v2366
        %v2457 = vadd.f32 %v2255, %v2369
        %v2458 = vadd.f32 %v2256, %v2374
        %v2459 = vadd.f32 %v2257, %v2377
        %v2460 = vadd.f32 %v2258, %v2382
        %v2461 = vadd.f32 %v2259, %v2385
        %v2462 = vadd.f32 %v2260, %v2390
        %v2463 = vadd.f32 %v2261, %v2393
        %v2464 = vadd.f32 %v2262, %v2398
        %v2465 = vadd.f32 %v2263, %v2401
        %v2466 = vadd.f32 %v2264, %v2406
        %v2467 = vadd.f32 %v2265, %v2409
        %v2468 = vadd.f32 %v2266, %v2414
        %v2469 = vadd.f32 %v2267, %v2417
        %v2470 = vadd.f32 %v2268, %v2422
        %v2471 = vadd.f32 %v2269, %v2425
        %v2472 = vadd.f32 %v2270, %v2430
        %v2473 = vadd.f32 %v2271, %v2433
        %v2474 = vadd.f32 %v2272, %v2438
        %v2475 = vadd.f32 %v2273, %v2441
        %2476 = vst.msk [vmem:[#allocation2] sm:$0xff] %vm468, %v2444
        %2477 = vst.msk [vmem:[#allocation2 + $0x8] sm:$0xff] %vm468, %v2445
        %2478 = vst.msk [vmem:[#allocation2 + $0x10] sm:$0xff] %vm468, %v2446
        %2479 = vst.msk [vmem:[#allocation2 + $0x18] sm:$0xff] %vm468, %v2447
        %2480 = vst.msk [vmem:[#allocation2 + $0x20] sm:$0xff] %vm468, %v2448
        %2481 = vst.msk [vmem:[#allocation2 + $0x28] sm:$0xff] %vm468, %v2449
        %2482 = vst.msk [vmem:[#allocation2 + $0x30] sm:$0xff] %vm468, %v2450
        %2483 = vst.msk [vmem:[#allocation2 + $0x38] sm:$0xff] %vm468, %v2451
        %2484 = vst.msk [vmem:[#allocation2 + $0x40] sm:$0xff] %vm468, %v2452
        %2485 = vst.msk [vmem:[#allocation2 + $0x48] sm:$0xff] %vm468, %v2453
        %2486 = vst.msk [vmem:[#allocation2 + $0x50] sm:$0xff] %vm468, %v2454
        %2487 = vst.msk [vmem:[#allocation2 + $0x58] sm:$0xff] %vm468, %v2455
        %2488 = vst.msk [vmem:[#allocation2 + $0x60] sm:$0xff] %vm468, %v2456
        %2489 = vst.msk [vmem:[#allocation2 + $0x68] sm:$0xff] %vm468, %v2457
        %2490 = vst.msk [vmem:[#allocation2 + $0x70] sm:$0xff] %vm468, %v2458
        %2491 = vst.msk [vmem:[#allocation2 + $0x78] sm:$0xff] %vm468, %v2459
        %2492 = vst.msk [vmem:[#allocation2 + $0x80] sm:$0xff] %vm468, %v2460
        %2493 = vst.msk [vmem:[#allocation2 + $0x88] sm:$0xff] %vm468, %v2461
        %2494 = vst.msk [vmem:[#allocation2 + $0x90] sm:$0xff] %vm468, %v2462
        %2495 = vst.msk [vmem:[#allocation2 + $0x98] sm:$0xff] %vm468, %v2463
        %2496 = vst.msk [vmem:[#allocation2 + $0xa0] sm:$0xff] %vm468, %v2464
        %2497 = vst.msk [vmem:[#allocation2 + $0xa8] sm:$0xff] %vm468, %v2465
        %2498 = vst.msk [vmem:[#allocation2 + $0xb0] sm:$0xff] %vm468, %v2466
        %2499 = vst.msk [vmem:[#allocation2 + $0xb8] sm:$0xff] %vm468, %v2467
        %2500 = vst.msk [vmem:[#allocation2 + $0xc0] sm:$0xff] %vm468, %v2468
        %2501 = vst.msk [vmem:[#allocation2 + $0xc8] sm:$0xff] %vm468, %v2469
        %2502 = vst.msk [vmem:[#allocation2 + $0xd0] sm:$0xff] %vm468, %v2470
        %2503 = vst.msk [vmem:[#allocation2 + $0xd8] sm:$0xff] %vm468, %v2471
        %2504 = vst.msk [vmem:[#allocation2 + $0xe0] sm:$0xff] %vm468, %v2472
        %2505 = vst.msk [vmem:[#allocation2 + $0xe8] sm:$0xff] %vm468, %v2473
        %2506 = vst.msk [vmem:[#allocation2 + $0xf0] sm:$0xff] %vm468, %v2474
        %2507 = vst.msk [vmem:[#allocation2 + $0xf8] sm:$0xff] %vm468, %v2475
        %v2508 = vld [vmem:[#allocation2] sm:$0xff]
        %v2509 = vld [vmem:[#allocation2 + $0x8] sm:$0xff]
        %v2510 = vld [vmem:[#allocation2 + $0x10] sm:$0xff]
        %v2511 = vld [vmem:[#allocation2 + $0x18] sm:$0xff]
        %v2512 = vld [vmem:[#allocation2 + $0x20] sm:$0xff]
        %v2513 = vld [vmem:[#allocation2 + $0x28] sm:$0xff]
        %v2514 = vld [vmem:[#allocation2 + $0x30] sm:$0xff]
        %v2515 = vld [vmem:[#allocation2 + $0x38] sm:$0xff]
        %v2516 = vld [vmem:[#allocation2 + $0x40] sm:$0xff]
        %v2517 = vld [vmem:[#allocation2 + $0x48] sm:$0xff]
        %v2518 = vld [vmem:[#allocation2 + $0x50] sm:$0xff]
        %v2519 = vld [vmem:[#allocation2 + $0x58] sm:$0xff]
        %v2520 = vld [vmem:[#allocation2 + $0x60] sm:$0xff]
        %v2521 = vld [vmem:[#allocation2 + $0x68] sm:$0xff]
        %v2522 = vld [vmem:[#allocation2 + $0x70] sm:$0xff]
        %v2523 = vld [vmem:[#allocation2 + $0x78] sm:$0xff]
        %v2524 = vld [vmem:[#allocation2 + $0x80] sm:$0xff]
        %v2525 = vld [vmem:[#allocation2 + $0x88] sm:$0xff]
        %v2526 = vld [vmem:[#allocation2 + $0x90] sm:$0xff]
        %v2527 = vld [vmem:[#allocation2 + $0x98] sm:$0xff]
        %v2528 = vld [vmem:[#allocation2 + $0xa0] sm:$0xff]
        %v2529 = vld [vmem:[#allocation2 + $0xa8] sm:$0xff]
        %v2530 = vld [vmem:[#allocation2 + $0xb0] sm:$0xff]
        %v2531 = vld [vmem:[#allocation2 + $0xb8] sm:$0xff]
        %v2532 = vld [vmem:[#allocation2 + $0xc0] sm:$0xff]
        %v2533 = vld [vmem:[#allocation2 + $0xc8] sm:$0xff]
        %v2534 = vld [vmem:[#allocation2 + $0xd0] sm:$0xff]
        %v2535 = vld [vmem:[#allocation2 + $0xd8] sm:$0xff]
        %v2536 = vld [vmem:[#allocation2 + $0xe0] sm:$0xff]
        %v2537 = vld [vmem:[#allocation2 + $0xe8] sm:$0xff]
        %v2538 = vld [vmem:[#allocation2 + $0xf0] sm:$0xff]
        %v2539 = vld [vmem:[#allocation2 + $0xf8] sm:$0xff]
        %v2543 = vrot.slane %v234, 1
        %v2544 = vrot.slane %v235, 1
        %v2545 = vsel %vm581, %v2543, %v2544
        %v2546 = vrot.slane %v236, 1
        %v2547 = vsel %vm581, %v2544, %v2546
        %v2550 = vpack.c.bf16 %v2547, %v2545
        %s2551 = scalar_lea.vmem %s1, 14
        %v2552 = vld [vmem:[%s2551] sm:$0x3]
        %v2554 = vsel %vm254, %v2550, 0
        %v2557 = vsel %vm303, %v2552, 0
        %2559 = vmatprep.subr.bf16.mxu0 0
        %2560 = vmatpush1.bf16.msra.mxu0 %v2557
        %2561 = vmatprep.subr.bf16.mxu0 0
        %2562 = vmatpush1.bf16.msra.mxu0 0
        %2563 = vmatprep.subr.bf16.mxu0 0
        %2564 = vmatpush1.bf16.msra.mxu0 0
        %2565 = vmatprep.subr.bf16.mxu0 0
        %2566 = vmatpush1.bf16.msra.mxu0 0
        %2567 = vmatprep.subr.bf16.mxu0 0
        %2568 = vmatpush1.bf16.msra.mxu0 0
        %2569 = vmatprep.subr.bf16.mxu0 0
        %2570 = vmatpush1.bf16.msra.mxu0 0
        %2571 = vmatprep.subr.bf16.mxu0 0
        %2572 = vmatpush1.bf16.msra.mxu0 0
        %2573 = vmatprep.subr.bf16.mxu0 0
        %2574 = vmatpush1.bf16.msra.mxu0 0
        %2575 = vmatprep.subr.bf16.mxu0 0
        %2576 = vmatpush1.bf16.msra.mxu0 0
        %2577 = vmatprep.subr.bf16.mxu0 0
        %2578 = vmatpush1.bf16.msra.mxu0 0
        %2579 = vmatprep.subr.bf16.mxu0 0
        %2580 = vmatpush1.bf16.msra.mxu0 0
        %2581 = vmatprep.subr.bf16.mxu0 0
        %2582 = vmatpush1.bf16.msra.mxu0 0
        %2583 = vmatprep.subr.bf16.mxu0 0
        %2584 = vmatpush1.bf16.msra.mxu0 0
        %2585 = vmatprep.subr.bf16.mxu0 0
        %2586 = vmatpush1.bf16.msra.mxu0 0
        %2587 = vmatprep.subr.bf16.mxu0 0
        %2588 = vmatpush1.bf16.msra.mxu0 0
        %2589 = vmatprep.subr.bf16.mxu0 0
        %2590 = vmatpush1.bf16.msra.mxu0 0
        %2591 = vmatprep.mubr.bf16.mxu0 0
        %2592 = vmatmul.mubr.bf16.gmra.mrb[0].mxu0 %v719
        %v2593 = vpop.f32.mrb[0].mxu0
        %v2594 = vadd.f32 0.0, %v2593
        %v2595 = vpop.f32.mrb[0].mxu0
        %v2596 = vpop.f32.mrb[0].mxu0
        %v2597 = vadd.f32 0.0, %v2596
        %v2598 = vpop.f32.mrb[0].mxu0
        %2599 = vmatprep.mubr.bf16.mxu0 0
        %2600 = vmatmul.mubr.bf16.gmra.mrb[0].mxu0 %v722
        %v2601 = vpop.f32.mrb[0].mxu0
        %v2602 = vadd.f32 0.0, %v2601
        %v2603 = vpop.f32.mrb[0].mxu0
        %v2604 = vpop.f32.mrb[0].mxu0
        %v2605 = vadd.f32 0.0, %v2604
        %v2606 = vpop.f32.mrb[0].mxu0
        %2607 = vmatprep.mubr.bf16.mxu0 0
        %2608 = vmatmul.mubr.bf16.gmra.mrb[0].mxu0 %v725
        %v2609 = vpop.f32.mrb[0].mxu0
        %v2610 = vadd.f32 0.0, %v2609
        %v2611 = vpop.f32.mrb[0].mxu0
        %v2612 = vpop.f32.mrb[0].mxu0
        %v2613 = vadd.f32 0.0, %v2612
        %v2614 = vpop.f32.mrb[0].mxu0
        %2615 = vmatprep.mubr.bf16.mxu0 0
        %2616 = vmatmul.mubr.bf16.gmra.mrb[0].mxu0 %v728
        %v2617 = vpop.f32.mrb[0].mxu0
        %v2618 = vadd.f32 0.0, %v2617
        %v2619 = vpop.f32.mrb[0].mxu0
        %v2620 = vpop.f32.mrb[0].mxu0
        %v2621 = vadd.f32 0.0, %v2620
        %v2622 = vpop.f32.mrb[0].mxu0
        %2623 = vmatprep.mubr.bf16.mxu0 0
        %2624 = vmatmul.mubr.bf16.gmra.mrb[0].mxu0 %v731
        %v2625 = vpop.f32.mrb[0].mxu0
        %v2626 = vadd.f32 0.0, %v2625
        %v2627 = vpop.f32.mrb[0].mxu0
        %v2628 = vpop.f32.mrb[0].mxu0
        %v2629 = vadd.f32 0.0, %v2628
        %v2630 = vpop.f32.mrb[0].mxu0
        %2631 = vmatprep.mubr.bf16.mxu0 0
        %2632 = vmatmul.mubr.bf16.gmra.mrb[0].mxu0 %v734
        %v2633 = vpop.f32.mrb[0].mxu0
        %v2634 = vadd.f32 0.0, %v2633
        %v2635 = vpop.f32.mrb[0].mxu0
        %v2636 = vpop.f32.mrb[0].mxu0
        %v2637 = vadd.f32 0.0, %v2636
        %v2638 = vpop.f32.mrb[0].mxu0
        %2639 = vmatprep.mubr.bf16.mxu0 0
        %2640 = vmatmul.mubr.bf16.gmra.mrb[0].mxu0 %v737
        %v2641 = vpop.f32.mrb[0].mxu0
        %v2642 = vadd.f32 0.0, %v2641
        %v2643 = vpop.f32.mrb[0].mxu0
        %v2644 = vpop.f32.mrb[0].mxu0
        %v2645 = vadd.f32 0.0, %v2644
        %v2646 = vpop.f32.mrb[0].mxu0
        %2647 = vmatprep.mubr.bf16.mxu0 0
        %2648 = vmatmul.mubr.bf16.gmra.mrb[0].mxu0 %v740
        %v2649 = vpop.f32.mrb[0].mxu0
        %v2650 = vadd.f32 0.0, %v2649
        %v2651 = vpop.f32.mrb[0].mxu0
        %v2652 = vpop.f32.mrb[0].mxu0
        %v2653 = vadd.f32 0.0, %v2652
        %v2654 = vpop.f32.mrb[0].mxu0
        %2655 = vmatprep.mubr.bf16.mxu0 0
        %2656 = vmatmul.mubr.bf16.gmra.mrb[0].mxu0 %v743
        %v2657 = vpop.f32.mrb[0].mxu0
        %v2658 = vadd.f32 0.0, %v2657
        %v2659 = vpop.f32.mrb[0].mxu0
        %v2660 = vpop.f32.mrb[0].mxu0
        %v2661 = vadd.f32 0.0, %v2660
        %v2662 = vpop.f32.mrb[0].mxu0
        %2663 = vmatprep.mubr.bf16.mxu0 0
        %2664 = vmatmul.mubr.bf16.gmra.mrb[0].mxu0 %v746
        %v2665 = vpop.f32.mrb[0].mxu0
        %v2666 = vadd.f32 0.0, %v2665
        %v2667 = vpop.f32.mrb[0].mxu0
        %v2668 = vpop.f32.mrb[0].mxu0
        %v2669 = vadd.f32 0.0, %v2668
        %v2670 = vpop.f32.mrb[0].mxu0
        %2671 = vmatprep.mubr.bf16.mxu0 0
        %2672 = vmatmul.mubr.bf16.gmra.mrb[0].mxu0 %v749
        %v2673 = vpop.f32.mrb[0].mxu0
        %v2674 = vadd.f32 0.0, %v2673
        %v2675 = vpop.f32.mrb[0].mxu0
        %v2676 = vpop.f32.mrb[0].mxu0
        %v2677 = vadd.f32 0.0, %v2676
        %v2678 = vpop.f32.mrb[0].mxu0
        %2679 = vmatprep.mubr.bf16.mxu0 0
        %2680 = vmatmul.mubr.bf16.gmra.mrb[0].mxu0 %v752
        %v2681 = vpop.f32.mrb[0].mxu0
        %v2682 = vadd.f32 0.0, %v2681
        %v2683 = vpop.f32.mrb[0].mxu0
        %v2684 = vpop.f32.mrb[0].mxu0
        %v2685 = vadd.f32 0.0, %v2684
        %v2686 = vpop.f32.mrb[0].mxu0
        %2687 = vmatprep.mubr.bf16.mxu0 0
        %2688 = vmatmul.mubr.bf16.gmra.mrb[0].mxu0 %v755
        %v2689 = vpop.f32.mrb[0].mxu0
        %v2690 = vadd.f32 0.0, %v2689
        %v2691 = vpop.f32.mrb[0].mxu0
        %v2692 = vpop.f32.mrb[0].mxu0
        %v2693 = vadd.f32 0.0, %v2692
        %v2694 = vpop.f32.mrb[0].mxu0
        %2695 = vmatprep.mubr.bf16.mxu0 0
        %2696 = vmatmul.mubr.bf16.gmra.mrb[0].mxu0 %v758
        %v2697 = vpop.f32.mrb[0].mxu0
        %v2698 = vadd.f32 0.0, %v2697
        %v2699 = vpop.f32.mrb[0].mxu0
        %v2700 = vpop.f32.mrb[0].mxu0
        %v2701 = vadd.f32 0.0, %v2700
        %v2702 = vpop.f32.mrb[0].mxu0
        %2703 = vmatprep.mubr.bf16.mxu0 0
        %2704 = vmatmul.mubr.bf16.gmra.mrb[0].mxu0 %v1739
        %v2705 = vpop.f32.mrb[0].mxu0
        %v2706 = vadd.f32 0.0, %v2705
        %v2707 = vpop.f32.mrb[0].mxu0
        %v2708 = vpop.f32.mrb[0].mxu0
        %v2709 = vadd.f32 0.0, %v2708
        %v2710 = vpop.f32.mrb[0].mxu0
        %2711 = vmatprep.mubr.bf16.mxu0 0
        %2712 = vmatmul.mubr.bf16.gmra.mrb[0].mxu0 %v2554
        %v2713 = vpop.f32.mrb[0].mxu0
        %v2714 = vadd.f32 0.0, %v2713
        %v2715 = vpop.f32.mrb[0].mxu0
        %v2716 = vpop.f32.mrb[0].mxu0
        %v2717 = vadd.f32 0.0, %v2716
        %v2718 = vpop.f32.mrb[0].mxu0
        %2719 = vdwg.mxu0
        %v2720 = vadd.f32 %v2508, %v2594
        %v2721 = vadd.f32 %v2509, %v2597
        %v2722 = vadd.f32 %v2510, %v2602
        %v2723 = vadd.f32 %v2511, %v2605
        %v2724 = vadd.f32 %v2512, %v2610
        %v2725 = vadd.f32 %v2513, %v2613
        %v2726 = vadd.f32 %v2514, %v2618
        %v2727 = vadd.f32 %v2515, %v2621
        %v2728 = vadd.f32 %v2516, %v2626
        %v2729 = vadd.f32 %v2517, %v2629
        %v2730 = vadd.f32 %v2518, %v2634
        %v2731 = vadd.f32 %v2519, %v2637
        %v2732 = vadd.f32 %v2520, %v2642
        %v2733 = vadd.f32 %v2521, %v2645
        %v2734 = vadd.f32 %v2522, %v2650
        %v2735 = vadd.f32 %v2523, %v2653
        %v2736 = vadd.f32 %v2524, %v2658
        %v2737 = vadd.f32 %v2525, %v2661
        %v2738 = vadd.f32 %v2526, %v2666
        %v2739 = vadd.f32 %v2527, %v2669
        %v2740 = vadd.f32 %v2528, %v2674
        %v2741 = vadd.f32 %v2529, %v2677
        %v2742 = vadd.f32 %v2530, %v2682
        %v2743 = vadd.f32 %v2531, %v2685
        %v2744 = vadd.f32 %v2532, %v2690
        %v2745 = vadd.f32 %v2533, %v2693
        %v2746 = vadd.f32 %v2534, %v2698
        %v2747 = vadd.f32 %v2535, %v2701
        %v2748 = vadd.f32 %v2536, %v2706
        %v2749 = vadd.f32 %v2537, %v2709
        %v2750 = vadd.f32 %v2538, %v2714
        %v2751 = vadd.f32 %v2539, %v2717
        %2752 = vst.msk [vmem:[#allocation2] sm:$0xff] %vm468, %v2720
        %2753 = vst.msk [vmem:[#allocation2 + $0x8] sm:$0xff] %vm468, %v2721
        %2754 = vst.msk [vmem:[#allocation2 + $0x10] sm:$0xff] %vm468, %v2722
        %2755 = vst.msk [vmem:[#allocation2 + $0x18] sm:$0xff] %vm468, %v2723
        %2756 = vst.msk [vmem:[#allocation2 + $0x20] sm:$0xff] %vm468, %v2724
        %2757 = vst.msk [vmem:[#allocation2 + $0x28] sm:$0xff] %vm468, %v2725
        %2758 = vst.msk [vmem:[#allocation2 + $0x30] sm:$0xff] %vm468, %v2726
        %2759 = vst.msk [vmem:[#allocation2 + $0x38] sm:$0xff] %vm468, %v2727
        %2760 = vst.msk [vmem:[#allocation2 + $0x40] sm:$0xff] %vm468, %v2728
        %2761 = vst.msk [vmem:[#allocation2 + $0x48] sm:$0xff] %vm468, %v2729
        %2762 = vst.msk [vmem:[#allocation2 + $0x50] sm:$0xff] %vm468, %v2730
        %2763 = vst.msk [vmem:[#allocation2 + $0x58] sm:$0xff] %vm468, %v2731
        %2764 = vst.msk [vmem:[#allocation2 + $0x60] sm:$0xff] %vm468, %v2732
        %2765 = vst.msk [vmem:[#allocation2 + $0x68] sm:$0xff] %vm468, %v2733
        %2766 = vst.msk [vmem:[#allocation2 + $0x70] sm:$0xff] %vm468, %v2734
        %2767 = vst.msk [vmem:[#allocation2 + $0x78] sm:$0xff] %vm468, %v2735
        %2768 = vst.msk [vmem:[#allocation2 + $0x80] sm:$0xff] %vm468, %v2736
        %2769 = vst.msk [vmem:[#allocation2 + $0x88] sm:$0xff] %vm468, %v2737
        %2770 = vst.msk [vmem:[#allocation2 + $0x90] sm:$0xff] %vm468, %v2738
        %2771 = vst.msk [vmem:[#allocation2 + $0x98] sm:$0xff] %vm468, %v2739
        %2772 = vst.msk [vmem:[#allocation2 + $0xa0] sm:$0xff] %vm468, %v2740
        %2773 = vst.msk [vmem:[#allocation2 + $0xa8] sm:$0xff] %vm468, %v2741
        %2774 = vst.msk [vmem:[#allocation2 + $0xb0] sm:$0xff] %vm468, %v2742
        %2775 = vst.msk [vmem:[#allocation2 + $0xb8] sm:$0xff] %vm468, %v2743
        %2776 = vst.msk [vmem:[#allocation2 + $0xc0] sm:$0xff] %vm468, %v2744
        %2777 = vst.msk [vmem:[#allocation2 + $0xc8] sm:$0xff] %vm468, %v2745
        %2778 = vst.msk [vmem:[#allocation2 + $0xd0] sm:$0xff] %vm468, %v2746
        %2779 = vst.msk [vmem:[#allocation2 + $0xd8] sm:$0xff] %vm468, %v2747
        %2780 = vst.msk [vmem:[#allocation2 + $0xe0] sm:$0xff] %vm468, %v2748
        %2781 = vst.msk [vmem:[#allocation2 + $0xe8] sm:$0xff] %vm468, %v2749
        %2782 = vst.msk [vmem:[#allocation2 + $0xf0] sm:$0xff] %vm468, %v2750
        %2783 = vst.msk [vmem:[#allocation2 + $0xf8] sm:$0xff] %vm468, %v2751
        %v2784 = vld [vmem:[#allocation2] sm:$0xff]
        %v2785 = vld [vmem:[#allocation2 + $0x8] sm:$0xff]
        %v2786 = vld [vmem:[#allocation2 + $0x10] sm:$0xff]
        %v2787 = vld [vmem:[#allocation2 + $0x18] sm:$0xff]
        %v2788 = vld [vmem:[#allocation2 + $0x20] sm:$0xff]
        %v2789 = vld [vmem:[#allocation2 + $0x28] sm:$0xff]
        %v2790 = vld [vmem:[#allocation2 + $0x30] sm:$0xff]
        %v2791 = vld [vmem:[#allocation2 + $0x38] sm:$0xff]
        %v2792 = vld [vmem:[#allocation2 + $0x40] sm:$0xff]
        %v2793 = vld [vmem:[#allocation2 + $0x48] sm:$0xff]
        %v2794 = vld [vmem:[#allocation2 + $0x50] sm:$0xff]
        %v2795 = vld [vmem:[#allocation2 + $0x58] sm:$0xff]
        %v2796 = vld [vmem:[#allocation2 + $0x60] sm:$0xff]
        %v2797 = vld [vmem:[#allocation2 + $0x68] sm:$0xff]
        %v2798 = vld [vmem:[#allocation2 + $0x70] sm:$0xff]
        %v2799 = vld [vmem:[#allocation2 + $0x78] sm:$0xff]
        %v2800 = vld [vmem:[#allocation2 + $0x80] sm:$0xff]
        %v2801 = vld [vmem:[#allocation2 + $0x88] sm:$0xff]
        %v2802 = vld [vmem:[#allocation2 + $0x90] sm:$0xff]
        %v2803 = vld [vmem:[#allocation2 + $0x98] sm:$0xff]
        %v2804 = vld [vmem:[#allocation2 + $0xa0] sm:$0xff]
        %v2805 = vld [vmem:[#allocation2 + $0xa8] sm:$0xff]
        %v2806 = vld [vmem:[#allocation2 + $0xb0] sm:$0xff]
        %v2807 = vld [vmem:[#allocation2 + $0xb8] sm:$0xff]
        %v2808 = vld [vmem:[#allocation2 + $0xc0] sm:$0xff]
        %v2809 = vld [vmem:[#allocation2 + $0xc8] sm:$0xff]
        %v2810 = vld [vmem:[#allocation2 + $0xd0] sm:$0xff]
        %v2811 = vld [vmem:[#allocation2 + $0xd8] sm:$0xff]
        %v2812 = vld [vmem:[#allocation2 + $0xe0] sm:$0xff]
        %v2813 = vld [vmem:[#allocation2 + $0xe8] sm:$0xff]
        %v2814 = vld [vmem:[#allocation2 + $0xf0] sm:$0xff]
        %v2815 = vld [vmem:[#allocation2 + $0xf8] sm:$0xff]
        %v2816 = vrot.slane %v234, 2
        %v2817 = vrot.slane %v235, 2
        %v2818 = vsel %vm1020, %v2816, %v2817
        %v2819 = vrot.slane %v236, 2
        %v2820 = vsel %vm1020, %v2817, %v2819
        %v2823 = vpack.c.bf16 %v2820, %v2818
        %s2824 = scalar_lea.vmem %s1, 16
        %v2825 = vld [vmem:[%s2824] sm:$0x3]
        %v2827 = vsel %vm254, %v2823, 0
        %v2830 = vsel %vm303, %v2825, 0
        %2832 = vmatprep.subr.bf16.mxu0 0
        %2833 = vmatpush1.bf16.msra.mxu0 %v2830
        %2834 = vmatprep.subr.bf16.mxu0 0
        %2835 = vmatpush1.bf16.msra.mxu0 0
        %2836 = vmatprep.subr.bf16.mxu0 0
        %2837 = vmatpush1.bf16.msra.mxu0 0
        %2838 = vmatprep.subr.bf16.mxu0 0
        %2839 = vmatpush1.bf16.msra.mxu0 0
        %2840 = vmatprep.subr.bf16.mxu0 0
        %2841 = vmatpush1.bf16.msra.mxu0 0
        %2842 = vmatprep.subr.bf16.mxu0 0
        %2843 = vmatpush1.bf16.msra.mxu0 0
        %2844 = vmatprep.subr.bf16.mxu0 0
        %2845 = vmatpush1.bf16.msra.mxu0 0
        %2846 = vmatprep.subr.bf16.mxu0 0
        %2847 = vmatpush1.bf16.msra.mxu0 0
        %2848 = vmatprep.subr.bf16.mxu0 0
        %2849 = vmatpush1.bf16.msra.mxu0 0
        %2850 = vmatprep.subr.bf16.mxu0 0
        %2851 = vmatpush1.bf16.msra.mxu0 0
        %2852 = vmatprep.subr.bf16.mxu0 0
        %2853 = vmatpush1.bf16.msra.mxu0 0
        %2854 = vmatprep.subr.bf16.mxu0 0
        %2855 = vmatpush1.bf16.msra.mxu0 0
        %2856 = vmatprep.subr.bf16.mxu0 0
        %2857 = vmatpush1.bf16.msra.mxu0 0
        %2858 = vmatprep.subr.bf16.mxu0 0
        %2859 = vmatpush1.bf16.msra.mxu0 0
        %2860 = vmatprep.subr.bf16.mxu0 0
        %2861 = vmatpush1.bf16.msra.mxu0 0
        %2862 = vmatprep.subr.bf16.mxu0 0
        %2863 = vmatpush1.bf16.msra.mxu0 0
        %2864 = vmatprep.mubr.bf16.mxu0 0
        %2865 = vmatmul.mubr.bf16.gmra.mrb[0].mxu0 %v1158
        %v2866 = vpop.f32.mrb[0].mxu0
        %v2867 = vadd.f32 0.0, %v2866
        %v2868 = vpop.f32.mrb[0].mxu0
        %v2869 = vpop.f32.mrb[0].mxu0
        %v2870 = vadd.f32 0.0, %v2869
        %v2871 = vpop.f32.mrb[0].mxu0
        %2872 = vmatprep.mubr.bf16.mxu0 0
        %2873 = vmatmul.mubr.bf16.gmra.mrb[0].mxu0 %v1161
        %v2874 = vpop.f32.mrb[0].mxu0
        %v2875 = vadd.f32 0.0, %v2874
        %v2876 = vpop.f32.mrb[0].mxu0
        %v2877 = vpop.f32.mrb[0].mxu0
        %v2878 = vadd.f32 0.0, %v2877
        %v2879 = vpop.f32.mrb[0].mxu0
        %2880 = vmatprep.mubr.bf16.mxu0 0
        %2881 = vmatmul.mubr.bf16.gmra.mrb[0].mxu0 %v1164
        %v2882 = vpop.f32.mrb[0].mxu0
        %v2883 = vadd.f32 0.0, %v2882
        %v2884 = vpop.f32.mrb[0].mxu0
        %v2885 = vpop.f32.mrb[0].mxu0
        %v2886 = vadd.f32 0.0, %v2885
        %v2887 = vpop.f32.mrb[0].mxu0
        %2888 = vmatprep.mubr.bf16.mxu0 0
        %2889 = vmatmul.mubr.bf16.gmra.mrb[0].mxu0 %v1167
        %v2890 = vpop.f32.mrb[0].mxu0
        %v2891 = vadd.f32 0.0, %v2890
        %v2892 = vpop.f32.mrb[0].mxu0
        %v2893 = vpop.f32.mrb[0].mxu0
        %v2894 = vadd.f32 0.0, %v2893
        %v2895 = vpop.f32.mrb[0].mxu0
        %2896 = vmatprep.mubr.bf16.mxu0 0
        %2897 = vmatmul.mubr.bf16.gmra.mrb[0].mxu0 %v1170
        %v2898 = vpop.f32.mrb[0].mxu0
        %v2899 = vadd.f32 0.0, %v2898
        %v2900 = vpop.f32.mrb[0].mxu0
        %v2901 = vpop.f32.mrb[0].mxu0
        %v2902 = vadd.f32 0.0, %v2901
        %v2903 = vpop.f32.mrb[0].mxu0
        %2904 = vmatprep.mubr.bf16.mxu0 0
        %2905 = vmatmul.mubr.bf16.gmra.mrb[0].mxu0 %v1173
        %v2906 = vpop.f32.mrb[0].mxu0
        %v2907 = vadd.f32 0.0, %v2906
        %v2908 = vpop.f32.mrb[0].mxu0
        %v2909 = vpop.f32.mrb[0].mxu0
        %v2910 = vadd.f32 0.0, %v2909
        %v2911 = vpop.f32.mrb[0].mxu0
        %2912 = vmatprep.mubr.bf16.mxu0 0
        %2913 = vmatmul.mubr.bf16.gmra.mrb[0].mxu0 %v1176
        %v2914 = vpop.f32.mrb[0].mxu0
        %v2915 = vadd.f32 0.0, %v2914
        %v2916 = vpop.f32.mrb[0].mxu0
        %v2917 = vpop.f32.mrb[0].mxu0
        %v2918 = vadd.f32 0.0, %v2917
        %v2919 = vpop.f32.mrb[0].mxu0
        %2920 = vmatprep.mubr.bf16.mxu0 0
        %2921 = vmatmul.mubr.bf16.gmra.mrb[0].mxu0 %v1179
        %v2922 = vpop.f32.mrb[0].mxu0
        %v2923 = vadd.f32 0.0, %v2922
        %v2924 = vpop.f32.mrb[0].mxu0
        %v2925 = vpop.f32.mrb[0].mxu0
        %v2926 = vadd.f32 0.0, %v2925
        %v2927 = vpop.f32.mrb[0].mxu0
        %2928 = vmatprep.mubr.bf16.mxu0 0
        %2929 = vmatmul.mubr.bf16.gmra.mrb[0].mxu0 %v1182
        %v2930 = vpop.f32.mrb[0].mxu0
        %v2931 = vadd.f32 0.0, %v2930
        %v2932 = vpop.f32.mrb[0].mxu0
        %v2933 = vpop.f32.mrb[0].mxu0
        %v2934 = vadd.f32 0.0, %v2933
        %v2935 = vpop.f32.mrb[0].mxu0
        %2936 = vmatprep.mubr.bf16.mxu0 0
        %2937 = vmatmul.mubr.bf16.gmra.mrb[0].mxu0 %v1185
        %v2938 = vpop.f32.mrb[0].mxu0
        %v2939 = vadd.f32 0.0, %v2938
        %v2940 = vpop.f32.mrb[0].mxu0
        %v2941 = vpop.f32.mrb[0].mxu0
        %v2942 = vadd.f32 0.0, %v2941
        %v2943 = vpop.f32.mrb[0].mxu0
        %2944 = vmatprep.mubr.bf16.mxu0 0
        %2945 = vmatmul.mubr.bf16.gmra.mrb[0].mxu0 %v1188
        %v2946 = vpop.f32.mrb[0].mxu0
        %v2947 = vadd.f32 0.0, %v2946
        %v2948 = vpop.f32.mrb[0].mxu0
        %v2949 = vpop.f32.mrb[0].mxu0
        %v2950 = vadd.f32 0.0, %v2949
        %v2951 = vpop.f32.mrb[0].mxu0
        %2952 = vmatprep.mubr.bf16.mxu0 0
        %2953 = vmatmul.mubr.bf16.gmra.mrb[0].mxu0 %v1191
        %v2954 = vpop.f32.mrb[0].mxu0
        %v2955 = vadd.f32 0.0, %v2954
        %v2956 = vpop.f32.mrb[0].mxu0
        %v2957 = vpop.f32.mrb[0].mxu0
        %v2958 = vadd.f32 0.0, %v2957
        %v2959 = vpop.f32.mrb[0].mxu0
        %2960 = vmatprep.mubr.bf16.mxu0 0
        %2961 = vmatmul.mubr.bf16.gmra.mrb[0].mxu0 %v1194
        %v2962 = vpop.f32.mrb[0].mxu0
        %v2963 = vadd.f32 0.0, %v2962
        %v2964 = vpop.f32.mrb[0].mxu0
        %v2965 = vpop.f32.mrb[0].mxu0
        %v2966 = vadd.f32 0.0, %v2965
        %v2967 = vpop.f32.mrb[0].mxu0
        %2968 = vmatprep.mubr.bf16.mxu0 0
        %2969 = vmatmul.mubr.bf16.gmra.mrb[0].mxu0 %v1197
        %v2970 = vpop.f32.mrb[0].mxu0
        %v2971 = vadd.f32 0.0, %v2970
        %v2972 = vpop.f32.mrb[0].mxu0
        %v2973 = vpop.f32.mrb[0].mxu0
        %v2974 = vadd.f32 0.0, %v2973
        %v2975 = vpop.f32.mrb[0].mxu0
        %2976 = vmatprep.mubr.bf16.mxu0 0
        %2977 = vmatmul.mubr.bf16.gmra.mrb[0].mxu0 %v2012
        %v2978 = vpop.f32.mrb[0].mxu0
        %v2979 = vadd.f32 0.0, %v2978
        %v2980 = vpop.f32.mrb[0].mxu0
        %v2981 = vpop.f32.mrb[0].mxu0
        %v2982 = vadd.f32 0.0, %v2981
        %v2983 = vpop.f32.mrb[0].mxu0
        %2984 = vmatprep.mubr.bf16.mxu0 0
        %2985 = vmatmul.mubr.bf16.gmra.mrb[0].mxu0 %v2827
        %v2986 = vpop.f32.mrb[0].mxu0
        %v2987 = vadd.f32 0.0, %v2986
        %v2988 = vpop.f32.mrb[0].mxu0
        %v2989 = vpop.f32.mrb[0].mxu0
        %v2990 = vadd.f32 0.0, %v2989
        %v2991 = vpop.f32.mrb[0].mxu0
        %2992 = vdwg.mxu0
        %v2993 = vadd.f32 %v2784, %v2867
        %v2994 = vadd.f32 %v2785, %v2870
        %v2995 = vadd.f32 %v2786, %v2875
        %v2996 = vadd.f32 %v2787, %v2878
        %v2997 = vadd.f32 %v2788, %v2883
        %v2998 = vadd.f32 %v2789, %v2886
        %v2999 = vadd.f32 %v2790, %v2891
        %v3000 = vadd.f32 %v2791, %v2894
        %v3001 = vadd.f32 %v2792, %v2899
        %v3002 = vadd.f32 %v2793, %v2902
        %v3003 = vadd.f32 %v2794, %v2907
        %v3004 = vadd.f32 %v2795, %v2910
        %v3005 = vadd.f32 %v2796, %v2915
        %v3006 = vadd.f32 %v2797, %v2918
        %v3007 = vadd.f32 %v2798, %v2923
        %v3008 = vadd.f32 %v2799, %v2926
        %v3009 = vadd.f32 %v2800, %v2931
        %v3010 = vadd.f32 %v2801, %v2934
        %v3011 = vadd.f32 %v2802, %v2939
        %v3012 = vadd.f32 %v2803, %v2942
        %v3013 = vadd.f32 %v2804, %v2947
        %v3014 = vadd.f32 %v2805, %v2950
        %v3015 = vadd.f32 %v2806, %v2955
        %v3016 = vadd.f32 %v2807, %v2958
        %v3017 = vadd.f32 %v2808, %v2963
        %v3018 = vadd.f32 %v2809, %v2966
        %v3019 = vadd.f32 %v2810, %v2971
        %v3020 = vadd.f32 %v2811, %v2974
        %v3021 = vadd.f32 %v2812, %v2979
        %v3022 = vadd.f32 %v2813, %v2982
        %v3023 = vadd.f32 %v2814, %v2987
        %v3024 = vadd.f32 %v2815, %v2990
        %3025 = vst.msk [vmem:[#allocation2] sm:$0xff] %vm468, %v2993
        %3026 = vst.msk [vmem:[#allocation2 + $0x8] sm:$0xff] %vm468, %v2994
        %3027 = vst.msk [vmem:[#allocation2 + $0x10] sm:$0xff] %vm468, %v2995
        %3028 = vst.msk [vmem:[#allocation2 + $0x18] sm:$0xff] %vm468, %v2996
        %3029 = vst.msk [vmem:[#allocation2 + $0x20] sm:$0xff] %vm468, %v2997
        %3030 = vst.msk [vmem:[#allocation2 + $0x28] sm:$0xff] %vm468, %v2998
        %3031 = vst.msk [vmem:[#allocation2 + $0x30] sm:$0xff] %vm468, %v2999
        %3032 = vst.msk [vmem:[#allocation2 + $0x38] sm:$0xff] %vm468, %v3000
        %3033 = vst.msk [vmem:[#allocation2 + $0x40] sm:$0xff] %vm468, %v3001
        %3034 = vst.msk [vmem:[#allocation2 + $0x48] sm:$0xff] %vm468, %v3002
        %3035 = vst.msk [vmem:[#allocation2 + $0x50] sm:$0xff] %vm468, %v3003
        %3036 = vst.msk [vmem:[#allocation2 + $0x58] sm:$0xff] %vm468, %v3004
        %3037 = vst.msk [vmem:[#allocation2 + $0x60] sm:$0xff] %vm468, %v3005
        %3038 = vst.msk [vmem:[#allocation2 + $0x68] sm:$0xff] %vm468, %v3006
        %3039 = vst.msk [vmem:[#allocation2 + $0x70] sm:$0xff] %vm468, %v3007
        %3040 = vst.msk [vmem:[#allocation2 + $0x78] sm:$0xff] %vm468, %v3008
        %3041 = vst.msk [vmem:[#allocation2 + $0x80] sm:$0xff] %vm468, %v3009
        %3042 = vst.msk [vmem:[#allocation2 + $0x88] sm:$0xff] %vm468, %v3010
        %3043 = vst.msk [vmem:[#allocation2 + $0x90] sm:$0xff] %vm468, %v3011
        %3044 = vst.msk [vmem:[#allocation2 + $0x98] sm:$0xff] %vm468, %v3012
        %3045 = vst.msk [vmem:[#allocation2 + $0xa0] sm:$0xff] %vm468, %v3013
        %3046 = vst.msk [vmem:[#allocation2 + $0xa8] sm:$0xff] %vm468, %v3014
        %3047 = vst.msk [vmem:[#allocation2 + $0xb0] sm:$0xff] %vm468, %v3015
        %3048 = vst.msk [vmem:[#allocation2 + $0xb8] sm:$0xff] %vm468, %v3016
        %3049 = vst.msk [vmem:[#allocation2 + $0xc0] sm:$0xff] %vm468, %v3017
        %3050 = vst.msk [vmem:[#allocation2 + $0xc8] sm:$0xff] %vm468, %v3018
        %3051 = vst.msk [vmem:[#allocation2 + $0xd0] sm:$0xff] %vm468, %v3019
        %3052 = vst.msk [vmem:[#allocation2 + $0xd8] sm:$0xff] %vm468, %v3020
        %3053 = vst.msk [vmem:[#allocation2 + $0xe0] sm:$0xff] %vm468, %v3021
        %3054 = vst.msk [vmem:[#allocation2 + $0xe8] sm:$0xff] %vm468, %v3022
        %3055 = vst.msk [vmem:[#allocation2 + $0xf0] sm:$0xff] %vm468, %v3023
        %3056 = vst.msk [vmem:[#allocation2 + $0xf8] sm:$0xff] %vm468, %v3024
        %v3057 = vld [vmem:[#allocation2] sm:$0xff]
        %v3058 = vld [vmem:[#allocation2 + $0x8] sm:$0xff]
        %v3059 = vld [vmem:[#allocation2 + $0x10] sm:$0xff]
        %v3060 = vld [vmem:[#allocation2 + $0x18] sm:$0xff]
        %v3061 = vld [vmem:[#allocation2 + $0x20] sm:$0xff]
        %v3062 = vld [vmem:[#allocation2 + $0x28] sm:$0xff]
        %v3063 = vld [vmem:[#allocation2 + $0x30] sm:$0xff]
        %v3064 = vld [vmem:[#allocation2 + $0x38] sm:$0xff]
        %v3065 = vld [vmem:[#allocation2 + $0x40] sm:$0xff]
        %v3066 = vld [vmem:[#allocation2 + $0x48] sm:$0xff]
        %v3067 = vld [vmem:[#allocation2 + $0x50] sm:$0xff]
        %v3068 = vld [vmem:[#allocation2 + $0x58] sm:$0xff]
        %v3069 = vld [vmem:[#allocation2 + $0x60] sm:$0xff]
        %v3070 = vld [vmem:[#allocation2 + $0x68] sm:$0xff]
        %v3071 = vld [vmem:[#allocation2 + $0x70] sm:$0xff]
        %v3072 = vld [vmem:[#allocation2 + $0x78] sm:$0xff]
        %v3073 = vld [vmem:[#allocation2 + $0x80] sm:$0xff]
        %v3074 = vld [vmem:[#allocation2 + $0x88] sm:$0xff]
        %v3075 = vld [vmem:[#allocation2 + $0x90] sm:$0xff]
        %v3076 = vld [vmem:[#allocation2 + $0x98] sm:$0xff]
        %v3077 = vld [vmem:[#allocation2 + $0xa0] sm:$0xff]
        %v3078 = vld [vmem:[#allocation2 + $0xa8] sm:$0xff]
        %v3079 = vld [vmem:[#allocation2 + $0xb0] sm:$0xff]
        %v3080 = vld [vmem:[#allocation2 + $0xb8] sm:$0xff]
        %v3081 = vld [vmem:[#allocation2 + $0xc0] sm:$0xff]
        %v3082 = vld [vmem:[#allocation2 + $0xc8] sm:$0xff]
        %v3083 = vld [vmem:[#allocation2 + $0xd0] sm:$0xff]
        %v3084 = vld [vmem:[#allocation2 + $0xd8] sm:$0xff]
        %v3085 = vld [vmem:[#allocation2 + $0xe0] sm:$0xff]
        %v3086 = vld [vmem:[#allocation2 + $0xe8] sm:$0xff]
        %v3087 = vld [vmem:[#allocation2 + $0xf0] sm:$0xff]
        %v3088 = vld [vmem:[#allocation2 + $0xf8] sm:$0xff]
        %v3089 = vpack.c.bf16 %v3058, %v3057
        %v3090 = vpack.c.bf16 %v3060, %v3059
        %v3091 = vpack.c.bf16 %v3062, %v3061
        %v3092 = vpack.c.bf16 %v3064, %v3063
        %v3093 = vpack.c.bf16 %v3066, %v3065
        %v3094 = vpack.c.bf16 %v3068, %v3067
        %v3095 = vpack.c.bf16 %v3070, %v3069
        %v3096 = vpack.c.bf16 %v3072, %v3071
        %v3097 = vpack.c.bf16 %v3074, %v3073
        %v3098 = vpack.c.bf16 %v3076, %v3075
        %v3099 = vpack.c.bf16 %v3078, %v3077
        %v3100 = vpack.c.bf16 %v3080, %v3079
        %v3101 = vpack.c.bf16 %v3082, %v3081
        %v3102 = vpack.c.bf16 %v3084, %v3083
        %v3103 = vpack.c.bf16 %v3086, %v3085
        %v3104 = vpack.c.bf16 %v3088, %v3087
        %v3121 = vunpack.c.l.b16 %v3089
        %v3122 = vunpack.c.h.b16 %v3089
        %v3123 = vunpack.c.l.b16 %v3090
        %v3124 = vunpack.c.h.b16 %v3090
        %v3125 = vunpack.c.l.b16 %v3091
        %v3126 = vunpack.c.h.b16 %v3091
        %v3127 = vunpack.c.l.b16 %v3092
        %v3128 = vunpack.c.h.b16 %v3092
        %v3129 = vunpack.c.l.b16 %v3093
        %v3130 = vunpack.c.h.b16 %v3093
        %v3131 = vunpack.c.l.b16 %v3094
        %v3132 = vunpack.c.h.b16 %v3094
        %v3133 = vunpack.c.l.b16 %v3095
        %v3134 = vunpack.c.h.b16 %v3095
        %v3135 = vunpack.c.l.b16 %v3096
        %v3136 = vunpack.c.h.b16 %v3096
        %v3137 = vunpack.c.l.b16 %v3097
        %v3138 = vunpack.c.h.b16 %v3097
        %v3139 = vunpack.c.l.b16 %v3098
        %v3140 = vunpack.c.h.b16 %v3098
        %v3141 = vunpack.c.l.b16 %v3099
        %v3142 = vunpack.c.h.b16 %v3099
        %v3143 = vunpack.c.l.b16 %v3100
        %v3144 = vunpack.c.h.b16 %v3100
        %v3145 = vunpack.c.l.b16 %v3101
        %v3146 = vunpack.c.h.b16 %v3101
        %v3147 = vunpack.c.l.b16 %v3102
        %v3148 = vunpack.c.h.b16 %v3102
        %v3149 = vunpack.c.l.b16 %v3103
        %v3150 = vunpack.c.h.b16 %v3103
        %v3151 = vunpack.c.l.b16 %v3104
        %v3152 = vunpack.c.h.b16 %v3104
        %v3153 = vpack.c.b16 %v3121, %v3121
        %v3154 = vpack.c.b16 %v3122, %v3122
        %v3155 = vpack.c.b16 %v3123, %v3123
        %v3156 = vpack.c.b16 %v3124, %v3124
        %v3157 = vpack.c.b16 %v3125, %v3125
        %v3158 = vpack.c.b16 %v3126, %v3126
        %v3159 = vpack.c.b16 %v3127, %v3127
        %v3160 = vpack.c.b16 %v3128, %v3128
        %v3161 = vpack.c.b16 %v3129, %v3129
        %v3162 = vpack.c.b16 %v3130, %v3130
        %v3163 = vpack.c.b16 %v3131, %v3131
        %v3164 = vpack.c.b16 %v3132, %v3132
        %v3165 = vpack.c.b16 %v3133, %v3133
        %v3166 = vpack.c.b16 %v3134, %v3134
        %v3167 = vpack.c.b16 %v3135, %v3135
        %v3168 = vpack.c.b16 %v3136, %v3136
        %v3169 = vpack.c.b16 %v3137, %v3137
        %v3170 = vpack.c.b16 %v3138, %v3138
        %v3171 = vpack.c.b16 %v3139, %v3139
        %v3172 = vpack.c.b16 %v3140, %v3140
        %v3173 = vpack.c.b16 %v3141, %v3141
        %v3174 = vpack.c.b16 %v3142, %v3142
        %v3175 = vpack.c.b16 %v3143, %v3143
        %v3176 = vpack.c.b16 %v3144, %v3144
        %v3177 = vpack.c.b16 %v3145, %v3145
        %v3178 = vpack.c.b16 %v3146, %v3146
        %v3179 = vpack.c.b16 %v3147, %v3147
        %v3180 = vpack.c.b16 %v3148, %v3148
        %v3181 = vpack.c.b16 %v3149, %v3149
        %v3182 = vpack.c.b16 %v3150, %v3150
        %v3183 = vpack.c.b16 %v3151, %v3151
        %v3184 = vpack.c.b16 %v3152, %v3152
        %vm3217 = vcmask 60416
        %3218 = vst.msk [vmem:[%s181] sm:$0xf] %vm3217, %v3153
        %3219 = vst.msk [vmem:[%s181 + $0x4] sm:$0xf] %vm3217, %v3154
        %3220 = vst.msk [vmem:[%s181 + $0x8] sm:$0xf] %vm3217, %v3155
        %3221 = vst.msk [vmem:[%s181 + $0xc] sm:$0xf] %vm3217, %v3156
        %3222 = vst.msk [vmem:[%s181 + $0x10] sm:$0xf] %vm3217, %v3157
        %3223 = vst.msk [vmem:[%s181 + $0x14] sm:$0xf] %vm3217, %v3158
        %3224 = vst.msk [vmem:[%s181 + $0x18] sm:$0xf] %vm3217, %v3159
        %3225 = vst.msk [vmem:[%s181 + $0x1c] sm:$0xf] %vm3217, %v3160
        %3226 = vst.msk [vmem:[%s181 + $0x20] sm:$0xf] %vm3217, %v3161
        %3227 = vst.msk [vmem:[%s181 + $0x24] sm:$0xf] %vm3217, %v3162
        %3228 = vst.msk [vmem:[%s181 + $0x28] sm:$0xf] %vm3217, %v3163
        %3229 = vst.msk [vmem:[%s181 + $0x2c] sm:$0xf] %vm3217, %v3164
        %3230 = vst.msk [vmem:[%s181 + $0x30] sm:$0xf] %vm3217, %v3165
        %3231 = vst.msk [vmem:[%s181 + $0x34] sm:$0xf] %vm3217, %v3166
        %3232 = vst.msk [vmem:[%s181 + $0x38] sm:$0xf] %vm3217, %v3167
        %3233 = vst.msk [vmem:[%s181 + $0x3c] sm:$0xf] %vm3217, %v3168
        %3234 = vst.msk [vmem:[%s181 + $0x40] sm:$0xf] %vm3217, %v3169
        %3235 = vst.msk [vmem:[%s181 + $0x44] sm:$0xf] %vm3217, %v3170
        %3236 = vst.msk [vmem:[%s181 + $0x48] sm:$0xf] %vm3217, %v3171
        %3237 = vst.msk [vmem:[%s181 + $0x4c] sm:$0xf] %vm3217, %v3172
        %3238 = vst.msk [vmem:[%s181 + $0x50] sm:$0xf] %vm3217, %v3173
        %3239 = vst.msk [vmem:[%s181 + $0x54] sm:$0xf] %vm3217, %v3174
        %3240 = vst.msk [vmem:[%s181 + $0x58] sm:$0xf] %vm3217, %v3175
        %3241 = vst.msk [vmem:[%s181 + $0x5c] sm:$0xf] %vm3217, %v3176
        %3242 = vst.msk [vmem:[%s181 + $0x60] sm:$0xf] %vm3217, %v3177
        %3243 = vst.msk [vmem:[%s181 + $0x64] sm:$0xf] %vm3217, %v3178
        %3244 = vst.msk [vmem:[%s181 + $0x68] sm:$0xf] %vm3217, %v3179
        %3245 = vst.msk [vmem:[%s181 + $0x6c] sm:$0xf] %vm3217, %v3180
        %3246 = vst.msk [vmem:[%s181 + $0x70] sm:$0xf] %vm3217, %v3181
        %3247 = vst.msk [vmem:[%s181 + $0x74] sm:$0xf] %vm3217, %v3182
        %3248 = vst.msk [vmem:[%s181 + $0x78] sm:$0xf] %vm3217, %v3183
        %3249 = vst.msk [vmem:[%s181 + $0x7c] sm:$0xf] %vm3217, %v3184
        %v3250 = vsel %vm468, %v3057, 0.0
        %v3251 = vsel %vm468, %v3058, 0.0
        %v3252 = vadd.f32 %v3250, %v3251
        %v3253 = vsel %vm468, %v3059, 0.0
        %v3254 = vadd.f32 %v3252, %v3253
        %v3255 = vsel %vm468, %v3060, 0.0
        %v3256 = vadd.f32 %v3254, %v3255
        %v3257 = vsel %vm468, %v3061, 0.0
        %v3258 = vadd.f32 %v3256, %v3257
        %v3259 = vsel %vm468, %v3062, 0.0
        %v3260 = vadd.f32 %v3258, %v3259
        %v3261 = vsel %vm468, %v3063, 0.0
        %v3262 = vadd.f32 %v3260, %v3261
        %v3263 = vsel %vm468, %v3064, 0.0
        %v3264 = vadd.f32 %v3262, %v3263
        %v3265 = vsel %vm468, %v3065, 0.0
        %v3266 = vadd.f32 %v3264, %v3265
        %v3267 = vsel %vm468, %v3066, 0.0
        %v3268 = vadd.f32 %v3266, %v3267
        %v3269 = vsel %vm468, %v3067, 0.0
        %v3270 = vadd.f32 %v3268, %v3269
        %v3271 = vsel %vm468, %v3068, 0.0
        %v3272 = vadd.f32 %v3270, %v3271
        %v3273 = vsel %vm468, %v3069, 0.0
        %v3274 = vadd.f32 %v3272, %v3273
        %v3275 = vsel %vm468, %v3070, 0.0
        %v3276 = vadd.f32 %v3274, %v3275
        %v3277 = vsel %vm468, %v3071, 0.0
        %v3278 = vadd.f32 %v3276, %v3277
        %v3279 = vsel %vm468, %v3072, 0.0
        %v3280 = vadd.f32 %v3278, %v3279
        %v3281 = vsel %vm468, %v3073, 0.0
        %v3282 = vadd.f32 %v3280, %v3281
        %v3283 = vsel %vm468, %v3074, 0.0
        %v3284 = vadd.f32 %v3282, %v3283
        %v3285 = vsel %vm468, %v3075, 0.0
        %v3286 = vadd.f32 %v3284, %v3285
        %v3287 = vsel %vm468, %v3076, 0.0
        %v3288 = vadd.f32 %v3286, %v3287
        %v3289 = vsel %vm468, %v3077, 0.0
        %v3290 = vadd.f32 %v3288, %v3289
        %v3291 = vsel %vm468, %v3078, 0.0
        %v3292 = vadd.f32 %v3290, %v3291
        %v3293 = vsel %vm468, %v3079, 0.0
        %v3294 = vadd.f32 %v3292, %v3293
        %v3295 = vsel %vm468, %v3080, 0.0
        %v3296 = vadd.f32 %v3294, %v3295
        %v3297 = vsel %vm468, %v3081, 0.0
        %v3298 = vadd.f32 %v3296, %v3297
        %v3299 = vsel %vm468, %v3082, 0.0
        %v3300 = vadd.f32 %v3298, %v3299
        %v3301 = vsel %vm468, %v3083, 0.0
        %v3302 = vadd.f32 %v3300, %v3301
        %v3303 = vsel %vm468, %v3084, 0.0
        %v3304 = vadd.f32 %v3302, %v3303
        %v3305 = vsel %vm468, %v3085, 0.0
        %v3306 = vadd.f32 %v3304, %v3305
        %v3307 = vsel %vm468, %v3086, 0.0
        %v3308 = vadd.f32 %v3306, %v3307
        %v3309 = vsel %vm468, %v3087, 0.0
        %v3310 = vadd.f32 %v3308, %v3309
        %v3311 = vsel %vm468, %v3088, 0.0
        %v3312 = vadd.f32 %v3310, %v3311
        %v3313 = vrot.slane %v3312, 4
        %v3314 = vadd.f32 %v3312, %v3313
        %v3315 = vrot.slane %v3314, 2
        %v3316 = vadd.f32 %v3314, %v3315
        %v3317 = vrot.slane %v3316, 1
        %v3318 = vadd.f32 %v3316, %v3317
        %vm3319 = vcmask 57344
        %3320 = vst.msk [vmem:[%s171] sm:$0x1] %vm3319, %v3318
        %v3321 = vmul.f32 %v3057, %v3057
        %v3322 = vmul.f32 %v3058, %v3058
        %v3323 = vmul.f32 %v3059, %v3059
        %v3324 = vmul.f32 %v3060, %v3060
        %v3325 = vmul.f32 %v3061, %v3061
        %v3326 = vmul.f32 %v3062, %v3062
        %v3327 = vmul.f32 %v3063, %v3063
        %v3328 = vmul.f32 %v3064, %v3064
        %v3329 = vmul.f32 %v3065, %v3065
        %v3330 = vmul.f32 %v3066, %v3066
        %v3331 = vmul.f32 %v3067, %v3067
        %v3332 = vmul.f32 %v3068, %v3068
        %v3333 = vmul.f32 %v3069, %v3069
        %v3334 = vmul.f32 %v3070, %v3070
        %v3335 = vmul.f32 %v3071, %v3071
        %v3336 = vmul.f32 %v3072, %v3072
        %v3337 = vmul.f32 %v3073, %v3073
        %v3338 = vmul.f32 %v3074, %v3074
        %v3339 = vmul.f32 %v3075, %v3075
        %v3340 = vmul.f32 %v3076, %v3076
        %v3341 = vmul.f32 %v3077, %v3077
        %v3342 = vmul.f32 %v3078, %v3078
        %v3343 = vmul.f32 %v3079, %v3079
        %v3344 = vmul.f32 %v3080, %v3080
        %v3345 = vmul.f32 %v3081, %v3081
        %v3346 = vmul.f32 %v3082, %v3082
        %v3347 = vmul.f32 %v3083, %v3083
        %v3348 = vmul.f32 %v3084, %v3084
        %v3349 = vmul.f32 %v3085, %v3085
        %v3350 = vmul.f32 %v3086, %v3086
        %v3351 = vmul.f32 %v3087, %v3087
        %v3352 = vmul.f32 %v3088, %v3088
        %v3353 = vsel %vm468, %v3321, 0.0
        %v3354 = vsel %vm468, %v3322, 0.0
        %v3355 = vadd.f32 %v3353, %v3354
        %v3356 = vsel %vm468, %v3323, 0.0
        %v3357 = vadd.f32 %v3355, %v3356
        %v3358 = vsel %vm468, %v3324, 0.0
        %v3359 = vadd.f32 %v3357, %v3358
        %v3360 = vsel %vm468, %v3325, 0.0
        %v3361 = vadd.f32 %v3359, %v3360
        %v3362 = vsel %vm468, %v3326, 0.0
        %v3363 = vadd.f32 %v3361, %v3362
        %v3364 = vsel %vm468, %v3327, 0.0
        %v3365 = vadd.f32 %v3363, %v3364
        %v3366 = vsel %vm468, %v3328, 0.0
        %v3367 = vadd.f32 %v3365, %v3366
        %v3368 = vsel %vm468, %v3329, 0.0
        %v3369 = vadd.f32 %v3367, %v3368
        %v3370 = vsel %vm468, %v3330, 0.0
        %v3371 = vadd.f32 %v3369, %v3370
        %v3372 = vsel %vm468, %v3331, 0.0
        %v3373 = vadd.f32 %v3371, %v3372
        %v3374 = vsel %vm468, %v3332, 0.0
        %v3375 = vadd.f32 %v3373, %v3374
        %v3376 = vsel %vm468, %v3333, 0.0
        %v3377 = vadd.f32 %v3375, %v3376
        %v3378 = vsel %vm468, %v3334, 0.0
        %v3379 = vadd.f32 %v3377, %v3378
        %v3380 = vsel %vm468, %v3335, 0.0
        %v3381 = vadd.f32 %v3379, %v3380
        %v3382 = vsel %vm468, %v3336, 0.0
        %v3383 = vadd.f32 %v3381, %v3382
        %v3384 = vsel %vm468, %v3337, 0.0
        %v3385 = vadd.f32 %v3383, %v3384
        %v3386 = vsel %vm468, %v3338, 0.0
        %v3387 = vadd.f32 %v3385, %v3386
        %v3388 = vsel %vm468, %v3339, 0.0
        %v3389 = vadd.f32 %v3387, %v3388
        %v3390 = vsel %vm468, %v3340, 0.0
        %v3391 = vadd.f32 %v3389, %v3390
        %v3392 = vsel %vm468, %v3341, 0.0
        %v3393 = vadd.f32 %v3391, %v3392
        %v3394 = vsel %vm468, %v3342, 0.0
        %v3395 = vadd.f32 %v3393, %v3394
        %v3396 = vsel %vm468, %v3343, 0.0
        %v3397 = vadd.f32 %v3395, %v3396
        %v3398 = vsel %vm468, %v3344, 0.0
        %v3399 = vadd.f32 %v3397, %v3398
        %v3400 = vsel %vm468, %v3345, 0.0
        %v3401 = vadd.f32 %v3399, %v3400
        %v3402 = vsel %vm468, %v3346, 0.0
        %v3403 = vadd.f32 %v3401, %v3402
        %v3404 = vsel %vm468, %v3347, 0.0
        %v3405 = vadd.f32 %v3403, %v3404
        %v3406 = vsel %vm468, %v3348, 0.0
        %v3407 = vadd.f32 %v3405, %v3406
        %v3408 = vsel %vm468, %v3349, 0.0
        %v3409 = vadd.f32 %v3407, %v3408
        %v3410 = vsel %vm468, %v3350, 0.0
        %v3411 = vadd.f32 %v3409, %v3410
        %v3412 = vsel %vm468, %v3351, 0.0
        %v3413 = vadd.f32 %v3411, %v3412
        %v3414 = vsel %vm468, %v3352, 0.0
        %v3415 = vadd.f32 %v3413, %v3414
        %v3416 = vrot.slane %v3415, 4
        %v3417 = vadd.f32 %v3415, %v3416
        %v3418 = vrot.slane %v3417, 2
        %v3419 = vadd.f32 %v3417, %v3418
        %v3420 = vrot.slane %v3419, 1
        %v3421 = vadd.f32 %v3419, %v3420
        %3422 = vst.msk [vmem:[%s171 + $0x1] sm:$0x1] %vm3319, %v3421
        %p3423 = scmp.lt.s32.totalorder %s18, 1
        %s3424 = scalar_select %p3423, %s18, 1
        %s3425 = smul.addr %s3424, 32
        %s3426 = smul.addr %s3425, 4
        %s3427 = scalar_lea.vmem %s2, %s3426
        %s3428 = sand.u32 %s99, 1
        %s3429 = scalar_lea.sflag [#allocation4], %s3428
        %s3430 = sand.u32 %s99, 1
        %s3431 = smul.addr %s3430, 2
        %s3432 = scalar_lea.vmem [#allocation3], %s3431
        // Predicated region
        $region29: #{tpu_custom_call.1} parent=27 // pred_check
          %p3433 = pneg %p83
        $region30: #{tpu_custom_call.1} parent=27 // pred_check_branch
          %3435 = sbr.rel (%p3433) target = $region32
        $region31: #{tpu_custom_call.1} parent=27 // pred_region
          _
        $region32: #{tpu_custom_call.1} parent=27 // pred_fallthru
          _
        // Predicated region
        $region33: #{tpu_custom_call.1} parent=27 // pred_check
          %p3436 = pneg %p109
        $region34: #{tpu_custom_call.1} parent=27 // pred_check_branch
          %3438 = sbr.rel (%p3436) target = $region36
        $region35: #{tpu_custom_call.1} parent=27 // pred_region
          %s3440 = ssub.s32 32, 32
          %3441 = vsyncadd %s3429, %s3440
          %s3442 = smul.addr %s18, 32
          %s3443 = scalar_lea.hbm %s3, %s3442
          %s3445 = sshll.u32 %s3432, 4
          %s3446 = int_to_ptr.vmem [resolvable:$true] %s3445
          %3448 = dma.vmem_to_hbm [thread:$0]  %s3446, 32, %s3443, %s3429
        $region36: #{tpu_custom_call.1} parent=27 // pred_fallthru
          _
      $region28: #{tpu_custom_call.1} parent=5 // pred_fallthru
        _
      %p3449 = scmp.le.s32.totalorder 2, %s13
      // Predicated region
      $region37: #{tpu_custom_call.1} parent=5 // pred_check
        %p3450 = pneg %p3449
      $region38: #{tpu_custom_call.1} parent=5 // pred_check_branch
        %3452 = sbr.rel (%p3450) target = $region40
      $region39: #{tpu_custom_call.1} parent=5 // pred_region
        %s3453 = ssub.s32 %s13, 2
        // Predicated region
        $region41: #{tpu_custom_call.1} parent=39 // pred_check
          %p3454 = pneg %p89
        $region42: #{tpu_custom_call.1} parent=39 // pred_check_branch
          %3456 = sbr.rel (%p3454) target = $region44
        $region43: #{tpu_custom_call.1} parent=39 // pred_region
          %p3457 = scmp.lt.s32.totalorder %s19, 1
          %s3458 = scalar_select %p3457, %s19, 1
          %s3459 = smul.addr %s3458, 32
          %s3460 = smul.addr %s3459, 4
          %s3461 = scalar_lea.vmem %s2, %s3460
        $region44: #{tpu_custom_call.1} parent=39 // pred_fallthru
          _
        // Predicated region
        $region45: #{tpu_custom_call.1} parent=39 // pred_check
          %p3462 = pneg %p115
        $region46: #{tpu_custom_call.1} parent=39 // pred_check_branch
          %3464 = sbr.rel (%p3462) target = $region48
        $region47: #{tpu_custom_call.1} parent=39 // pred_region
          %s3465 = sand.u32 %s100, 1
          %s3466 = scalar_lea.sflag [#allocation4], %s3465
          %s3467 = sand.u32 %s100, 1
          %s3468 = smul.addr %s3467, 2
          %s3469 = scalar_lea.vmem [#allocation3], %s3468
          %3470 = dma.done %s3466, 32
        $region48: #{tpu_custom_call.1} parent=39 // pred_fallthru
          _
      $region40: #{tpu_custom_call.1} parent=5 // pred_fallthru
        _
    $region6: #{tpu_custom_call.1} parent=1 // loop_footer
      %s17 = sadd.s32 1, %s13
    $region7: #{tpu_custom_call.1} parent=1 // loop_footer_branch
      %12 = sbr.rel target = $region3
    $region8: #{tpu_custom_call.1} parent=1 // loop_exit
      _
    %3471 = vsyncpa [#allocation4], 1
    %s3472 = scalar_lea.sflag [#allocation4], 1
    %3473 = vsyncpa %s3472, 1

</llo_original>
